<compile_context>
chip_gen: v5e
topology: v5e:2x2
jax: 0.10.0
libtpu: 0.0.40
codegen_flags: <defaults>
</compile_context>

<pallas_src>
import functools
import math

import jax
import jax.numpy as jnp
from jax import lax
from jax.experimental import pallas as pl
from jax.experimental.pallas import tpu as pltpu

F32 = jnp.float32
BF16 = jnp.bfloat16


# -----------------------------------------------------------------------------
# In-kernel helpers (traced inside Pallas kernels)
# -----------------------------------------------------------------------------
def _ln(x, g, b, eps=1e-5):
    mu = jnp.mean(x, axis=-1, keepdims=True)
    var = jnp.mean((x - mu) ** 2, axis=-1, keepdims=True)
    return (x - mu) * lax.rsqrt(var + eps) * g + b


def _mm(a, w, bias=None):
    """bf16-operand matmul with f32 accumulation (+ optional f32 bias)."""
    y = jnp.dot(a.astype(BF16), w.astype(BF16), preferred_element_type=F32)
    if bias is not None:
        y = y + bias
    return y


def _attn_core(q, k, v, n_heads, scale):
    """q: (Lq, E), k/v: (Lk, E); heads split in-kernel, lane-dense (Lq, E) out."""
    E = q.shape[-1]
    Dh = E // n_heads
    outs = []
    for h in range(n_heads):
        sl = slice(h * Dh, (h + 1) * Dh)
        qh = q[:, sl].astype(BF16)
        kh = k[:, sl].astype(BF16)
        vh = v[:, sl].astype(BF16)
        s = lax.dot_general(qh, kh, (((1,), (1,)), ((), ())),
                            preferred_element_type=F32) * scale
        m = jnp.max(s, axis=-1, keepdims=True)
        p = jnp.exp(s - m)                                      # f32 transcendental
        p = p * pl.reciprocal(jnp.sum(p, axis=-1, keepdims=True), approx=True)
        outs.append(jnp.dot(p.astype(BF16), vh, preferred_element_type=F32))
    return jnp.concatenate(outs, axis=-1)                       # (Lq, E)


# -----------------------------------------------------------------------------
# Pallas kernels
# -----------------------------------------------------------------------------
def _embed_kernel(x0_ref, noise_ref, c1_ref, c2_ref, semb_ref,
                  wt1_ref, bt1_ref, wt2_ref, bt2_ref,
                  win_ref, bin_ref, pos_ref, o_ref):
    B, L, Fd = x0_ref.shape
    E = win_ref.shape[1]
    # time-conditioning MLP (SiLU)
    t1 = _mm(semb_ref[...], wt1_ref[...], bt1_ref[...])
    t1 = t1 * jax.nn.sigmoid(t1)
    temb = _mm(t1, wt2_ref[...], bt2_ref[...])                  # (B, E)
    # forward diffusion (q-sample) fused with the input projection
    x_t = c1_ref[...] * x0_ref[...] + c2_ref[...] * noise_ref[...]
    emb = _mm(x_t.reshape(B * L, Fd), win_ref[...], bin_ref[...]).reshape(B, L, E)
    o_ref[...] = emb + pos_ref[...] + temb.reshape(B, 1, E)


def _self_attn_kernel(x_ref, g_ref, b_ref, wqkv_ref, bqkv_ref, wo_ref, bo_ref,
                      o_ref, *, n_heads):
    x = x_ref[0]                                                # (L, E)
    E = x.shape[-1]
    h = _ln(x, g_ref[...], b_ref[...])
    qkv = _mm(h, wqkv_ref[...], bqkv_ref[...])                  # fused QKV (L, 3E)
    q, k, v = qkv[:, :E], qkv[:, E:2 * E], qkv[:, 2 * E:]
    a = _attn_core(q, k, v, n_heads, 1.0 / math.sqrt(E // n_heads))
    o_ref[0] = x + _mm(a, wo_ref[...], bo_ref[...])             # fused residual


def _cross_attn_kernel(x_ref, kv_ref, g_ref, b_ref, wq_ref, bq_ref,
                       wkv_ref, bkv_ref, wo_ref, bo_ref, o_ref, *, n_heads):
    x = x_ref[0]                                                # (L, E)
    src = kv_ref[0]                                             # encoder memory
    E = x.shape[-1]
    h = _ln(x, g_ref[...], b_ref[...])
    q = _mm(h, wq_ref[...], bq_ref[...])
    kv = _mm(src, wkv_ref[...], bkv_ref[...])                   # fused KV (Ls, 2E)
    k, v = kv[:, :E], kv[:, E:]
    a = _attn_core(q, k, v, n_heads, 1.0 / math.sqrt(E // n_heads))
    o_ref[0] = x + _mm(a, wo_ref[...], bo_ref[...])


def _mlp_kernel(x_ref, g_ref, b_ref, w1_ref, b1_ref, w2_ref, b2_ref, o_ref):
    x = x_ref[0]
    h = _ln(x, g_ref[...], b_ref[...])
    # jax.nn.gelu (tanh approx); torch.nn.GELU defaults to exact erf — the
    # Transformer submodule is an approximation anyway (see module TODO).
    h1 = jax.nn.gelu(_mm(h, w1_ref[...], b1_ref[...]))          # f32 transcendental
    o_ref[0] = x + _mm(h1, w2_ref[...], b2_ref[...])


def _loss_kernel(d_ref, wout_ref, bout_ref, x0_ref, w_ref, wlane_ref,
                 cos_ref, sin_ref, o_ref, *, ff_weight, use_ff):
    B, L, E = d_ref.shape
    Fd = x0_ref.shape[-1]
    # fused trend/season head: one (E, 2F) matmul, x_0_pred = trend + season
    ts = _mm(d_ref[...].reshape(B * L, E), wout_ref[...], bout_ref[...])
    pred = (ts[:, :Fd] + ts[:, Fd:]).reshape(B, L, Fd)
    diff = pred - x0_ref[...]
    total = jnp.sum(jnp.abs(diff) * w_ref[...])                 # weighted L1
    if use_ff:
        # FFT is linear -> DFT of the difference; batch the B DFTs via a lane
        # concat so cos / sin are a single (L,L)x(L,B*F) matmul each (f32 for
        # loss accuracy; negligible MXU time at this size).
        D = jnp.concatenate([diff[b] for b in range(B)], axis=-1)   # (L, B*F)
        re = jnp.dot(cos_ref[...], D, preferred_element_type=F32)
        im = jnp.dot(sin_ref[...], D, preferred_element_type=F32)
        four = jnp.abs(re) + jnp.abs(im)
        total = total + ff_weight * jnp.sum(four * wlane_ref[...])
    o_ref[0, 0] = total * (1.0 / (B * L * Fd))


# -----------------------------------------------------------------------------
# Pallas wrappers
# -----------------------------------------------------------------------------
def _rep_spec(arr):
    # whole array, constant block index across the batch grid (DMA'd once)
    nd = arr.ndim
    return pl.BlockSpec(arr.shape, lambda b, _n=nd: (0,) * _n)


def embed_fused(x0, noise, c1, c2, semb, p):
    B, L, _ = x0.shape
    E = p["win"].shape[1]
    return pl.pallas_call(
        _embed_kernel,
        out_shape=jax.ShapeDtypeStruct((B, L, E), F32),
    )(x0, noise, c1, c2, semb,
      p["wt1"], p["bt1"], p["wt2"], p["bt2"],
      p["win"], p["bin"], p["pos_emb"])


def self_attn_block(x, a, n_heads):
    B, L, E = x.shape
    xspec = pl.BlockSpec((1, L, E), lambda b: (b, 0, 0))
    args = (a["ln_g"], a["ln_b"], a["wqkv"], a["bqkv"], a["wo"], a["bo"])
    return pl.pallas_call(
        functools.partial(_self_attn_kernel, n_heads=n_heads),
        grid=(B,),
        in_specs=[xspec] + [_rep_spec(w) for w in args],
        out_specs=xspec,
        out_shape=jax.ShapeDtypeStruct((B, L, E), F32),
        compiler_params=pltpu.CompilerParams(dimension_semantics=("parallel",)),
    )(x, *args)


def cross_attn_block(x, kv, a, n_heads):
    B, L, E = x.shape
    Ls = kv.shape[1]
    xspec = pl.BlockSpec((1, L, E), lambda b: (b, 0, 0))
    kvspec = pl.BlockSpec((1, Ls, E), lambda b: (b, 0, 0))
    args = (a["ln_g"], a["ln_b"], a["wq"], a["bq"], a["wkv"], a["bkv"],
            a["wo"], a["bo"])
    return pl.pallas_call(
        functools.partial(_cross_attn_kernel, n_heads=n_heads),
        grid=(B,),
        in_specs=[xspec, kvspec] + [_rep_spec(w) for w in args],
        out_specs=xspec,
        out_shape=jax.ShapeDtypeStruct((B, L, E), F32),
        compiler_params=pltpu.CompilerParams(dimension_semantics=("parallel",)),
    )(x, kv, *args)


def mlp_block(x, m):
    B, L, E = x.shape
    xspec = pl.BlockSpec((1, L, E), lambda b: (b, 0, 0))
    args = (m["ln_g"], m["ln_b"], m["w1"], m["b1"], m["w2"], m["b2"])
    return pl.pallas_call(
        _mlp_kernel,
        grid=(B,),
        in_specs=[xspec] + [_rep_spec(w) for w in args],
        out_specs=xspec,
        out_shape=jax.ShapeDtypeStruct((B, L, E), F32),
        compiler_params=pltpu.CompilerParams(dimension_semantics=("parallel",)),
    )(x, *args)


def diffusion_loss(d, wout, bout, x0, w, w_lane, dft_cos, dft_sin,
                   *, ff_weight, use_ff):
    vmem = pl.BlockSpec(memory_space=pltpu.MemorySpace.VMEM)
    out = pl.pallas_call(
        functools.partial(_loss_kernel, ff_weight=ff_weight, use_ff=use_ff),
        in_specs=[vmem] * 8,
        out_specs=pl.BlockSpec(memory_space=pltpu.MemorySpace.SMEM),
        out_shape=jax.ShapeDtypeStruct((1, 1), F32),
    )(d, wout, bout, x0, w, w_lane, dft_cos, dft_sin)
    return out[0, 0]


# -----------------------------------------------------------------------------
# Transformer (approximation of Diffusion-TS Transformer, fused Pallas blocks)
# -----------------------------------------------------------------------------
def sinusoidal_embedding(t, dim):
    half = dim // 2
    freqs = jnp.exp(-math.log(10000.0) * jnp.arange(half, dtype=F32) / half)
    args = t.astype(F32)[:, None] * freqs[None, :]
    return jnp.concatenate([jnp.sin(args), jnp.cos(args)], axis=-1)


def transformer_forward(params, emb, *, n_heads):
    # encoder
    h = emb
    for lp in params["enc_layers"]:
        h = self_attn_block(h, lp["attn"], n_heads)
        h = mlp_block(h, lp["mlp"])
    enc = h
    # decoder (self-attn + cross-attn to encoder memory)
    d = emb
    for lp in params["dec_layers"]:
        d = self_attn_block(d, lp["attn"], n_heads)
        d = cross_attn_block(d, enc, lp["xattn"], n_heads)
        d = mlp_block(d, lp["mlp"])
    return d


# -----------------------------------------------------------------------------
# Parameter / buffer construction (deterministic, in-script)
# -----------------------------------------------------------------------------
def init_params(key, *, n_feat, n_embd, mlp_hidden_times, n_layer_enc,
                n_layer_dec, seq_len):
    keys = iter(jax.random.split(key, 1024))

    def dense(din, dout, scale=0.02):
        w = jax.random.normal(next(keys), (din, dout), F32) * scale
        return w, jnp.zeros((1, dout), F32)

    def ln():
        return jnp.ones((1, n_embd), F32), jnp.zeros((1, n_embd), F32)

    def self_attn():
        g, b = ln()
        wqkv, bqkv = dense(n_embd, 3 * n_embd)     # fused Q/K/V
        wo, bo = dense(n_embd, n_embd)
        return dict(ln_g=g, ln_b=b, wqkv=wqkv, bqkv=bqkv, wo=wo, bo=bo)

    def cross_attn():
        g, b = ln()
        wq, bq = dense(n_embd, n_embd)
        wkv, bkv = dense(n_embd, 2 * n_embd)       # fused K/V
        wo, bo = dense(n_embd, n_embd)
        return dict(ln_g=g, ln_b=b, wq=wq, bq=bq, wkv=wkv, bkv=bkv, wo=wo, bo=bo)

    def mlp():
        g, b = ln()
        hidden = mlp_hidden_times * n_embd
        w1, b1 = dense(n_embd, hidden)
        w2, b2 = dense(hidden, n_embd)
        return dict(ln_g=g, ln_b=b, w1=w1, b1=b1, w2=w2, b2=b2)

    p = {}
    p["win"], p["bin"] = dense(n_feat, n_embd)
    p["pos_emb"] = jax.random.normal(next(keys), (seq_len, n_embd), F32) * 0.02
    p["wt1"], p["bt1"] = dense(n_embd, n_embd)
    p["wt2"], p["bt2"] = dense(n_embd, n_embd)
    p["enc_layers"] = [dict(attn=self_attn(), mlp=mlp())
                       for _ in range(n_layer_enc)]
    p["dec_layers"] = [dict(attn=self_attn(), xattn=cross_attn(), mlp=mlp())
                       for _ in range(n_layer_dec)]
    p["w_out"], p["b_out"] = dense(n_embd, 2 * n_feat)   # fused trend/season head
    return p


def cosine_beta_schedule(timesteps, s=0.008):
    steps = timesteps + 1
    x = jnp.linspace(0.0, timesteps, steps)
    ac = jnp.cos(((x / timesteps) + s) / (1 + s) * jnp.pi * 0.5) ** 2
    ac = ac / ac[0]
    betas = 1.0 - (ac[1:] / ac[:-1])
    return jnp.clip(betas, 0.0, 0.999).astype(F32)


def make_schedule_buffers(timesteps, beta_sch, seq_length):
    if beta_sch == "cosine":
        betas = cosine_beta_schedule(timesteps)
    else:
        scale = 1000.0 / timesteps
        betas = jnp.linspace(scale * 1e-4, scale * 0.02, timesteps, dtype=F32)
    alphas = 1.0 - betas
    alphas_cumprod = jnp.cumprod(alphas)
    alphas_cumprod_prev = jnp.concatenate([jnp.ones((1,), F32), alphas_cumprod[:-1]])
    buf = {
        "betas": betas,
        "alphas": alphas,
        "alphas_cumprod": alphas_cumprod,
        "alphas_cumprod_prev": alphas_cumprod_prev,
        "sqrt_alphas_cumprod": jnp.sqrt(alphas_cumprod),
        "sqrt_one_minus_alphas_cumprod": jnp.sqrt(1.0 - alphas_cumprod),
        "posterior_variance": betas * (1.0 - alphas_cumprod_prev) / (1.0 - alphas_cumprod),
        "posterior_mean_coef1": betas * jnp.sqrt(alphas_cumprod_prev) / (1.0 - alphas_cumprod),
        "posterior_mean_coef2": (1.0 - alphas_cumprod_prev) * jnp.sqrt(alphas) / (1.0 - alphas_cumprod),
        "loss_weight": jnp.sqrt(alphas) * jnp.sqrt(1.0 - alphas_cumprod) / betas / 100.0,
    }
    buf["posterior_log_variance"] = jnp.log(jnp.clip(buf["posterior_variance"], 1e-20, None))
    # hoisted DFT matrices: torch.fft.fft(x.transpose(1,2), norm='forward')
    # == (1/L) * DFT along the sequence axis.
    k = jnp.arange(seq_length, dtype=F32)
    ang = 2.0 * jnp.pi * jnp.outer(k, k) / seq_length
    buf["dft_cos"] = jnp.cos(ang) / seq_length
    buf["dft_sin"] = -jnp.sin(ang) / seq_length
    return {k_: v.astype(F32) for k_, v in buf.items()}


# -----------------------------------------------------------------------------
# Diffusion_TS.forward  (random t, forward diffusion, transformer, weighted loss)
# -----------------------------------------------------------------------------
def diffusion_ts_forward(params, buffers, x_0, key, *, timesteps, n_heads,
                         ff_weight, use_ff):
    B, L, Fd = x_0.shape
    E = params["win"].shape[1]
    k_t, k_noise = jax.random.split(key)
    # torch.randint / torch.randn_like -> jax.random (deterministic here)
    t = jax.random.randint(k_t, (B,), 0, timesteps)
    noise = jax.random.normal(k_noise, x_0.shape, dtype=F32)

    c1 = buffers["sqrt_alphas_cumprod"][t].reshape(B, 1, 1)
    c2 = buffers["sqrt_one_minus_alphas_cumprod"][t].reshape(B, 1, 1)
    semb = sinusoidal_embedding(t, E)

    emb = embed_fused(x_0, noise, c1, c2, semb, params)   # q-sample + embedding
    d = transformer_forward(params, emb, n_heads=n_heads)

    lw = buffers["loss_weight"][t]
    w = lw.reshape(B, 1, 1)
    w_lane = jnp.repeat(lw, Fd).reshape(1, B * Fd)        # matches lane-concat order
    return diffusion_loss(d, params["w_out"], params["b_out"], x_0, w, w_lane,
                          buffers["dft_cos"], buffers["dft_sin"],
                          ff_weight=ff_weight, use_ff=use_ff)


# -----------------------------------------------------------------------------
if __name__ == "__main__":
    seq_length = 16
    n_feat = 4
    n_embd = 32
    timesteps = 100
    loss_type = "l1"          # only l1 is valid (F.l2_loss does not exist in torch)
    beta_sch = "cosine"
    n_heads = 4
    mlp_hidden_times = 2
    n_layer_enc = 1
    n_layer_dec = 1
    use_ff = True
    batch = 2
    ff_weight = math.sqrt(seq_length) / 5.0

    buffers = make_schedule_buffers(timesteps, beta_sch, seq_length)
    params = init_params(
        jax.random.PRNGKey(42),
        n_feat=n_feat, n_embd=n_embd, mlp_hidden_times=mlp_hidden_times,
        n_layer_enc=n_layer_enc, n_layer_dec=n_layer_dec, seq_len=seq_length,
    )

    key = jax.random.PRNGKey(0)
    k_x, k_fwd = jax.random.split(key)
    x_0 = jax.random.normal(k_x, (batch, seq_length, n_feat), dtype=F32)

    fwd = jax.jit(functools.partial(
        diffusion_ts_forward, timesteps=timesteps, n_heads=n_heads,
        ff_weight=ff_weight, use_ff=use_ff))
    loss = fwd(params, buffers, x_0, k_fwd)
    loss = jax.block_until_ready(loss)
    assert jnp.isfinite(loss), "loss is not finite"
    print("KERNEL_OK")
</pallas_src>

<mosaic_0001>
module attributes {stable_mosaic.version = 11 : i64} {
  func.func @_embed_kernel(%arg0: memref<2x16x4xf32, #tpu.memory_space<vmem>>, %arg1: memref<2x16x4xf32, #tpu.memory_space<vmem>>, %arg2: memref<2x1x1xf32, #tpu.memory_space<vmem>>, %arg3: memref<2x1x1xf32, #tpu.memory_space<vmem>>, %arg4: memref<2x32xf32, #tpu.memory_space<vmem>>, %arg5: memref<32x32xf32, #tpu.memory_space<vmem>>, %arg6: memref<1x32xf32, #tpu.memory_space<vmem>>, %arg7: memref<32x32xf32, #tpu.memory_space<vmem>>, %arg8: memref<1x32xf32, #tpu.memory_space<vmem>>, %arg9: memref<4x32xf32, #tpu.memory_space<vmem>>, %arg10: memref<1x32xf32, #tpu.memory_space<vmem>>, %arg11: memref<16x32xf32, #tpu.memory_space<vmem>>, %arg12: memref<2x16x32xf32, #tpu.memory_space<vmem>>) attributes {dimension_semantics = [], scalar_prefetch = 0 : i64, scratch_operands = 0 : i64, tpu.core_type = #tpu.core_type<tc>} {
    %c0 = arith.constant 0 : index
    %c0_0 = arith.constant 0 : index
    %0 = vector.load %arg4[%c0, %c0_0] : memref<2x32xf32, #tpu.memory_space<vmem>>, vector<2x32xf32>
    %c0_1 = arith.constant 0 : index
    %c0_2 = arith.constant 0 : index
    %1 = vector.load %arg5[%c0_1, %c0_2] : memref<32x32xf32, #tpu.memory_space<vmem>>, vector<32x32xf32>
    %c0_3 = arith.constant 0 : index
    %c0_4 = arith.constant 0 : index
    %2 = vector.load %arg6[%c0_3, %c0_4] : memref<1x32xf32, #tpu.memory_space<vmem>>, vector<1x32xf32>
    %3 = arith.truncf %0 : vector<2x32xf32> to vector<2x32xbf16>
    %4 = arith.truncf %1 : vector<32x32xf32> to vector<32x32xbf16>
    %cst = arith.constant dense<0.000000e+00> : vector<2x32xf32>
    %5 = tpu.matmul %3, %4, %cst {dimension_numbers = #tpu.dot_dimension_numbers<[1], [0], [0], [1], [0, 0, 1, 1], [], []>} : vector<2x32xbf16>, vector<32x32xbf16>, vector<2x32xf32> -> vector<2x32xf32>
    %6 = vector.broadcast %2 : vector<1x32xf32> to vector<2x32xf32>
    %7 = arith.addf %5, %6 : vector<2x32xf32>
    %8 = arith.negf %7 : vector<2x32xf32>
    %9 = math.exp %8 : vector<2x32xf32>
    %cst_5 = arith.constant 1.000000e+00 : f32
    %10 = vector.broadcast %cst_5 : f32 to vector<2x32xf32>
    %11 = arith.addf %10, %9 : vector<2x32xf32>
    %12 = arith.divf %10, %11 : vector<2x32xf32>
    %13 = arith.mulf %7, %12 : vector<2x32xf32>
    %c0_6 = arith.constant 0 : index
    %c0_7 = arith.constant 0 : index
    %14 = vector.load %arg7[%c0_6, %c0_7] : memref<32x32xf32, #tpu.memory_space<vmem>>, vector<32x32xf32>
    %c0_8 = arith.constant 0 : index
    %c0_9 = arith.constant 0 : index
    %15 = vector.load %arg8[%c0_8, %c0_9] : memref<1x32xf32, #tpu.memory_space<vmem>>, vector<1x32xf32>
    %16 = arith.truncf %13 : vector<2x32xf32> to vector<2x32xbf16>
    %17 = arith.truncf %14 : vector<32x32xf32> to vector<32x32xbf16>
    %cst_10 = arith.constant dense<0.000000e+00> : vector<2x32xf32>
    %18 = tpu.matmul %16, %17, %cst_10 {dimension_numbers = #tpu.dot_dimension_numbers<[1], [0], [0], [1], [0, 0, 1, 1], [], []>} : vector<2x32xbf16>, vector<32x32xbf16>, vector<2x32xf32> -> vector<2x32xf32>
    %19 = vector.broadcast %15 : vector<1x32xf32> to vector<2x32xf32>
    %20 = arith.addf %18, %19 : vector<2x32xf32>
    %c0_11 = arith.constant 0 : index
    %c0_12 = arith.constant 0 : index
    %c0_13 = arith.constant 0 : index
    %21 = vector.load %arg2[%c0_11, %c0_12, %c0_13] : memref<2x1x1xf32, #tpu.memory_space<vmem>>, vector<2x1x1xf32>
    %c0_14 = arith.constant 0 : index
    %c0_15 = arith.constant 0 : index
    %c0_16 = arith.constant 0 : index
    %22 = vector.load %arg0[%c0_14, %c0_15, %c0_16] : memref<2x16x4xf32, #tpu.memory_space<vmem>>, vector<2x16x4xf32>
    %23 = vector.broadcast %21 : vector<2x1x1xf32> to vector<2x16x4xf32>
    %24 = arith.mulf %23, %22 : vector<2x16x4xf32>
    %c0_17 = arith.constant 0 : index
    %c0_18 = arith.constant 0 : index
    %c0_19 = arith.constant 0 : index
    %25 = vector.load %arg3[%c0_17, %c0_18, %c0_19] : memref<2x1x1xf32, #tpu.memory_space<vmem>>, vector<2x1x1xf32>
    %c0_20 = arith.constant 0 : index
    %c0_21 = arith.constant 0 : index
    %c0_22 = arith.constant 0 : index
    %26 = vector.load %arg1[%c0_20, %c0_21, %c0_22] : memref<2x16x4xf32, #tpu.memory_space<vmem>>, vector<2x16x4xf32>
    %27 = vector.broadcast %25 : vector<2x1x1xf32> to vector<2x16x4xf32>
    %28 = arith.mulf %27, %26 : vector<2x16x4xf32>
    %29 = arith.addf %24, %28 : vector<2x16x4xf32>
    %30 = vector.shape_cast %29 : vector<2x16x4xf32> to vector<32x4xf32>
    %c0_23 = arith.constant 0 : index
    %c0_24 = arith.constant 0 : index
    %31 = vector.load %arg9[%c0_23, %c0_24] : memref<4x32xf32, #tpu.memory_space<vmem>>, vector<4x32xf32>
    %c0_25 = arith.constant 0 : index
    %c0_26 = arith.constant 0 : index
    %32 = vector.load %arg10[%c0_25, %c0_26] : memref<1x32xf32, #tpu.memory_space<vmem>>, vector<1x32xf32>
    %33 = arith.truncf %30 : vector<32x4xf32> to vector<32x4xbf16>
    %34 = arith.truncf %31 : vector<4x32xf32> to vector<4x32xbf16>
    %cst_27 = arith.constant dense<0.000000e+00> : vector<32x32xf32>
    %35 = tpu.matmul %33, %34, %cst_27 {dimension_numbers = #tpu.dot_dimension_numbers<[1], [0], [0], [1], [0, 0, 1, 1], [], []>} : vector<32x4xbf16>, vector<4x32xbf16>, vector<32x32xf32> -> vector<32x32xf32>
    %36 = vector.broadcast %32 : vector<1x32xf32> to vector<32x32xf32>
    %37 = arith.addf %35, %36 : vector<32x32xf32>
    %38 = vector.shape_cast %37 : vector<32x32xf32> to vector<2x16x32xf32>
    %c0_28 = arith.constant 0 : index
    %c0_29 = arith.constant 0 : index
    %39 = vector.load %arg11[%c0_28, %c0_29] : memref<16x32xf32, #tpu.memory_space<vmem>>, vector<16x32xf32>
    %40 = vector.shape_cast %39 : vector<16x32xf32> to vector<1x16x32xf32>
    %41 = vector.broadcast %40 : vector<1x16x32xf32> to vector<2x16x32xf32>
    %42 = arith.addf %38, %41 : vector<2x16x32xf32>
    %43 = vector.shape_cast %20 : vector<2x32xf32> to vector<2x1x32xf32>
    %44 = vector.broadcast %43 : vector<2x1x32xf32> to vector<2x16x32xf32>
    %45 = arith.addf %42, %44 : vector<2x16x32xf32>
    %c0_30 = arith.constant 0 : index
    %c0_31 = arith.constant 0 : index
    %c0_32 = arith.constant 0 : index
    %46 = vector.load %arg12[%c0_30, %c0_31, %c0_32] : memref<2x16x32xf32, #tpu.memory_space<vmem>>, vector<2x16x32xf32>
    tpu.vector_store %arg12[%c0_30, %c0_31, %c0_32], %45 {strides = array<i32>} : memref<2x16x32xf32, #tpu.memory_space<vmem>>, vector<2x16x32xf32>,
    return
  }
}

module attributes {stable_mosaic.version = 11 : i64} {
  func.func @_self_attn_kernel(%arg0: i32, %arg1: memref<1x16x32xf32, #tpu.memory_space<vmem>>, %arg2: memref<1x32xf32, #tpu.memory_space<vmem>>, %arg3: memref<1x32xf32, #tpu.memory_space<vmem>>, %arg4: memref<32x96xf32, #tpu.memory_space<vmem>>, %arg5: memref<1x96xf32, #tpu.memory_space<vmem>>, %arg6: memref<32x32xf32, #tpu.memory_space<vmem>>, %arg7: memref<1x32xf32, #tpu.memory_space<vmem>>, %arg8: memref<1x16x32xf32, #tpu.memory_space<vmem>>) attributes {dimension_semantics = [#tpu.dimension_semantics<parallel>], iteration_bounds = array<i64: 2>, scalar_prefetch = 0 : i64, scratch_operands = 0 : i64, tpu.core_type = #tpu.core_type<tc>, window_params = [{transform_indices = @transform_0, window_bounds = array<i64: 1, 16, 32>}, {pipeline_mode = #tpu.pipeline_mode<synchronous>, transform_indices = @transform_1, window_bounds = array<i64: 1, 32>}, {pipeline_mode = #tpu.pipeline_mode<synchronous>, transform_indices = @transform_2, window_bounds = array<i64: 1, 32>}, {pipeline_mode = #tpu.pipeline_mode<synchronous>, transform_indices = @transform_3, window_bounds = array<i64: 32, 96>}, {pipeline_mode = #tpu.pipeline_mode<synchronous>, transform_indices = @transform_4, window_bounds = array<i64: 1, 96>}, {pipeline_mode = #tpu.pipeline_mode<synchronous>, transform_indices = @transform_5, window_bounds = array<i64: 32, 32>}, {pipeline_mode = #tpu.pipeline_mode<synchronous>, transform_indices = @transform_6, window_bounds = array<i64: 1, 32>}, {transform_indices = @transform_7, window_bounds = array<i64: 1, 16, 32>}]} {
    %c0 = arith.constant 0 : index
    %c0_0 = arith.constant 0 : index
    %c0_1 = arith.constant 0 : index
    %0 = vector.load %arg1[%c0, %c0_0, %c0_1] : memref<1x16x32xf32, #tpu.memory_space<vmem>>, vector<1x16x32xf32>
    %1 = vector.shape_cast %0 : vector<1x16x32xf32> to vector<16x32xf32>
    %c0_2 = arith.constant 0 : index
    %c0_3 = arith.constant 0 : index
    %2 = vector.load %arg2[%c0_2, %c0_3] : memref<1x32xf32, #tpu.memory_space<vmem>>, vector<1x32xf32>
    %c0_4 = arith.constant 0 : index
    %c0_5 = arith.constant 0 : index
    %3 = vector.load %arg3[%c0_4, %c0_5] : memref<1x32xf32, #tpu.memory_space<vmem>>, vector<1x32xf32>
    %cst = arith.constant dense<0.000000e+00> : vector<16xf32>
    %4 = vector.multi_reduction <add>, %1, %cst [1] : vector<16x32xf32> to vector<16xf32>
    %5 = vector.shape_cast %4 : vector<16xf32> to vector<16x1xf32>
    %cst_6 = arith.constant 3.200000e+01 : f32
    %6 = vector.broadcast %cst_6 : f32 to vector<16x1xf32>
    %7 = arith.divf %5, %6 : vector<16x1xf32>
    %8 = vector.broadcast %7 : vector<16x1xf32> to vector<16x32xf32>
    %9 = arith.subf %1, %8 : vector<16x32xf32>
    %10 = arith.mulf %9, %9 : vector<16x32xf32>
    %cst_7 = arith.constant dense<0.000000e+00> : vector<16xf32>
    %11 = vector.multi_reduction <add>, %10, %cst_7 [1] : vector<16x32xf32> to vector<16xf32>
    %12 = vector.shape_cast %11 : vector<16xf32> to vector<16x1xf32>
    %cst_8 = arith.constant 3.200000e+01 : f32
    %13 = vector.broadcast %cst_8 : f32 to vector<16x1xf32>
    %14 = arith.divf %12, %13 : vector<16x1xf32>
    %15 = vector.broadcast %7 : vector<16x1xf32> to vector<16x32xf32>
    %16 = arith.subf %1, %15 : vector<16x32xf32>
    %cst_9 = arith.constant 9.99999974E-6 : f32
    %17 = vector.broadcast %cst_9 : f32 to vector<16x1xf32>
    %18 = arith.addf %14, %17 : vector<16x1xf32>
    %19 = math.rsqrt %18 : vector<16x1xf32>
    %20 = vector.broadcast %19 : vector<16x1xf32> to vector<16x32xf32>
    %21 = arith.mulf %16, %20 : vector<16x32xf32>
    %22 = vector.broadcast %2 : vector<1x32xf32> to vector<16x32xf32>
    %23 = arith.mulf %21, %22 : vector<16x32xf32>
    %24 = vector.broadcast %3 : vector<1x32xf32> to vector<16x32xf32>
    %25 = arith.addf %23, %24 : vector<16x32xf32>
    %c0_10 = arith.constant 0 : index
    %c0_11 = arith.constant 0 : index
    %26 = vector.load %arg4[%c0_10, %c0_11] : memref<32x96xf32, #tpu.memory_space<vmem>>, vector<32x96xf32>
    %c0_12 = arith.constant 0 : index
    %c0_13 = arith.constant 0 : index
    %27 = vector.load %arg5[%c0_12, %c0_13] : memref<1x96xf32, #tpu.memory_space<vmem>>, vector<1x96xf32>
    %28 = arith.truncf %25 : vector<16x32xf32> to vector<16x32xbf16>
    %29 = arith.truncf %26 : vector<32x96xf32> to vector<32x96xbf16>
    %cst_14 = arith.constant dense<0.000000e+00> : vector<16x96xf32>
    %30 = tpu.matmul %28, %29, %cst_14 {dimension_numbers = #tpu.dot_dimension_numbers<[1], [0], [0], [1], [0, 0, 1, 1], [], []>} : vector<16x32xbf16>, vector<32x96xbf16>, vector<16x96xf32> -> vector<16x96xf32>
    %31 = vector.broadcast %27 : vector<1x96xf32> to vector<16x96xf32>
    %32 = arith.addf %30, %31 : vector<16x96xf32>
    %33 = vector.extract_strided_slice %32 {offsets = [0, 0], sizes = [16, 32], strides = [1, 1]} : vector<16x96xf32> to vector<16x32xf32>
    %34 = vector.extract_strided_slice %32 {offsets = [0, 32], sizes = [16, 32], strides = [1, 1]} : vector<16x96xf32> to vector<16x32xf32>
    %35 = vector.extract_strided_slice %32 {offsets = [0, 64], sizes = [16, 32], strides = [1, 1]} : vector<16x96xf32> to vector<16x32xf32>
    %36 = vector.extract_strided_slice %33 {offsets = [0, 0], sizes = [16, 8], strides = [1, 1]} : vector<16x32xf32> to vector<16x8xf32>
    %37 = arith.truncf %36 : vector<16x8xf32> to vector<16x8xbf16>
    %38 = vector.extract_strided_slice %34 {offsets = [0, 0], sizes = [16, 8], strides = [1, 1]} : vector<16x32xf32> to vector<16x8xf32>
    %39 = arith.truncf %38 : vector<16x8xf32> to vector<16x8xbf16>
    %40 = vector.extract_strided_slice %35 {offsets = [0, 0], sizes = [16, 8], strides = [1, 1]} : vector<16x32xf32> to vector<16x8xf32>
    %41 = arith.truncf %40 : vector<16x8xf32> to vector<16x8xbf16>
    %cst_15 = arith.constant dense<0.000000e+00> : vector<16x16xf32>
    %42 = tpu.matmul %37, %39, %cst_15 {dimension_numbers = #tpu.dot_dimension_numbers<[1], [1], [0], [0], [0, 0, 1, 0], [], []>} : vector<16x8xbf16>, vector<16x8xbf16>, vector<16x16xf32> -> vector<16x16xf32>
    %cst_16 = arith.constant 0.353553385 : f32
    %43 = vector.broadcast %cst_16 : f32 to vector<16x16xf32>
    %44 = arith.mulf %42, %43 : vector<16x16xf32>
    %cst_17 = arith.constant dense<0xFF800000> : vector<16xf32>
    %45 = vector.multi_reduction <maximumf>, %44, %cst_17 [1] : vector<16x16xf32> to vector<16xf32>
    %46 = vector.shape_cast %45 : vector<16xf32> to vector<16x1xf32>
    %47 = vector.broadcast %46 : vector<16x1xf32> to vector<16x16xf32>
    %48 = arith.subf %44, %47 : vector<16x16xf32>
    %49 = math.exp %48 : vector<16x16xf32>
    %cst_18 = arith.constant dense<0.000000e+00> : vector<16xf32>
    %50 = vector.multi_reduction <add>, %49, %cst_18 [1] : vector<16x16xf32> to vector<16xf32>
    %51 = vector.shape_cast %50 : vector<16xf32> to vector<16x1xf32>
    %52 = tpu.reciprocal %51 {approx = true} : vector<16x1xf32> -> vector<16x1xf32>
    %53 = vector.broadcast %52 : vector<16x1xf32> to vector<16x16xf32>
    %54 = arith.mulf %49, %53 : vector<16x16xf32>
    %55 = arith.truncf %54 : vector<16x16xf32> to vector<16x16xbf16>
    %cst_19 = arith.constant dense<0.000000e+00> : vector<16x8xf32>
    %56 = tpu.matmul %55, %41, %cst_19 {dimension_numbers = #tpu.dot_dimension_numbers<[1], [0], [0], [1], [0, 0, 1, 1], [], []>} : vector<16x16xbf16>, vector<16x8xbf16>, vector<16x8xf32> -> vector<16x8xf32>
    %57 = vector.extract_strided_slice %33 {offsets = [0, 8], sizes = [16, 8], strides = [1, 1]} : vector<16x32xf32> to vector<16x8xf32>
    %58 = arith.truncf %57 : vector<16x8xf32> to vector<16x8xbf16>
    %59 = vector.extract_strided_slice %34 {offsets = [0, 8], sizes = [16, 8], strides = [1, 1]} : vector<16x32xf32> to vector<16x8xf32>
    %60 = arith.truncf %59 : vector<16x8xf32> to vector<16x8xbf16>
    %61 = vector.extract_strided_slice %35 {offsets = [0, 8], sizes = [16, 8], strides = [1, 1]} : vector<16x32xf32> to vector<16x8xf32>
    %62 = arith.truncf %61 : vector<16x8xf32> to vector<16x8xbf16>
    %cst_20 = arith.constant dense<0.000000e+00> : vector<16x16xf32>
    %63 = tpu.matmul %58, %60, %cst_20 {dimension_numbers = #tpu.dot_dimension_numbers<[1], [1], [0], [0], [0, 0, 1, 0], [], []>} : vector<16x8xbf16>, vector<16x8xbf16>, vector<16x16xf32> -> vector<16x16xf32>
    %cst_21 = arith.constant 0.353553385 : f32
    %64 = vector.broadcast %cst_21 : f32 to vector<16x16xf32>
    %65 = arith.mulf %63, %64 : vector<16x16xf32>
    %cst_22 = arith.constant dense<0xFF800000> : vector<16xf32>
    %66 = vector.multi_reduction <maximumf>, %65, %cst_22 [1] : vector<16x16xf32> to vector<16xf32>
    %67 = vector.shape_cast %66 : vector<16xf32> to vector<16x1xf32>
    %68 = vector.broadcast %67 : vector<16x1xf32> to vector<16x16xf32>
    %69 = arith.subf %65, %68 : vector<16x16xf32>
    %70 = math.exp %69 : vector<16x16xf32>
    %cst_23 = arith.constant dense<0.000000e+00> : vector<16xf32>
    %71 = vector.multi_reduction <add>, %70, %cst_23 [1] : vector<16x16xf32> to vector<16xf32>
    %72 = vector.shape_cast %71 : vector<16xf32> to vector<16x1xf32>
    %73 = tpu.reciprocal %72 {approx = true} : vector<16x1xf32> -> vector<16x1xf32>
    %74 = vector.broadcast %73 : vector<16x1xf32> to vector<16x16xf32>
    %75 = arith.mulf %70, %74 : vector<16x16xf32>
    %76 = arith.truncf %75 : vector<16x16xf32> to vector<16x16xbf16>
    %cst_24 = arith.constant dense<0.000000e+00> : vector<16x8xf32>
    %77 = tpu.matmul %76, %62, %cst_24 {dimension_numbers = #tpu.dot_dimension_numbers<[1], [0], [0], [1], [0, 0, 1, 1], [], []>} : vector<16x16xbf16>, vector<16x8xbf16>, vector<16x8xf32> -> vector<16x8xf32>
    %78 = vector.extract_strided_slice %33 {offsets = [0, 16], sizes = [16, 8], strides = [1, 1]} : vector<16x32xf32> to vector<16x8xf32>
    %79 = arith.truncf %78 : vector<16x8xf32> to vector<16x8xbf16>
    %80 = vector.extract_strided_slice %34 {offsets = [0, 16], sizes = [16, 8], strides = [1, 1]} : vector<16x32xf32> to vector<16x8xf32>
    %81 = arith.truncf %80 : vector<16x8xf32> to vector<16x8xbf16>
    %82 = vector.extract_strided_slice %35 {offsets = [0, 16], sizes = [16, 8], strides = [1, 1]} : vector<16x32xf32> to vector<16x8xf32>
    %83 = arith.truncf %82 : vector<16x8xf32> to vector<16x8xbf16>
    %cst_25 = arith.constant dense<0.000000e+00> : vector<16x16xf32>
    %84 = tpu.matmul %79, %81, %cst_25 {dimension_numbers = #tpu.dot_dimension_numbers<[1], [1], [0], [0], [0, 0, 1, 0], [], []>} : vector<16x8xbf16>, vector<16x8xbf16>, vector<16x16xf32> -> vector<16x16xf32>
    %cst_26 = arith.constant 0.353553385 : f32
    %85 = vector.broadcast %cst_26 : f32 to vector<16x16xf32>
    %86 = arith.mulf %84, %85 : vector<16x16xf32>
    %cst_27 = arith.constant dense<0xFF800000> : vector<16xf32>
    %87 = vector.multi_reduction <maximumf>, %86, %cst_27 [1] : vector<16x16xf32> to vector<16xf32>
    %88 = vector.shape_cast %87 : vector<16xf32> to vector<16x1xf32>
    %89 = vector.broadcast %88 : vector<16x1xf32> to vector<16x16xf32>
    %90 = arith.subf %86, %89 : vector<16x16xf32>
    %91 = math.exp %90 : vector<16x16xf32>
    %cst_28 = arith.constant dense<0.000000e+00> : vector<16xf32>
    %92 = vector.multi_reduction <add>, %91, %cst_28 [1] : vector<16x16xf32> to vector<16xf32>
    %93 = vector.shape_cast %92 : vector<16xf32> to vector<16x1xf32>
    %94 = tpu.reciprocal %93 {approx = true} : vector<16x1xf32> -> vector<16x1xf32>
    %95 = vector.broadcast %94 : vector<16x1xf32> to vector<16x16xf32>
    %96 = arith.mulf %91, %95 : vector<16x16xf32>
    %97 = arith.truncf %96 : vector<16x16xf32> to vector<16x16xbf16>
    %cst_29 = arith.constant dense<0.000000e+00> : vector<16x8xf32>
    %98 = tpu.matmul %97, %83, %cst_29 {dimension_numbers = #tpu.dot_dimension_numbers<[1], [0], [0], [1], [0, 0, 1, 1], [], []>} : vector<16x16xbf16>, vector<16x8xbf16>, vector<16x8xf32> -> vector<16x8xf32>
    %99 = vector.extract_strided_slice %33 {offsets = [0, 24], sizes = [16, 8], strides = [1, 1]} : vector<16x32xf32> to vector<16x8xf32>
    %100 = arith.truncf %99 : vector<16x8xf32> to vector<16x8xbf16>
    %101 = vector.extract_strided_slice %34 {offsets = [0, 24], sizes = [16, 8], strides = [1, 1]} : vector<16x32xf32> to vector<16x8xf32>
    %102 = arith.truncf %101 : vector<16x8xf32> to vector<16x8xbf16>
    %103 = vector.extract_strided_slice %35 {offsets = [0, 24], sizes = [16, 8], strides = [1, 1]} : vector<16x32xf32> to vector<16x8xf32>
    %104 = arith.truncf %103 : vector<16x8xf32> to vector<16x8xbf16>
    %cst_30 = arith.constant dense<0.000000e+00> : vector<16x16xf32>
    %105 = tpu.matmul %100, %102, %cst_30 {dimension_numbers = #tpu.dot_dimension_numbers<[1], [1], [0], [0], [0, 0, 1, 0], [], []>} : vector<16x8xbf16>, vector<16x8xbf16>, vector<16x16xf32> -> vector<16x16xf32>
    %cst_31 = arith.constant 0.353553385 : f32
    %106 = vector.broadcast %cst_31 : f32 to vector<16x16xf32>
    %107 = arith.mulf %105, %106 : vector<16x16xf32>
    %cst_32 = arith.constant dense<0xFF800000> : vector<16xf32>
    %108 = vector.multi_reduction <maximumf>, %107, %cst_32 [1] : vector<16x16xf32> to vector<16xf32>
    %109 = vector.shape_cast %108 : vector<16xf32> to vector<16x1xf32>
    %110 = vector.broadcast %109 : vector<16x1xf32> to vector<16x16xf32>
    %111 = arith.subf %107, %110 : vector<16x16xf32>
    %112 = math.exp %111 : vector<16x16xf32>
    %cst_33 = arith.constant dense<0.000000e+00> : vector<16xf32>
    %113 = vector.multi_reduction <add>, %112, %cst_33 [1] : vector<16x16xf32> to vector<16xf32>
    %114 = vector.shape_cast %113 : vector<16xf32> to vector<16x1xf32>
    %115 = tpu.reciprocal %114 {approx = true} : vector<16x1xf32> -> vector<16x1xf32>
    %116 = vector.broadcast %115 : vector<16x1xf32> to vector<16x16xf32>
    %117 = arith.mulf %112, %116 : vector<16x16xf32>
    %118 = arith.truncf %117 : vector<16x16xf32> to vector<16x16xbf16>
    %cst_34 = arith.constant dense<0.000000e+00> : vector<16x8xf32>
    %119 = tpu.matmul %118, %104, %cst_34 {dimension_numbers = #tpu.dot_dimension_numbers<[1], [0], [0], [1], [0, 0, 1, 1], [], []>} : vector<16x16xbf16>, vector<16x8xbf16>, vector<16x8xf32> -> vector<16x8xf32>
    %120 = tpu.concatenate %56, %77, %98, %119 in 1 : vector<16x8xf32>, vector<16x8xf32>, vector<16x8xf32>, vector<16x8xf32> -> vector<16x32xf32>
    %c0_35 = arith.constant 0 : index
    %c0_36 = arith.constant 0 : index
    %121 = vector.load %arg6[%c0_35, %c0_36] : memref<32x32xf32, #tpu.memory_space<vmem>>, vector<32x32xf32>
    %c0_37 = arith.constant 0 : index
    %c0_38 = arith.constant 0 : index
    %122 = vector.load %arg7[%c0_37, %c0_38] : memref<1x32xf32, #tpu.memory_space<vmem>>, vector<1x32xf32>
    %123 = arith.truncf %120 : vector<16x32xf32> to vector<16x32xbf16>
    %124 = arith.truncf %121 : vector<32x32xf32> to vector<32x32xbf16>
    %cst_39 = arith.constant dense<0.000000e+00> : vector<16x32xf32>
    %125 = tpu.matmul %123, %124, %cst_39 {dimension_numbers = #tpu.dot_dimension_numbers<[1], [0], [0], [1], [0, 0, 1, 1], [], []>} : vector<16x32xbf16>, vector<32x32xbf16>, vector<16x32xf32> -> vector<16x32xf32>
    %126 = vector.broadcast %122 : vector<1x32xf32> to vector<16x32xf32>
    %127 = arith.addf %125, %126 : vector<16x32xf32>
    %128 = arith.addf %1, %127 : vector<16x32xf32>
    %c0_40 = arith.constant 0 : index
    %c0_41 = arith.constant 0 : index
    %c0_42 = arith.constant 0 : index
    %129 = vector.load %arg8[%c0_40, %c0_41, %c0_42] : memref<1x16x32xf32, #tpu.memory_space<vmem>>, vector<1x16x32xf32>
    %130 = vector.shape_cast %129 : vector<1x16x32xf32> to vector<16x32xf32>
    %131 = vector.shape_cast %128 : vector<16x32xf32> to vector<1x16x32xf32>
    tpu.vector_store %arg8[%c0_40, %c0_41, %c0_42], %131 {strides = array<i32>} : memref<1x16x32xf32, #tpu.memory_space<vmem>>, vector<1x16x32xf32>,
    return
  }
  func.func @transform_0(%arg0: i32) -> (i32, i32, i32) {
    %c0_i32 = arith.constant 0 : i32
    %c0_i32_0 = arith.constant 0 : i32
    %c0_i32_1 = arith.constant 0 : i32
    return %arg0, %c0_i32, %c0_i32_0 : i32, i32, i32
  }
  func.func @transform_1(%arg0: i32) -> (i32, i32) {
    %c0_i32 = arith.constant 0 : i32
    %c0_i32_0 = arith.constant 0 : i32
    %c0_i32_1 = arith.constant 0 : i32
    return %c0_i32, %c0_i32_0 : i32, i32
  }
  func.func @transform_2(%arg0: i32) -> (i32, i32) {
    %c0_i32 = arith.constant 0 : i32
    %c0_i32_0 = arith.constant 0 : i32
    %c0_i32_1 = arith.constant 0 : i32
    return %c0_i32, %c0_i32_0 : i32, i32
  }
  func.func @transform_3(%arg0: i32) -> (i32, i32) {
    %c0_i32 = arith.constant 0 : i32
    %c0_i32_0 = arith.constant 0 : i32
    %c0_i32_1 = arith.constant 0 : i32
    return %c0_i32, %c0_i32_0 : i32, i32
  }
  func.func @transform_4(%arg0: i32) -> (i32, i32) {
    %c0_i32 = arith.constant 0 : i32
    %c0_i32_0 = arith.constant 0 : i32
    %c0_i32_1 = arith.constant 0 : i32
    return %c0_i32, %c0_i32_0 : i32, i32
  }
  func.func @transform_5(%arg0: i32) -> (i32, i32) {
    %c0_i32 = arith.constant 0 : i32
    %c0_i32_0 = arith.constant 0 : i32
    %c0_i32_1 = arith.constant 0 : i32
    return %c0_i32, %c0_i32_0 : i32, i32
  }
  func.func @transform_6(%arg0: i32) -> (i32, i32) {
    %c0_i32 = arith.constant 0 : i32
    %c0_i32_0 = arith.constant 0 : i32
    %c0_i32_1 = arith.constant 0 : i32
    return %c0_i32, %c0_i32_0 : i32, i32
  }
  func.func @transform_7(%arg0: i32) -> (i32, i32, i32) {
    %c0_i32 = arith.constant 0 : i32
    %c0_i32_0 = arith.constant 0 : i32
    %c0_i32_1 = arith.constant 0 : i32
    return %arg0, %c0_i32, %c0_i32_0 : i32, i32, i32
  }
}

module attributes {stable_mosaic.version = 11 : i64} {
  func.func @_mlp_kernel(%arg0: i32, %arg1: memref<1x16x32xf32, #tpu.memory_space<vmem>>, %arg2: memref<1x32xf32, #tpu.memory_space<vmem>>, %arg3: memref<1x32xf32, #tpu.memory_space<vmem>>, %arg4: memref<32x64xf32, #tpu.memory_space<vmem>>, %arg5: memref<1x64xf32, #tpu.memory_space<vmem>>, %arg6: memref<64x32xf32, #tpu.memory_space<vmem>>, %arg7: memref<1x32xf32, #tpu.memory_space<vmem>>, %arg8: memref<1x16x32xf32, #tpu.memory_space<vmem>>) attributes {dimension_semantics = [#tpu.dimension_semantics<parallel>], iteration_bounds = array<i64: 2>, scalar_prefetch = 0 : i64, scratch_operands = 0 : i64, tpu.core_type = #tpu.core_type<tc>, window_params = [{transform_indices = @transform_0, window_bounds = array<i64: 1, 16, 32>}, {pipeline_mode = #tpu.pipeline_mode<synchronous>, transform_indices = @transform_1, window_bounds = array<i64: 1, 32>}, {pipeline_mode = #tpu.pipeline_mode<synchronous>, transform_indices = @transform_2, window_bounds = array<i64: 1, 32>}, {pipeline_mode = #tpu.pipeline_mode<synchronous>, transform_indices = @transform_3, window_bounds = array<i64: 32, 64>}, {pipeline_mode = #tpu.pipeline_mode<synchronous>, transform_indices = @transform_4, window_bounds = array<i64: 1, 64>}, {pipeline_mode = #tpu.pipeline_mode<synchronous>, transform_indices = @transform_5, window_bounds = array<i64: 64, 32>}, {pipeline_mode = #tpu.pipeline_mode<synchronous>, transform_indices = @transform_6, window_bounds = array<i64: 1, 32>}, {transform_indices = @transform_7, window_bounds = array<i64: 1, 16, 32>}]} {
    %c0 = arith.constant 0 : index
    %c0_0 = arith.constant 0 : index
    %c0_1 = arith.constant 0 : index
    %0 = vector.load %arg1[%c0, %c0_0, %c0_1] : memref<1x16x32xf32, #tpu.memory_space<vmem>>, vector<1x16x32xf32>
    %1 = vector.shape_cast %0 : vector<1x16x32xf32> to vector<16x32xf32>
    %c0_2 = arith.constant 0 : index
    %c0_3 = arith.constant 0 : index
    %2 = vector.load %arg2[%c0_2, %c0_3] : memref<1x32xf32, #tpu.memory_space<vmem>>, vector<1x32xf32>
    %c0_4 = arith.constant 0 : index
    %c0_5 = arith.constant 0 : index
    %3 = vector.load %arg3[%c0_4, %c0_5] : memref<1x32xf32, #tpu.memory_space<vmem>>, vector<1x32xf32>
    %cst = arith.constant dense<0.000000e+00> : vector<16xf32>
    %4 = vector.multi_reduction <add>, %1, %cst [1] : vector<16x32xf32> to vector<16xf32>
    %5 = vector.shape_cast %4 : vector<16xf32> to vector<16x1xf32>
    %cst_6 = arith.constant 3.200000e+01 : f32
    %6 = vector.broadcast %cst_6 : f32 to vector<16x1xf32>
    %7 = arith.divf %5, %6 : vector<16x1xf32>
    %8 = vector.broadcast %7 : vector<16x1xf32> to vector<16x32xf32>
    %9 = arith.subf %1, %8 : vector<16x32xf32>
    %10 = arith.mulf %9, %9 : vector<16x32xf32>
    %cst_7 = arith.constant dense<0.000000e+00> : vector<16xf32>
    %11 = vector.multi_reduction <add>, %10, %cst_7 [1] : vector<16x32xf32> to vector<16xf32>
    %12 = vector.shape_cast %11 : vector<16xf32> to vector<16x1xf32>
    %cst_8 = arith.constant 3.200000e+01 : f32
    %13 = vector.broadcast %cst_8 : f32 to vector<16x1xf32>
    %14 = arith.divf %12, %13 : vector<16x1xf32>
    %15 = vector.broadcast %7 : vector<16x1xf32> to vector<16x32xf32>
    %16 = arith.subf %1, %15 : vector<16x32xf32>
    %cst_9 = arith.constant 9.99999974E-6 : f32
    %17 = vector.broadcast %cst_9 : f32 to vector<16x1xf32>
    %18 = arith.addf %14, %17 : vector<16x1xf32>
    %19 = math.rsqrt %18 : vector<16x1xf32>
    %20 = vector.broadcast %19 : vector<16x1xf32> to vector<16x32xf32>
    %21 = arith.mulf %16, %20 : vector<16x32xf32>
    %22 = vector.broadcast %2 : vector<1x32xf32> to vector<16x32xf32>
    %23 = arith.mulf %21, %22 : vector<16x32xf32>
    %24 = vector.broadcast %3 : vector<1x32xf32> to vector<16x32xf32>
    %25 = arith.addf %23, %24 : vector<16x32xf32>
    %c0_10 = arith.constant 0 : index
    %c0_11 = arith.constant 0 : index
    %26 = vector.load %arg4[%c0_10, %c0_11] : memref<32x64xf32, #tpu.memory_space<vmem>>, vector<32x64xf32>
    %c0_12 = arith.constant 0 : index
    %c0_13 = arith.constant 0 : index
    %27 = vector.load %arg5[%c0_12, %c0_13] : memref<1x64xf32, #tpu.memory_space<vmem>>, vector<1x64xf32>
    %28 = arith.truncf %25 : vector<16x32xf32> to vector<16x32xbf16>
    %29 = arith.truncf %26 : vector<32x64xf32> to vector<32x64xbf16>
    %cst_14 = arith.constant dense<0.000000e+00> : vector<16x64xf32>
    %30 = tpu.matmul %28, %29, %cst_14 {dimension_numbers = #tpu.dot_dimension_numbers<[1], [0], [0], [1], [0, 0, 1, 1], [], []>} : vector<16x32xbf16>, vector<32x64xbf16>, vector<16x64xf32> -> vector<16x64xf32>
    %31 = vector.broadcast %27 : vector<1x64xf32> to vector<16x64xf32>
    %32 = arith.addf %30, %31 : vector<16x64xf32>
    %33 = arith.mulf %32, %32 : vector<16x64xf32>
    %34 = arith.mulf %32, %33 : vector<16x64xf32>
    %cst_15 = arith.constant 4.471500e-02 : f32
    %35 = vector.broadcast %cst_15 : f32 to vector<16x64xf32>
    %36 = arith.mulf %35, %34 : vector<16x64xf32>
    %37 = arith.addf %32, %36 : vector<16x64xf32>
    %cst_16 = arith.constant 0.797884583 : f32
    %38 = vector.broadcast %cst_16 : f32 to vector<16x64xf32>
    %39 = arith.mulf %38, %37 : vector<16x64xf32>
    %40 = math.tanh %39 : vector<16x64xf32>
    %cst_17 = arith.constant 1.000000e+00 : f32
    %41 = vector.broadcast %cst_17 : f32 to vector<16x64xf32>
    %42 = arith.addf %41, %40 : vector<16x64xf32>
    %cst_18 = arith.constant 5.000000e-01 : f32
    %43 = vector.broadcast %cst_18 : f32 to vector<16x64xf32>
    %44 = arith.mulf %43, %42 : vector<16x64xf32>
    %45 = arith.mulf %32, %44 : vector<16x64xf32>
    %c0_19 = arith.constant 0 : index
    %c0_20 = arith.constant 0 : index
    %46 = vector.load %arg6[%c0_19, %c0_20] : memref<64x32xf32, #tpu.memory_space<vmem>>, vector<64x32xf32>
    %c0_21 = arith.constant 0 : index
    %c0_22 = arith.constant 0 : index
    %47 = vector.load %arg7[%c0_21, %c0_22] : memref<1x32xf32, #tpu.memory_space<vmem>>, vector<1x32xf32>
    %48 = arith.truncf %45 : vector<16x64xf32> to vector<16x64xbf16>
    %49 = arith.truncf %46 : vector<64x32xf32> to vector<64x32xbf16>
    %cst_23 = arith.constant dense<0.000000e+00> : vector<16x32xf32>
    %50 = tpu.matmul %48, %49, %cst_23 {dimension_numbers = #tpu.dot_dimension_numbers<[1], [0], [0], [1], [0, 0, 1, 1], [], []>} : vector<16x64xbf16>, vector<64x32xbf16>, vector<16x32xf32> -> vector<16x32xf32>
    %51 = vector.broadcast %47 : vector<1x32xf32> to vector<16x32xf32>
    %52 = arith.addf %50, %51 : vector<16x32xf32>
    %53 = arith.addf %1, %52 : vector<16x32xf32>
    %c0_24 = arith.constant 0 : index
    %c0_25 = arith.constant 0 : index
    %c0_26 = arith.constant 0 : index
    %54 = vector.load %arg8[%c0_24, %c0_25, %c0_26] : memref<1x16x32xf32, #tpu.memory_space<vmem>>, vector<1x16x32xf32>
    %55 = vector.shape_cast %54 : vector<1x16x32xf32> to vector<16x32xf32>
    %56 = vector.shape_cast %53 : vector<16x32xf32> to vector<1x16x32xf32>
    tpu.vector_store %arg8[%c0_24, %c0_25, %c0_26], %56 {strides = array<i32>} : memref<1x16x32xf32, #tpu.memory_space<vmem>>, vector<1x16x32xf32>,
    return
  }
  func.func @transform_0(%arg0: i32) -> (i32, i32, i32) {
    %c0_i32 = arith.constant 0 : i32
    %c0_i32_0 = arith.constant 0 : i32
    %c0_i32_1 = arith.constant 0 : i32
    return %arg0, %c0_i32, %c0_i32_0 : i32, i32, i32
  }
  func.func @transform_1(%arg0: i32) -> (i32, i32) {
    %c0_i32 = arith.constant 0 : i32
    %c0_i32_0 = arith.constant 0 : i32
    %c0_i32_1 = arith.constant 0 : i32
    return %c0_i32, %c0_i32_0 : i32, i32
  }
  func.func @transform_2(%arg0: i32) -> (i32, i32) {
    %c0_i32 = arith.constant 0 : i32
    %c0_i32_0 = arith.constant 0 : i32
    %c0_i32_1 = arith.constant 0 : i32
    return %c0_i32, %c0_i32_0 : i32, i32
  }
  func.func @transform_3(%arg0: i32) -> (i32, i32) {
    %c0_i32 = arith.constant 0 : i32
    %c0_i32_0 = arith.constant 0 : i32
    %c0_i32_1 = arith.constant 0 : i32
    return %c0_i32, %c0_i32_0 : i32, i32
  }
  func.func @transform_4(%arg0: i32) -> (i32, i32) {
    %c0_i32 = arith.constant 0 : i32
    %c0_i32_0 = arith.constant 0 : i32
    %c0_i32_1 = arith.constant 0 : i32
    return %c0_i32, %c0_i32_0 : i32, i32
  }
  func.func @transform_5(%arg0: i32) -> (i32, i32) {
    %c0_i32 = arith.constant 0 : i32
    %c0_i32_0 = arith.constant 0 : i32
    %c0_i32_1 = arith.constant 0 : i32
    return %c0_i32, %c0_i32_0 : i32, i32
  }
  func.func @transform_6(%arg0: i32) -> (i32, i32) {
    %c0_i32 = arith.constant 0 : i32
    %c0_i32_0 = arith.constant 0 : i32
    %c0_i32_1 = arith.constant 0 : i32
    return %c0_i32, %c0_i32_0 : i32, i32
  }
  func.func @transform_7(%arg0: i32) -> (i32, i32, i32) {
    %c0_i32 = arith.constant 0 : i32
    %c0_i32_0 = arith.constant 0 : i32
    %c0_i32_1 = arith.constant 0 : i32
    return %arg0, %c0_i32, %c0_i32_0 : i32, i32, i32
  }
}

module attributes {stable_mosaic.version = 11 : i64} {
  func.func @_cross_attn_kernel(%arg0: i32, %arg1: memref<1x16x32xf32, #tpu.memory_space<vmem>>, %arg2: memref<1x16x32xf32, #tpu.memory_space<vmem>>, %arg3: memref<1x32xf32, #tpu.memory_space<vmem>>, %arg4: memref<1x32xf32, #tpu.memory_space<vmem>>, %arg5: memref<32x32xf32, #tpu.memory_space<vmem>>, %arg6: memref<1x32xf32, #tpu.memory_space<vmem>>, %arg7: memref<32x64xf32, #tpu.memory_space<vmem>>, %arg8: memref<1x64xf32, #tpu.memory_space<vmem>>, %arg9: memref<32x32xf32, #tpu.memory_space<vmem>>, %arg10: memref<1x32xf32, #tpu.memory_space<vmem>>, %arg11: memref<1x16x32xf32, #tpu.memory_space<vmem>>) attributes {dimension_semantics = [#tpu.dimension_semantics<parallel>], iteration_bounds = array<i64: 2>, scalar_prefetch = 0 : i64, scratch_operands = 0 : i64, tpu.core_type = #tpu.core_type<tc>, window_params = [{transform_indices = @transform_0, window_bounds = array<i64: 1, 16, 32>}, {transform_indices = @transform_1, window_bounds = array<i64: 1, 16, 32>}, {pipeline_mode = #tpu.pipeline_mode<synchronous>, transform_indices = @transform_2, window_bounds = array<i64: 1, 32>}, {pipeline_mode = #tpu.pipeline_mode<synchronous>, transform_indices = @transform_3, window_bounds = array<i64: 1, 32>}, {pipeline_mode = #tpu.pipeline_mode<synchronous>, transform_indices = @transform_4, window_bounds = array<i64: 32, 32>}, {pipeline_mode = #tpu.pipeline_mode<synchronous>, transform_indices = @transform_5, window_bounds = array<i64: 1, 32>}, {pipeline_mode = #tpu.pipeline_mode<synchronous>, transform_indices = @transform_6, window_bounds = array<i64: 32, 64>}, {pipeline_mode = #tpu.pipeline_mode<synchronous>, transform_indices = @transform_7, window_bounds = array<i64: 1, 64>}, {pipeline_mode = #tpu.pipeline_mode<synchronous>, transform_indices = @transform_8, window_bounds = array<i64: 32, 32>}, {pipeline_mode = #tpu.pipeline_mode<synchronous>, transform_indices = @transform_9, window_bounds = array<i64: 1, 32>}, {transform_indices = @transform_10, window_bounds = array<i64: 1, 16, 32>}]} {
    %c0 = arith.constant 0 : index
    %c0_0 = arith.constant 0 : index
    %c0_1 = arith.constant 0 : index
    %0 = vector.load %arg1[%c0, %c0_0, %c0_1] : memref<1x16x32xf32, #tpu.memory_space<vmem>>, vector<1x16x32xf32>
    %1 = vector.shape_cast %0 : vector<1x16x32xf32> to vector<16x32xf32>
    %c0_2 = arith.constant 0 : index
    %c0_3 = arith.constant 0 : index
    %c0_4 = arith.constant 0 : index
    %2 = vector.load %arg2[%c0_2, %c0_3, %c0_4] : memref<1x16x32xf32, #tpu.memory_space<vmem>>, vector<1x16x32xf32>
    %3 = vector.shape_cast %2 : vector<1x16x32xf32> to vector<16x32xf32>
    %c0_5 = arith.constant 0 : index
    %c0_6 = arith.constant 0 : index
    %4 = vector.load %arg3[%c0_5, %c0_6] : memref<1x32xf32, #tpu.memory_space<vmem>>, vector<1x32xf32>
    %c0_7 = arith.constant 0 : index
    %c0_8 = arith.constant 0 : index
    %5 = vector.load %arg4[%c0_7, %c0_8] : memref<1x32xf32, #tpu.memory_space<vmem>>, vector<1x32xf32>
    %cst = arith.constant dense<0.000000e+00> : vector<16xf32>
    %6 = vector.multi_reduction <add>, %1, %cst [1] : vector<16x32xf32> to vector<16xf32>
    %7 = vector.shape_cast %6 : vector<16xf32> to vector<16x1xf32>
    %cst_9 = arith.constant 3.200000e+01 : f32
    %8 = vector.broadcast %cst_9 : f32 to vector<16x1xf32>
    %9 = arith.divf %7, %8 : vector<16x1xf32>
    %10 = vector.broadcast %9 : vector<16x1xf32> to vector<16x32xf32>
    %11 = arith.subf %1, %10 : vector<16x32xf32>
    %12 = arith.mulf %11, %11 : vector<16x32xf32>
    %cst_10 = arith.constant dense<0.000000e+00> : vector<16xf32>
    %13 = vector.multi_reduction <add>, %12, %cst_10 [1] : vector<16x32xf32> to vector<16xf32>
    %14 = vector.shape_cast %13 : vector<16xf32> to vector<16x1xf32>
    %cst_11 = arith.constant 3.200000e+01 : f32
    %15 = vector.broadcast %cst_11 : f32 to vector<16x1xf32>
    %16 = arith.divf %14, %15 : vector<16x1xf32>
    %17 = vector.broadcast %9 : vector<16x1xf32> to vector<16x32xf32>
    %18 = arith.subf %1, %17 : vector<16x32xf32>
    %cst_12 = arith.constant 9.99999974E-6 : f32
    %19 = vector.broadcast %cst_12 : f32 to vector<16x1xf32>
    %20 = arith.addf %16, %19 : vector<16x1xf32>
    %21 = math.rsqrt %20 : vector<16x1xf32>
    %22 = vector.broadcast %21 : vector<16x1xf32> to vector<16x32xf32>
    %23 = arith.mulf %18, %22 : vector<16x32xf32>
    %24 = vector.broadcast %4 : vector<1x32xf32> to vector<16x32xf32>
    %25 = arith.mulf %23, %24 : vector<16x32xf32>
    %26 = vector.broadcast %5 : vector<1x32xf32> to vector<16x32xf32>
    %27 = arith.addf %25, %26 : vector<16x32xf32>
    %c0_13 = arith.constant 0 : index
    %c0_14 = arith.constant 0 : index
    %28 = vector.load %arg5[%c0_13, %c0_14] : memref<32x32xf32, #tpu.memory_space<vmem>>, vector<32x32xf32>
    %c0_15 = arith.constant 0 : index
    %c0_16 = arith.constant 0 : index
    %29 = vector.load %arg6[%c0_15, %c0_16] : memref<1x32xf32, #tpu.memory_space<vmem>>, vector<1x32xf32>
    %30 = arith.truncf %27 : vector<16x32xf32> to vector<16x32xbf16>
    %31 = arith.truncf %28 : vector<32x32xf32> to vector<32x32xbf16>
    %cst_17 = arith.constant dense<0.000000e+00> : vector<16x32xf32>
    %32 = tpu.matmul %30, %31, %cst_17 {dimension_numbers = #tpu.dot_dimension_numbers<[1], [0], [0], [1], [0, 0, 1, 1], [], []>} : vector<16x32xbf16>, vector<32x32xbf16>, vector<16x32xf32> -> vector<16x32xf32>
    %33 = vector.broadcast %29 : vector<1x32xf32> to vector<16x32xf32>
    %34 = arith.addf %32, %33 : vector<16x32xf32>
    %c0_18 = arith.constant 0 : index
    %c0_19 = arith.constant 0 : index
    %35 = vector.load %arg7[%c0_18, %c0_19] : memref<32x64xf32, #tpu.memory_space<vmem>>, vector<32x64xf32>
    %c0_20 = arith.constant 0 : index
    %c0_21 = arith.constant 0 : index
    %36 = vector.load %arg8[%c0_20, %c0_21] : memref<1x64xf32, #tpu.memory_space<vmem>>, vector<1x64xf32>
    %37 = arith.truncf %3 : vector<16x32xf32> to vector<16x32xbf16>
    %38 = arith.truncf %35 : vector<32x64xf32> to vector<32x64xbf16>
    %cst_22 = arith.constant dense<0.000000e+00> : vector<16x64xf32>
    %39 = tpu.matmul %37, %38, %cst_22 {dimension_numbers = #tpu.dot_dimension_numbers<[1], [0], [0], [1], [0, 0, 1, 1], [], []>} : vector<16x32xbf16>, vector<32x64xbf16>, vector<16x64xf32> -> vector<16x64xf32>
    %40 = vector.broadcast %36 : vector<1x64xf32> to vector<16x64xf32>
    %41 = arith.addf %39, %40 : vector<16x64xf32>
    %42 = vector.extract_strided_slice %41 {offsets = [0, 0], sizes = [16, 32], strides = [1, 1]} : vector<16x64xf32> to vector<16x32xf32>
    %43 = vector.extract_strided_slice %41 {offsets = [0, 32], sizes = [16, 32], strides = [1, 1]} : vector<16x64xf32> to vector<16x32xf32>
    %44 = vector.extract_strided_slice %34 {offsets = [0, 0], sizes = [16, 8], strides = [1, 1]} : vector<16x32xf32> to vector<16x8xf32>
    %45 = arith.truncf %44 : vector<16x8xf32> to vector<16x8xbf16>
    %46 = vector.extract_strided_slice %42 {offsets = [0, 0], sizes = [16, 8], strides = [1, 1]} : vector<16x32xf32> to vector<16x8xf32>
    %47 = arith.truncf %46 : vector<16x8xf32> to vector<16x8xbf16>
    %48 = vector.extract_strided_slice %43 {offsets = [0, 0], sizes = [16, 8], strides = [1, 1]} : vector<16x32xf32> to vector<16x8xf32>
    %49 = arith.truncf %48 : vector<16x8xf32> to vector<16x8xbf16>
    %cst_23 = arith.constant dense<0.000000e+00> : vector<16x16xf32>
    %50 = tpu.matmul %45, %47, %cst_23 {dimension_numbers = #tpu.dot_dimension_numbers<[1], [1], [0], [0], [0, 0, 1, 0], [], []>} : vector<16x8xbf16>, vector<16x8xbf16>, vector<16x16xf32> -> vector<16x16xf32>
    %cst_24 = arith.constant 0.353553385 : f32
    %51 = vector.broadcast %cst_24 : f32 to vector<16x16xf32>
    %52 = arith.mulf %50, %51 : vector<16x16xf32>
    %cst_25 = arith.constant dense<0xFF800000> : vector<16xf32>
    %53 = vector.multi_reduction <maximumf>, %52, %cst_25 [1] : vector<16x16xf32> to vector<16xf32>
    %54 = vector.shape_cast %53 : vector<16xf32> to vector<16x1xf32>
    %55 = vector.broadcast %54 : vector<16x1xf32> to vector<16x16xf32>
    %56 = arith.subf %52, %55 : vector<16x16xf32>
    %57 = math.exp %56 : vector<16x16xf32>
    %cst_26 = arith.constant dense<0.000000e+00> : vector<16xf32>
    %58 = vector.multi_reduction <add>, %57, %cst_26 [1] : vector<16x16xf32> to vector<16xf32>
    %59 = vector.shape_cast %58 : vector<16xf32> to vector<16x1xf32>
    %60 = tpu.reciprocal %59 {approx = true} : vector<16x1xf32> -> vector<16x1xf32>
    %61 = vector.broadcast %60 : vector<16x1xf32> to vector<16x16xf32>
    %62 = arith.mulf %57, %61 : vector<16x16xf32>
    %63 = arith.truncf %62 : vector<16x16xf32> to vector<16x16xbf16>
    %cst_27 = arith.constant dense<0.000000e+00> : vector<16x8xf32>
    %64 = tpu.matmul %63, %49, %cst_27 {dimension_numbers = #tpu.dot_dimension_numbers<[1], [0], [0], [1], [0, 0, 1, 1], [], []>} : vector<16x16xbf16>, vector<16x8xbf16>, vector<16x8xf32> -> vector<16x8xf32>
    %65 = vector.extract_strided_slice %34 {offsets = [0, 8], sizes = [16, 8], strides = [1, 1]} : vector<16x32xf32> to vector<16x8xf32>
    %66 = arith.truncf %65 : vector<16x8xf32> to vector<16x8xbf16>
    %67 = vector.extract_strided_slice %42 {offsets = [0, 8], sizes = [16, 8], strides = [1, 1]} : vector<16x32xf32> to vector<16x8xf32>
    %68 = arith.truncf %67 : vector<16x8xf32> to vector<16x8xbf16>
    %69 = vector.extract_strided_slice %43 {offsets = [0, 8], sizes = [16, 8], strides = [1, 1]} : vector<16x32xf32> to vector<16x8xf32>
    %70 = arith.truncf %69 : vector<16x8xf32> to vector<16x8xbf16>
    %cst_28 = arith.constant dense<0.000000e+00> : vector<16x16xf32>
    %71 = tpu.matmul %66, %68, %cst_28 {dimension_numbers = #tpu.dot_dimension_numbers<[1], [1], [0], [0], [0, 0, 1, 0], [], []>} : vector<16x8xbf16>, vector<16x8xbf16>, vector<16x16xf32> -> vector<16x16xf32>
    %cst_29 = arith.constant 0.353553385 : f32
    %72 = vector.broadcast %cst_29 : f32 to vector<16x16xf32>
    %73 = arith.mulf %71, %72 : vector<16x16xf32>
    %cst_30 = arith.constant dense<0xFF800000> : vector<16xf32>
    %74 = vector.multi_reduction <maximumf>, %73, %cst_30 [1] : vector<16x16xf32> to vector<16xf32>
    %75 = vector.shape_cast %74 : vector<16xf32> to vector<16x1xf32>
    %76 = vector.broadcast %75 : vector<16x1xf32> to vector<16x16xf32>
    %77 = arith.subf %73, %76 : vector<16x16xf32>
    %78 = math.exp %77 : vector<16x16xf32>
    %cst_31 = arith.constant dense<0.000000e+00> : vector<16xf32>
    %79 = vector.multi_reduction <add>, %78, %cst_31 [1] : vector<16x16xf32> to vector<16xf32>
    %80 = vector.shape_cast %79 : vector<16xf32> to vector<16x1xf32>
    %81 = tpu.reciprocal %80 {approx = true} : vector<16x1xf32> -> vector<16x1xf32>
    %82 = vector.broadcast %81 : vector<16x1xf32> to vector<16x16xf32>
    %83 = arith.mulf %78, %82 : vector<16x16xf32>
    %84 = arith.truncf %83 : vector<16x16xf32> to vector<16x16xbf16>
    %cst_32 = arith.constant dense<0.000000e+00> : vector<16x8xf32>
    %85 = tpu.matmul %84, %70, %cst_32 {dimension_numbers = #tpu.dot_dimension_numbers<[1], [0], [0], [1], [0, 0, 1, 1], [], []>} : vector<16x16xbf16>, vector<16x8xbf16>, vector<16x8xf32> -> vector<16x8xf32>
    %86 = vector.extract_strided_slice %34 {offsets = [0, 16], sizes = [16, 8], strides = [1, 1]} : vector<16x32xf32> to vector<16x8xf32>
    %87 = arith.truncf %86 : vector<16x8xf32> to vector<16x8xbf16>
    %88 = vector.extract_strided_slice %42 {offsets = [0, 16], sizes = [16, 8], strides = [1, 1]} : vector<16x32xf32> to vector<16x8xf32>
    %89 = arith.truncf %88 : vector<16x8xf32> to vector<16x8xbf16>
    %90 = vector.extract_strided_slice %43 {offsets = [0, 16], sizes = [16, 8], strides = [1, 1]} : vector<16x32xf32> to vector<16x8xf32>
    %91 = arith.truncf %90 : vector<16x8xf32> to vector<16x8xbf16>
    %cst_33 = arith.constant dense<0.000000e+00> : vector<16x16xf32>
    %92 = tpu.matmul %87, %89, %cst_33 {dimension_numbers = #tpu.dot_dimension_numbers<[1], [1], [0], [0], [0, 0, 1, 0], [], []>} : vector<16x8xbf16>, vector<16x8xbf16>, vector<16x16xf32> -> vector<16x16xf32>
    %cst_34 = arith.constant 0.353553385 : f32
    %93 = vector.broadcast %cst_34 : f32 to vector<16x16xf32>
    %94 = arith.mulf %92, %93 : vector<16x16xf32>
    %cst_35 = arith.constant dense<0xFF800000> : vector<16xf32>
    %95 = vector.multi_reduction <maximumf>, %94, %cst_35 [1] : vector<16x16xf32> to vector<16xf32>
    %96 = vector.shape_cast %95 : vector<16xf32> to vector<16x1xf32>
    %97 = vector.broadcast %96 : vector<16x1xf32> to vector<16x16xf32>
    %98 = arith.subf %94, %97 : vector<16x16xf32>
    %99 = math.exp %98 : vector<16x16xf32>
    %cst_36 = arith.constant dense<0.000000e+00> : vector<16xf32>
    %100 = vector.multi_reduction <add>, %99, %cst_36 [1] : vector<16x16xf32> to vector<16xf32>
    %101 = vector.shape_cast %100 : vector<16xf32> to vector<16x1xf32>
    %102 = tpu.reciprocal %101 {approx = true} : vector<16x1xf32> -> vector<16x1xf32>
    %103 = vector.broadcast %102 : vector<16x1xf32> to vector<16x16xf32>
    %104 = arith.mulf %99, %103 : vector<16x16xf32>
    %105 = arith.truncf %104 : vector<16x16xf32> to vector<16x16xbf16>
    %cst_37 = arith.constant dense<0.000000e+00> : vector<16x8xf32>
    %106 = tpu.matmul %105, %91, %cst_37 {dimension_numbers = #tpu.dot_dimension_numbers<[1], [0], [0], [1], [0, 0, 1, 1], [], []>} : vector<16x16xbf16>, vector<16x8xbf16>, vector<16x8xf32> -> vector<16x8xf32>
    %107 = vector.extract_strided_slice %34 {offsets = [0, 24], sizes = [16, 8], strides = [1, 1]} : vector<16x32xf32> to vector<16x8xf32>
    %108 = arith.truncf %107 : vector<16x8xf32> to vector<16x8xbf16>
    %109 = vector.extract_strided_slice %42 {offsets = [0, 24], sizes = [16, 8], strides = [1, 1]} : vector<16x32xf32> to vector<16x8xf32>
    %110 = arith.truncf %109 : vector<16x8xf32> to vector<16x8xbf16>
    %111 = vector.extract_strided_slice %43 {offsets = [0, 24], sizes = [16, 8], strides = [1, 1]} : vector<16x32xf32> to vector<16x8xf32>
    %112 = arith.truncf %111 : vector<16x8xf32> to vector<16x8xbf16>
    %cst_38 = arith.constant dense<0.000000e+00> : vector<16x16xf32>
    %113 = tpu.matmul %108, %110, %cst_38 {dimension_numbers = #tpu.dot_dimension_numbers<[1], [1], [0], [0], [0, 0, 1, 0], [], []>} : vector<16x8xbf16>, vector<16x8xbf16>, vector<16x16xf32> -> vector<16x16xf32>
    %cst_39 = arith.constant 0.353553385 : f32
    %114 = vector.broadcast %cst_39 : f32 to vector<16x16xf32>
    %115 = arith.mulf %113, %114 : vector<16x16xf32>
    %cst_40 = arith.constant dense<0xFF800000> : vector<16xf32>
    %116 = vector.multi_reduction <maximumf>, %115, %cst_40 [1] : vector<16x16xf32> to vector<16xf32>
    %117 = vector.shape_cast %116 : vector<16xf32> to vector<16x1xf32>
    %118 = vector.broadcast %117 : vector<16x1xf32> to vector<16x16xf32>
    %119 = arith.subf %115, %118 : vector<16x16xf32>
    %120 = math.exp %119 : vector<16x16xf32>
    %cst_41 = arith.constant dense<0.000000e+00> : vector<16xf32>
    %121 = vector.multi_reduction <add>, %120, %cst_41 [1] : vector<16x16xf32> to vector<16xf32>
    %122 = vector.shape_cast %121 : vector<16xf32> to vector<16x1xf32>
    %123 = tpu.reciprocal %122 {approx = true} : vector<16x1xf32> -> vector<16x1xf32>
    %124 = vector.broadcast %123 : vector<16x1xf32> to vector<16x16xf32>
    %125 = arith.mulf %120, %124 : vector<16x16xf32>
    %126 = arith.truncf %125 : vector<16x16xf32> to vector<16x16xbf16>
    %cst_42 = arith.constant dense<0.000000e+00> : vector<16x8xf32>
    %127 = tpu.matmul %126, %112, %cst_42 {dimension_numbers = #tpu.dot_dimension_numbers<[1], [0], [0], [1], [0, 0, 1, 1], [], []>} : vector<16x16xbf16>, vector<16x8xbf16>, vector<16x8xf32> -> vector<16x8xf32>
    %128 = tpu.concatenate %64, %85, %106, %127 in 1 : vector<16x8xf32>, vector<16x8xf32>, vector<16x8xf32>, vector<16x8xf32> -> vector<16x32xf32>
    %c0_43 = arith.constant 0 : index
    %c0_44 = arith.constant 0 : index
    %129 = vector.load %arg9[%c0_43, %c0_44] : memref<32x32xf32, #tpu.memory_space<vmem>>, vector<32x32xf32>
    %c0_45 = arith.constant 0 : index
    %c0_46 = arith.constant 0 : index
    %130 = vector.load %arg10[%c0_45, %c0_46] : memref<1x32xf32, #tpu.memory_space<vmem>>, vector<1x32xf32>
    %131 = arith.truncf %128 : vector<16x32xf32> to vector<16x32xbf16>
    %132 = arith.truncf %129 : vector<32x32xf32> to vector<32x32xbf16>
    %cst_47 = arith.constant dense<0.000000e+00> : vector<16x32xf32>
    %133 = tpu.matmul %131, %132, %cst_47 {dimension_numbers = #tpu.dot_dimension_numbers<[1], [0], [0], [1], [0, 0, 1, 1], [], []>} : vector<16x32xbf16>, vector<32x32xbf16>, vector<16x32xf32> -> vector<16x32xf32>
    %134 = vector.broadcast %130 : vector<1x32xf32> to vector<16x32xf32>
    %135 = arith.addf %133, %134 : vector<16x32xf32>
    %136 = arith.addf %1, %135 : vector<16x32xf32>
    %c0_48 = arith.constant 0 : index
    %c0_49 = arith.constant 0 : index
    %c0_50 = arith.constant 0 : index
    %137 = vector.load %arg11[%c0_48, %c0_49, %c0_50] : memref<1x16x32xf32, #tpu.memory_space<vmem>>, vector<1x16x32xf32>
    %138 = vector.shape_cast %137 : vector<1x16x32xf32> to vector<16x32xf32>
    %139 = vector.shape_cast %136 : vector<16x32xf32> to vector<1x16x32xf32>
    tpu.vector_store %arg11[%c0_48, %c0_49, %c0_50], %139 {strides = array<i32>} : memref<1x16x32xf32, #tpu.memory_space<vmem>>, vector<1x16x32xf32>,
    return
  }
  func.func @transform_0(%arg0: i32) -> (i32, i32, i32) {
    %c0_i32 = arith.constant 0 : i32
    %c0_i32_0 = arith.constant 0 : i32
    %c0_i32_1 = arith.constant 0 : i32
    return %arg0, %c0_i32, %c0_i32_0 : i32, i32, i32
  }
  func.func @transform_1(%arg0: i32) -> (i32, i32, i32) {
    %c0_i32 = arith.constant 0 : i32
    %c0_i32_0 = arith.constant 0 : i32
    %c0_i32_1 = arith.constant 0 : i32
    return %arg0, %c0_i32, %c0_i32_0 : i32, i32, i32
  }
  func.func @transform_2(%arg0: i32) -> (i32, i32) {
    %c0_i32 = arith.constant 0 : i32
    %c0_i32_0 = arith.constant 0 : i32
    %c0_i32_1 = arith.constant 0 : i32
    return %c0_i32, %c0_i32_0 : i32, i32
  }
  func.func @transform_3(%arg0: i32) -> (i32, i32) {
    %c0_i32 = arith.constant 0 : i32
    %c0_i32_0 = arith.constant 0 : i32
    %c0_i32_1 = arith.constant 0 : i32
    return %c0_i32, %c0_i32_0 : i32, i32
  }
  func.func @transform_4(%arg0: i32) -> (i32, i32) {
    %c0_i32 = arith.constant 0 : i32
    %c0_i32_0 = arith.constant 0 : i32
    %c0_i32_1 = arith.constant 0 : i32
    return %c0_i32, %c0_i32_0 : i32, i32
  }
  func.func @transform_5(%arg0: i32) -> (i32, i32) {
    %c0_i32 = arith.constant 0 : i32
    %c0_i32_0 = arith.constant 0 : i32
    %c0_i32_1 = arith.constant 0 : i32
    return %c0_i32, %c0_i32_0 : i32, i32
  }
  func.func @transform_6(%arg0: i32) -> (i32, i32) {
    %c0_i32 = arith.constant 0 : i32
    %c0_i32_0 = arith.constant 0 : i32
    %c0_i32_1 = arith.constant 0 : i32
    return %c0_i32, %c0_i32_0 : i32, i32
  }
  func.func @transform_7(%arg0: i32) -> (i32, i32) {
    %c0_i32 = arith.constant 0 : i32
    %c0_i32_0 = arith.constant 0 : i32
    %c0_i32_1 = arith.constant 0 : i32
    return %c0_i32, %c0_i32_0 : i32, i32
  }
  func.func @transform_8(%arg0: i32) -> (i32, i32) {
    %c0_i32 = arith.constant 0 : i32
    %c0_i32_0 = arith.constant 0 : i32
    %c0_i32_1 = arith.constant 0 : i32
    return %c0_i32, %c0_i32_0 : i32, i32
  }
  func.func @transform_9(%arg0: i32) -> (i32, i32) {
    %c0_i32 = arith.constant 0 : i32
    %c0_i32_0 = arith.constant 0 : i32
    %c0_i32_1 = arith.constant 0 : i32
    return %c0_i32, %c0_i32_0 : i32, i32
  }
  func.func @transform_10(%arg0: i32) -> (i32, i32, i32) {
    %c0_i32 = arith.constant 0 : i32
    %c0_i32_0 = arith.constant 0 : i32
    %c0_i32_1 = arith.constant 0 : i32
    return %arg0, %c0_i32, %c0_i32_0 : i32, i32, i32
  }
}

module attributes {stable_mosaic.version = 11 : i64} {
  func.func @_loss_kernel(%arg0: memref<2x16x32xf32, #tpu.memory_space<vmem>>, %arg1: memref<32x8xf32, #tpu.memory_space<vmem>>, %arg2: memref<1x8xf32, #tpu.memory_space<vmem>>, %arg3: memref<2x16x4xf32, #tpu.memory_space<vmem>>, %arg4: memref<2x1x1xf32, #tpu.memory_space<vmem>>, %arg5: memref<1x8xf32, #tpu.memory_space<vmem>>, %arg6: memref<16x16xf32, #tpu.memory_space<vmem>>, %arg7: memref<16x16xf32, #tpu.memory_space<vmem>>, %arg8: memref<1x1xf32, #tpu.memory_space<smem>>) attributes {dimension_semantics = [], scalar_prefetch = 0 : i64, scratch_operands = 0 : i64, tpu.core_type = #tpu.core_type<tc>} {
    %c0 = arith.constant 0 : index
    %c0_0 = arith.constant 0 : index
    %c0_1 = arith.constant 0 : index
    %0 = vector.load %arg0[%c0, %c0_0, %c0_1] : memref<2x16x32xf32, #tpu.memory_space<vmem>>, vector<2x16x32xf32>
    %1 = vector.shape_cast %0 : vector<2x16x32xf32> to vector<32x32xf32>
    %c0_2 = arith.constant 0 : index
    %c0_3 = arith.constant 0 : index
    %2 = vector.load %arg1[%c0_2, %c0_3] : memref<32x8xf32, #tpu.memory_space<vmem>>, vector<32x8xf32>
    %c0_4 = arith.constant 0 : index
    %c0_5 = arith.constant 0 : index
    %3 = vector.load %arg2[%c0_4, %c0_5] : memref<1x8xf32, #tpu.memory_space<vmem>>, vector<1x8xf32>
    %4 = arith.truncf %1 : vector<32x32xf32> to vector<32x32xbf16>
    %5 = arith.truncf %2 : vector<32x8xf32> to vector<32x8xbf16>
    %cst = arith.constant dense<0.000000e+00> : vector<32x8xf32>
    %6 = tpu.matmul %4, %5, %cst {dimension_numbers = #tpu.dot_dimension_numbers<[1], [0], [0], [1], [0, 0, 1, 1], [], []>} : vector<32x32xbf16>, vector<32x8xbf16>, vector<32x8xf32> -> vector<32x8xf32>
    %7 = vector.broadcast %3 : vector<1x8xf32> to vector<32x8xf32>
    %8 = arith.addf %6, %7 : vector<32x8xf32>
    %9 = vector.extract_strided_slice %8 {offsets = [0, 0], sizes = [32, 4], strides = [1, 1]} : vector<32x8xf32> to vector<32x4xf32>
    %10 = vector.extract_strided_slice %8 {offsets = [0, 4], sizes = [32, 4], strides = [1, 1]} : vector<32x8xf32> to vector<32x4xf32>
    %11 = arith.addf %9, %10 : vector<32x4xf32>
    %12 = vector.shape_cast %11 : vector<32x4xf32> to vector<2x16x4xf32>
    %c0_6 = arith.constant 0 : index
    %c0_7 = arith.constant 0 : index
    %c0_8 = arith.constant 0 : index
    %13 = vector.load %arg3[%c0_6, %c0_7, %c0_8] : memref<2x16x4xf32, #tpu.memory_space<vmem>>, vector<2x16x4xf32>
    %14 = arith.subf %12, %13 : vector<2x16x4xf32>
    %15 = math.absf %14 : vector<2x16x4xf32>
    %c0_9 = arith.constant 0 : index
    %c0_10 = arith.constant 0 : index
    %c0_11 = arith.constant 0 : index
    %16 = vector.load %arg4[%c0_9, %c0_10, %c0_11] : memref<2x1x1xf32, #tpu.memory_space<vmem>>, vector<2x1x1xf32>
    %17 = vector.broadcast %16 : vector<2x1x1xf32> to vector<2x16x4xf32>
    %18 = arith.mulf %15, %17 : vector<2x16x4xf32>
    %19 = vector.shape_cast %18 : vector<2x16x4xf32> to vector<1x2x16x4xf32>
    %cst_12 = arith.constant dense<0.000000e+00> : vector<1xf32>
    %20 = vector.multi_reduction <add>, %19, %cst_12 [1, 2, 3] : vector<1x2x16x4xf32> to vector<1xf32>
    %21 = vector.shape_cast %20 : vector<1xf32> to vector<1x1x1x1xf32>
    %22 = vector.extract %21[0, 0, 0, 0] : f32 from vector<1x1x1x1xf32>
    %23 = vector.extract_strided_slice %14 {offsets = [0, 0, 0], sizes = [1, 16, 4], strides = [1, 1, 1]} : vector<2x16x4xf32> to vector<1x16x4xf32>
    %24 = vector.shape_cast %23 : vector<1x16x4xf32> to vector<16x4xf32>
    %25 = vector.extract_strided_slice %14 {offsets = [1, 0, 0], sizes = [1, 16, 4], strides = [1, 1, 1]} : vector<2x16x4xf32> to vector<1x16x4xf32>
    %26 = vector.shape_cast %25 : vector<1x16x4xf32> to vector<16x4xf32>
    %27 = tpu.concatenate %24, %26 in 1 : vector<16x4xf32>, vector<16x4xf32> -> vector<16x8xf32>
    %c0_13 = arith.constant 0 : index
    %c0_14 = arith.constant 0 : index
    %28 = vector.load %arg6[%c0_13, %c0_14] : memref<16x16xf32, #tpu.memory_space<vmem>>, vector<16x16xf32>
    %cst_15 = arith.constant dense<0.000000e+00> : vector<16x8xf32>
    %29 = tpu.matmul %28, %27, %cst_15 {dimension_numbers = #tpu.dot_dimension_numbers<[1], [0], [0], [1], [0, 0, 1, 1], [], []>} : vector<16x16xf32>, vector<16x8xf32>, vector<16x8xf32> -> vector<16x8xf32>
    %c0_16 = arith.constant 0 : index
    %c0_17 = arith.constant 0 : index
    %30 = vector.load %arg7[%c0_16, %c0_17] : memref<16x16xf32, #tpu.memory_space<vmem>>, vector<16x16xf32>
    %cst_18 = arith.constant dense<0.000000e+00> : vector<16x8xf32>
    %31 = tpu.matmul %30, %27, %cst_18 {dimension_numbers = #tpu.dot_dimension_numbers<[1], [0], [0], [1], [0, 0, 1, 1], [], []>} : vector<16x16xf32>, vector<16x8xf32>, vector<16x8xf32> -> vector<16x8xf32>
    %32 = math.absf %29 : vector<16x8xf32>
    %33 = math.absf %31 : vector<16x8xf32>
    %34 = arith.addf %32, %33 : vector<16x8xf32>
    %c0_19 = arith.constant 0 : index
    %c0_20 = arith.constant 0 : index
    %35 = vector.load %arg5[%c0_19, %c0_20] : memref<1x8xf32, #tpu.memory_space<vmem>>, vector<1x8xf32>
    %36 = vector.broadcast %35 : vector<1x8xf32> to vector<16x8xf32>
    %37 = arith.mulf %34, %36 : vector<16x8xf32>
    %38 = vector.shape_cast %37 : vector<16x8xf32> to vector<1x16x8xf32>
    %cst_21 = arith.constant dense<0.000000e+00> : vector<1xf32>
    %39 = vector.multi_reduction <add>, %38, %cst_21 [1, 2] : vector<1x16x8xf32> to vector<1xf32>
    %40 = vector.shape_cast %39 : vector<1xf32> to vector<1x1x1xf32>
    %41 = vector.extract %40[0, 0, 0] : f32 from vector<1x1x1xf32>
    %cst_22 = arith.constant 8.000000e-01 : f32
    %42 = arith.mulf %cst_22, %41 : f32
    %43 = arith.addf %22, %42 : f32
    %cst_23 = arith.constant 7.812500e-03 : f32
    %44 = arith.mulf %43, %cst_23 : f32
    %c0_24 = arith.constant 0 : index
    %c0_25 = arith.constant 0 : index
    %45 = memref.load %arg8[%c0_24, %c0_25] : memref<1x1xf32, #tpu.memory_space<smem>>
    memref.store %44, %arg8[%c0_24, %c0_25] : memref<1x1xf32, #tpu.memory_space<smem>>
    return
  }
}

</mosaic_0001>

<llo_original>
// kernel: diffusion_ts_forward.30
$region0: #{diffusion_ts_forward.30}
  #allocation0 [shape = 'u32[]', space=smem, size = 0x4, offset = 0x4, fixed_abs, tag = 'smem constant byte address 0x4 - core index']
  #allocation1 [shape = 'u32[72,128]{1,0:T(1,128)}', space=vmem, size = 0x9000, scoped, tag = 'internal scratch']
  %s0 = inlined_call_operand.vmem [shape: f32[2,16,32], index: 0, kind: input, shape index: {}]
  %s1 = inlined_call_operand.vmem [shape: f32[1,32], index: 1, kind: input, shape index: {}]
  %s2 = inlined_call_operand.vmem [shape: f32[1,32], index: 2, kind: input, shape index: {}]
  %s3 = inlined_call_operand.vmem [shape: f32[32,64], index: 3, kind: input, shape index: {}]
  %s4 = inlined_call_operand.vmem [shape: f32[1,64], index: 4, kind: input, shape index: {}]
  %s5 = inlined_call_operand.vmem [shape: f32[64,32], index: 5, kind: input, shape index: {}]
  %s6 = inlined_call_operand.vmem [shape: f32[1,32], index: 6, kind: input, shape index: {}]
  %s7 = inlined_call_operand.vmem [shape: f32[2,16,32], index: 7, kind: output, shape index: {}]
  %s8 = sld [smem:[#allocation0]]
  $region61: #{diffusion_ts_forward.30} parent=0
    _
  %s10 = ssub.s32 1, %s8
  %s11 = scalar_select 0, %s10, %s8
  loop: start=0, step=1, limit=4
  $region2: #{diffusion_ts_forward.30} parent=0 // loop_pre_header
    _
  $region3: #{diffusion_ts_forward.30} parent=0 // loop_header
    %s13 = sphi 0, %s17
    %p14 = scmp.ge.s32.totalorder %s13, 4
    %s23 = sphi 0, %s25
    %s26 = sphi 0, %s23
    %s27 = sphi 0, %s26
    %s43 = sphi 0, %s27
    %s47 = sphi 0, %s47
    %s49 = sphi 0, %s47
    %s50 = sphi 0, %s49
    %s64 = sphi 0, %s50
    %s68 = sphi 0, %s68
    %s70 = sphi 0, %s68
    %s71 = sphi 0, %s70
    %s85 = sphi 0, %s71
    %s89 = sphi 0, %s89
    %s91 = sphi 0, %s89
    %s92 = sphi 0, %s91
    %s106 = sphi 0, %s92
    %s110 = sphi 0, %s110
    %s112 = sphi 0, %s110
    %s113 = sphi 0, %s112
    %s127 = sphi 0, %s113
    %s131 = sphi 0, %s131
    %s133 = sphi 0, %s131
    %s134 = sphi 0, %s133
    %s148 = sphi 0, %s134
    %s152 = sphi 0, %s152
    %s154 = sphi 0, %s152
    %s155 = sphi 0, %s154
    %s169 = sphi 0, %s155
    %s175 = sphi 0, %s177
    %s178 = sphi 0, %s175
    %s179 = sphi 0, %s178
    %s195 = sphi 0, %s179
  $region4: #{diffusion_ts_forward.30} parent=0 // loop_header_branch
    %16 = sbr.rel (%p14) target = $region8
  $region5: #{diffusion_ts_forward.30} parent=0 // loop_body
    %s18 = ssub.s32 %s13, 1
    %s19 = ssub.s32 %s13, 2
    %s20 = sadd.s32 %s13, 1
    %s21 = ssub.s32 %s13, %s20
    %p22 = scmp.eq.s32.totalorder %s21, 0
    %s24 = sadd.s32 %s23, 1
    %s25 = scalar_select %p22, %s23, %s24
    %p28 = pneg %p22
    %p29 = scmp.eq.s32.totalorder %s13, 1
    %p30 = por %p28, %p29
    %p31 = scmp.ne.s32.totalorder %s23, %s26
    %p32 = scmp.eq.s32.totalorder %s13, 0
    %p33 = por %p31, %p32
    %p34 = scmp.ne.s32.totalorder %s23, %s26
    %p35 = scmp.eq.s32.totalorder %s18, 1
    %p36 = por %p34, %p35
    %p37 = scmp.ne.s32.totalorder %s26, %s27
    %p38 = scmp.eq.s32.totalorder %s18, 0
    %p39 = por %p37, %p38
    %p40 = scmp.ne.s32.totalorder %s26, %s27
    %p41 = scmp.eq.s32.totalorder %s19, 1
    %p42 = por %p40, %p41
    %p44 = scmp.ne.s32.totalorder %s27, %s43
    %p45 = scmp.eq.s32.totalorder %s19, 0
    %p46 = por %p44, %p45
    %s48 = sadd.s32 %s47, 1
    %p51 = scmp.eq.s32.totalorder %s13, 1
    %p52 = scmp.ne.s32.totalorder %s47, %s49
    %p53 = scmp.eq.s32.totalorder %s13, 0
    %p54 = por %p52, %p53
    %p55 = scmp.ne.s32.totalorder %s47, %s49
    %p56 = scmp.eq.s32.totalorder %s18, 1
    %p57 = por %p55, %p56
    %p58 = scmp.ne.s32.totalorder %s49, %s50
    %p59 = scmp.eq.s32.totalorder %s18, 0
    %p60 = por %p58, %p59
    %p61 = scmp.ne.s32.totalorder %s49, %s50
    %p62 = scmp.eq.s32.totalorder %s19, 1
    %p63 = por %p61, %p62
    %p65 = scmp.ne.s32.totalorder %s50, %s64
    %p66 = scmp.eq.s32.totalorder %s19, 0
    %p67 = por %p65, %p66
    %s69 = sadd.s32 %s68, 1
    %p72 = scmp.eq.s32.totalorder %s13, 1
    %p73 = scmp.ne.s32.totalorder %s68, %s70
    %p74 = scmp.eq.s32.totalorder %s13, 0
    %p75 = por %p73, %p74
    %p76 = scmp.ne.s32.totalorder %s68, %s70
    %p77 = scmp.eq.s32.totalorder %s18, 1
    %p78 = por %p76, %p77
    %p79 = scmp.ne.s32.totalorder %s70, %s71
    %p80 = scmp.eq.s32.totalorder %s18, 0
    %p81 = por %p79, %p80
    %p82 = scmp.ne.s32.totalorder %s70, %s71
    %p83 = scmp.eq.s32.totalorder %s19, 1
    %p84 = por %p82, %p83
    %p86 = scmp.ne.s32.totalorder %s71, %s85
    %p87 = scmp.eq.s32.totalorder %s19, 0
    %p88 = por %p86, %p87
    %s90 = sadd.s32 %s89, 1
    %p93 = scmp.eq.s32.totalorder %s13, 1
    %p94 = scmp.ne.s32.totalorder %s89, %s91
    %p95 = scmp.eq.s32.totalorder %s13, 0
    %p96 = por %p94, %p95
    %p97 = scmp.ne.s32.totalorder %s89, %s91
    %p98 = scmp.eq.s32.totalorder %s18, 1
    %p99 = por %p97, %p98
    %p100 = scmp.ne.s32.totalorder %s91, %s92
    %p101 = scmp.eq.s32.totalorder %s18, 0
    %p102 = por %p100, %p101
    %p103 = scmp.ne.s32.totalorder %s91, %s92
    %p104 = scmp.eq.s32.totalorder %s19, 1
    %p105 = por %p103, %p104
    %p107 = scmp.ne.s32.totalorder %s92, %s106
    %p108 = scmp.eq.s32.totalorder %s19, 0
    %p109 = por %p107, %p108
    %s111 = sadd.s32 %s110, 1
    %p114 = scmp.eq.s32.totalorder %s13, 1
    %p115 = scmp.ne.s32.totalorder %s110, %s112
    %p116 = scmp.eq.s32.totalorder %s13, 0
    %p117 = por %p115, %p116
    %p118 = scmp.ne.s32.totalorder %s110, %s112
    %p119 = scmp.eq.s32.totalorder %s18, 1
    %p120 = por %p118, %p119
    %p121 = scmp.ne.s32.totalorder %s112, %s113
    %p122 = scmp.eq.s32.totalorder %s18, 0
    %p123 = por %p121, %p122
    %p124 = scmp.ne.s32.totalorder %s112, %s113
    %p125 = scmp.eq.s32.totalorder %s19, 1
    %p126 = por %p124, %p125
    %p128 = scmp.ne.s32.totalorder %s113, %s127
    %p129 = scmp.eq.s32.totalorder %s19, 0
    %p130 = por %p128, %p129
    %s132 = sadd.s32 %s131, 1
    %p135 = scmp.eq.s32.totalorder %s13, 1
    %p136 = scmp.ne.s32.totalorder %s131, %s133
    %p137 = scmp.eq.s32.totalorder %s13, 0
    %p138 = por %p136, %p137
    %p139 = scmp.ne.s32.totalorder %s131, %s133
    %p140 = scmp.eq.s32.totalorder %s18, 1
    %p141 = por %p139, %p140
    %p142 = scmp.ne.s32.totalorder %s133, %s134
    %p143 = scmp.eq.s32.totalorder %s18, 0
    %p144 = por %p142, %p143
    %p145 = scmp.ne.s32.totalorder %s133, %s134
    %p146 = scmp.eq.s32.totalorder %s19, 1
    %p147 = por %p145, %p146
    %p149 = scmp.ne.s32.totalorder %s134, %s148
    %p150 = scmp.eq.s32.totalorder %s19, 0
    %p151 = por %p149, %p150
    %s153 = sadd.s32 %s152, 1
    %p156 = scmp.eq.s32.totalorder %s13, 1
    %p157 = scmp.ne.s32.totalorder %s152, %s154
    %p158 = scmp.eq.s32.totalorder %s13, 0
    %p159 = por %p157, %p158
    %p160 = scmp.ne.s32.totalorder %s152, %s154
    %p161 = scmp.eq.s32.totalorder %s18, 1
    %p162 = por %p160, %p161
    %p163 = scmp.ne.s32.totalorder %s154, %s155
    %p164 = scmp.eq.s32.totalorder %s18, 0
    %p165 = por %p163, %p164
    %p166 = scmp.ne.s32.totalorder %s154, %s155
    %p167 = scmp.eq.s32.totalorder %s19, 1
    %p168 = por %p166, %p167
    %p170 = scmp.ne.s32.totalorder %s155, %s169
    %p171 = scmp.eq.s32.totalorder %s19, 0
    %p172 = por %p170, %p171
    %s173 = ssub.s32 %s13, %s20
    %p174 = scmp.eq.s32.totalorder %s173, 0
    %s176 = sadd.s32 %s175, 1
    %s177 = scalar_select %p174, %s175, %s176
    %p180 = pneg %p174
    %p181 = scmp.eq.s32.totalorder %s13, 1
    %p182 = por %p180, %p181
    %p183 = scmp.ne.s32.totalorder %s175, %s178
    %p184 = scmp.eq.s32.totalorder %s13, 0
    %p185 = por %p183, %p184
    %p186 = scmp.ne.s32.totalorder %s175, %s178
    %p187 = scmp.eq.s32.totalorder %s18, 1
    %p188 = por %p186, %p187
    %p189 = scmp.ne.s32.totalorder %s178, %s179
    %p190 = scmp.eq.s32.totalorder %s18, 0
    %p191 = por %p189, %p190
    %p192 = scmp.ne.s32.totalorder %s178, %s179
    %p193 = scmp.eq.s32.totalorder %s19, 1
    %p194 = por %p192, %p193
    %p196 = scmp.ne.s32.totalorder %s179, %s195
    %p197 = scmp.eq.s32.totalorder %s19, 0
    %p198 = por %p196, %p197
    %p199 = scmp.le.s32.totalorder 1, %s13
    %p200 = scmp.lt.s32.totalorder %s13, 3
    %p201 = pnand %p199, %p200
    %p202 = pneg %p201
    // Predicated region
    $region9: #{diffusion_ts_forward.30} parent=5 // pred_check
      _
    $region10: #{diffusion_ts_forward.30} parent=5 // pred_check_branch
      %204 = sbr.rel (%p201) target = $region12
    $region11: #{diffusion_ts_forward.30} parent=5 // pred_region
      %s205 = ssub.s32 %s13, 1
      // Predicated region
      $region13: #{diffusion_ts_forward.30} parent=11 // pred_check
        %p206 = pneg %p60
      $region14: #{diffusion_ts_forward.30} parent=11 // pred_check_branch
        %208 = sbr.rel (%p206) target = $region16
      $region15: #{diffusion_ts_forward.30} parent=11 // pred_region
        _
      $region16: #{diffusion_ts_forward.30} parent=11 // pred_fallthru
        _
      // Predicated region
      $region17: #{diffusion_ts_forward.30} parent=11 // pred_check
        %p209 = pneg %p81
      $region18: #{diffusion_ts_forward.30} parent=11 // pred_check_branch
        %211 = sbr.rel (%p209) target = $region20
      $region19: #{diffusion_ts_forward.30} parent=11 // pred_region
        _
      $region20: #{diffusion_ts_forward.30} parent=11 // pred_fallthru
        _
      // Predicated region
      $region21: #{diffusion_ts_forward.30} parent=11 // pred_check
        %p212 = pneg %p102
      $region22: #{diffusion_ts_forward.30} parent=11 // pred_check_branch
        %214 = sbr.rel (%p212) target = $region24
      $region23: #{diffusion_ts_forward.30} parent=11 // pred_region
        _
      $region24: #{diffusion_ts_forward.30} parent=11 // pred_fallthru
        _
      // Predicated region
      $region25: #{diffusion_ts_forward.30} parent=11 // pred_check
        %p215 = pneg %p123
      $region26: #{diffusion_ts_forward.30} parent=11 // pred_check_branch
        %217 = sbr.rel (%p215) target = $region28
      $region27: #{diffusion_ts_forward.30} parent=11 // pred_region
        _
      $region28: #{diffusion_ts_forward.30} parent=11 // pred_fallthru
        _
      // Predicated region
      $region29: #{diffusion_ts_forward.30} parent=11 // pred_check
        %p218 = pneg %p144
      $region30: #{diffusion_ts_forward.30} parent=11 // pred_check_branch
        %220 = sbr.rel (%p218) target = $region32
      $region31: #{diffusion_ts_forward.30} parent=11 // pred_region
        _
      $region32: #{diffusion_ts_forward.30} parent=11 // pred_fallthru
        _
      // Predicated region
      $region33: #{diffusion_ts_forward.30} parent=11 // pred_check
        %p221 = pneg %p165
      $region34: #{diffusion_ts_forward.30} parent=11 // pred_check_branch
        %223 = sbr.rel (%p221) target = $region36
      $region35: #{diffusion_ts_forward.30} parent=11 // pred_region
        _
      $region36: #{diffusion_ts_forward.30} parent=11 // pred_fallthru
        _
    $region12: #{diffusion_ts_forward.30} parent=5 // pred_fallthru
      _
    %p224 = scmp.lt.s32.totalorder %s13, 2
    // Predicated region
    $region37: #{diffusion_ts_forward.30} parent=5 // pred_check
      %p225 = pneg %p224
    $region38: #{diffusion_ts_forward.30} parent=5 // pred_check_branch
      %227 = sbr.rel (%p225) target = $region40
    $region39: #{diffusion_ts_forward.30} parent=5 // pred_region
      // Predicated region
      $region41: #{diffusion_ts_forward.30} parent=39 // pred_check
        %p228 = pneg %p33
      $region42: #{diffusion_ts_forward.30} parent=39 // pred_check_branch
        %230 = sbr.rel (%p228) target = $region44
      $region43: #{diffusion_ts_forward.30} parent=39 // pred_region
        %p231 = scmp.lt.s32.totalorder %s13, 1
        %s232 = scalar_select %p231, %s13, 1
        %s233 = smul.addr %s232, 2
        %s234 = smul.addr %s233, 8
        %s235 = scalar_lea.vmem %s0, %s234
      $region44: #{diffusion_ts_forward.30} parent=39 // pred_fallthru
        _
    $region40: #{diffusion_ts_forward.30} parent=5 // pred_fallthru
      _
    %p236 = scmp.le.s32.totalorder 1, %s13
    %p237 = scmp.lt.s32.totalorder %s13, 3
    %p238 = pnand %p236, %p237
    %p239 = pneg %p238
    // Predicated region
    $region45: #{diffusion_ts_forward.30} parent=5 // pred_check
      _
    $region46: #{diffusion_ts_forward.30} parent=5 // pred_check_branch
      %241 = sbr.rel (%p238) target = $region48
    $region47: #{diffusion_ts_forward.30} parent=5 // pred_region
      %s242 = ssub.s32 %s13, 1
      %p243 = scmp.lt.s32.totalorder %s18, 1
      %s244 = scalar_select %p243, %s18, 1
      %s245 = smul.addr %s244, 2
      %s246 = smul.addr %s245, 8
      %s247 = scalar_lea.vmem %s0, %s246
      %p248 = pneg %p39
      %p249 = pneg %p36
      %p250 = pneg %p60
      %p251 = pneg %p57
      %p252 = pneg %p81
      %p253 = pneg %p78
      %p254 = pneg %p102
      %p255 = pneg %p99
      %p256 = pneg %p123
      %p257 = pneg %p120
      %p258 = pneg %p144
      %p259 = pneg %p141
      %p260 = pneg %p165
      %p261 = pneg %p162
      %p262 = pneg %p191
      %p263 = pneg %p188
      %p264 = scmp.lt.s32.totalorder %s18, 1
      %s265 = scalar_select %p264, %s18, 1
      %s266 = smul.addr %s265, 2
      %s267 = smul.addr %s266, 8
      %s268 = scalar_lea.vmem %s7, %s267
      %p269 = scmp.lt.s32.totalorder %s18, 1
      %s270 = scalar_select %p269, %s18, 1
      %s271 = smul.addr %s270, 2
      %s272 = smul.addr %s271, 8
      %s273 = scalar_lea.vmem %s0, %s272
      %p274 = scmp.lt.s32.totalorder %s18, 1
      %s275 = scalar_select %p274, %s18, 1
      %s276 = smul.addr %s275, 2
      %s277 = smul.addr %s276, 8
      %s278 = scalar_lea.vmem %s7, %s277
      %v280 = vld [vmem:[%s273] sm:$0xff]
      %v281 = vld [vmem:[%s273 + $0x8] sm:$0xff]
      %v282 = vld [vmem:[%s1] sm:$0x1]
      %v283 = vld [vmem:[%s2] sm:$0x1]
      %vm284 = vcmask 261120
      %v285 = vsel %vm284, %v280, 0.0
      %286 = vadd.xlane.f32.xlu0 %v285
      %v287 = vpop.xlane.xlu0 %286
      %v288 = vsel %vm284, %v281, 0.0
      %289 = vadd.xlane.f32.xlu0 %v288
      %v290 = vpop.xlane.xlu0 %289
      %v291 = vrcp.pop 32.0
      %v292 = vmul.f32 32.0, %v291
      %v293 = vsub.f32 1.0, %v292
      %v294 = vmul.f32 %v291, %v293
      %v295 = vadd.f32 %v291, %v294
      %vm296 = vweird.f32 %v291
      %v297 = vsel %vm296, %v291, %v295
      %v298 = vmul.f32 %v287, %v297
      %v299 = vmul.f32 %v290, %v297
      %v300 = vsub.f32 %v280, %v298
      %v301 = vsub.f32 %v281, %v299
      %v302 = vmul.f32 %v300, %v300
      %v303 = vmul.f32 %v301, %v301
      %v304 = vsel %vm284, %v302, 0.0
      %305 = vadd.xlane.f32.xlu0 %v304
      %v306 = vpop.xlane.xlu0 %305
      %v307 = vsel %vm284, %v303, 0.0
      %308 = vadd.xlane.f32.xlu0 %v307
      %v309 = vpop.xlane.xlu0 %308
      %v310 = vmul.f32 %v306, %v297
      %v311 = vmul.f32 %v309, %v297
      %v312 = vadd.f32 %v310, 1e-05
      %v313 = vadd.f32 %v311, 1e-05
      %v314 = vrsqrt.pop %v312
      %v315 = vmul.f32 %v314, %v312
      %v316 = vmul.f32 %v315, %v314
      %v317 = vmul.f32 0.5, %v316
      %v318 = vsub.f32 1.5, %v317
      %v319 = vmul.f32 %v314, %v318
      %vm320 = vweird.f32 %v312
      %vm321 = vweird.f32 %v314
      %vm322 = vmor %vm320, %vm321
      %v323 = vsel %vm322, %v314, %v319
      %v324 = vrsqrt.pop %v313
      %v325 = vmul.f32 %v324, %v313
      %v326 = vmul.f32 %v325, %v324
      %v327 = vmul.f32 0.5, %v326
      %v328 = vsub.f32 1.5, %v327
      %v329 = vmul.f32 %v324, %v328
      %vm330 = vweird.f32 %v313
      %vm331 = vweird.f32 %v324
      %vm332 = vmor %vm330, %vm331
      %v333 = vsel %vm332, %v324, %v329
      %v334 = vmul.f32 %v300, %v323
      %v335 = vmul.f32 %v301, %v333
      %v337 = vperm.slane %v282, 0
      %v339 = vmul.f32 %v334, %v337
      %v340 = vmul.f32 %v335, %v337
      %v342 = vperm.slane %v283, 0
      %v344 = vadd.f32 %v339, %v342
      %v345 = vadd.f32 %v340, %v342
      %v346 = vld [vmem:[%s3] sm:$0xff]
      %v347 = vld [vmem:[%s3 + $0x8] sm:$0xff]
      %v348 = vld [vmem:[%s3 + $0x10] sm:$0xff]
      %v349 = vld [vmem:[%s3 + $0x18] sm:$0xff]
      %v350 = vld [vmem:[%s4] sm:$0x1]
      %v351 = vpack.c.bf16 %v345, %v344
      %v352 = vpack.c.bf16 %v347, %v346
      %v353 = vpack.c.bf16 %v349, %v348
      %v355 = vperm.slane %v350, 0
      %v358 = vsel %vm284, %v351, 0
      %360 = vmatpush.bf16.msra.mxu0 0
      %361 = vmatpush.bf16.msra.mxu0 0
      %362 = vmatpush.bf16.msra.mxu0 0
      %363 = vmatpush.bf16.msra.mxu0 0
      %364 = vmatpush.bf16.msra.mxu0 0
      %365 = vmatpush.bf16.msra.mxu0 0
      %366 = vmatpush.bf16.msra.mxu0 %v353
      %367 = vmatpush.bf16.msra.mxu0 %v352
      %368 = vmatmul.bf16.gmra.mxu0 %v358
      %v369 = vpop.f32.mrf.mxu0
      %v370 = vadd.f32 %v355, %v369
      %v371 = vpop.f32.mrf.mxu0
      %v372 = vadd.f32 %v355, %v371
      %373 = vdwg.mxu0
      %v374 = vmul.f32 %v370, %v370
      %v375 = vmul.f32 %v372, %v372
      %v376 = vmul.f32 %v370, %v374
      %v377 = vmul.f32 %v372, %v375
      %v378 = vmul.f32 %v376, 0.044715
      %v379 = vmul.f32 %v377, 0.044715
      %v380 = vadd.f32 %v370, %v378
      %v381 = vadd.f32 %v372, %v379
      %v382 = vmul.f32 %v380, 0.7978846
      %v383 = vmul.f32 %v381, 0.7978846
      %v384 = vtanh.pop %v382
      %v385 = vtanh.pop %v383
      %v386 = vadd.f32 %v384, 1.0
      %v387 = vadd.f32 %v385, 1.0
      %v388 = vmul.f32 %v386, 0.5
      %v389 = vmul.f32 %v387, 0.5
      %v390 = vmul.f32 %v370, %v388
      %v391 = vmul.f32 %v372, %v389
      %v392 = vld [vmem:[%s5] sm:$0xff]
      %v393 = vld [vmem:[%s5 + $0x8] sm:$0xff]
      %v394 = vld [vmem:[%s5 + $0x10] sm:$0xff]
      %v395 = vld [vmem:[%s5 + $0x18] sm:$0xff]
      %v396 = vld [vmem:[%s5 + $0x20] sm:$0xff]
      %v397 = vld [vmem:[%s5 + $0x28] sm:$0xff]
      %v398 = vld [vmem:[%s5 + $0x30] sm:$0xff]
      %v399 = vld [vmem:[%s5 + $0x38] sm:$0xff]
      %v400 = vld [vmem:[%s6] sm:$0x1]
      %v401 = vpack.c.bf16 %v391, %v390
      %v402 = vpack.c.bf16 %v393, %v392
      %v403 = vpack.c.bf16 %v395, %v394
      %v404 = vpack.c.bf16 %v397, %v396
      %v405 = vpack.c.bf16 %v399, %v398
      %v407 = vperm.slane %v400, 0
      %vm409 = vcmask 523264
      %v411 = vsel %vm409, %v401, 0
      %413 = vmatpush.bf16.msra.mxu0 0
      %414 = vmatpush.bf16.msra.mxu0 0
      %415 = vmatpush.bf16.msra.mxu0 0
      %416 = vmatpush.bf16.msra.mxu0 0
      %417 = vmatpush.bf16.msra.mxu0 %v405
      %418 = vmatpush.bf16.msra.mxu0 %v404
      %419 = vmatpush.bf16.msra.mxu0 %v403
      %420 = vmatpush.bf16.msra.mxu0 %v402
      %421 = vmatmul.bf16.gmra.mxu0 %v411
      %v422 = vpop.f32.mrf.mxu0
      %v423 = vadd.f32 %v407, %v422
      %v424 = vpop.f32.mrf.mxu0
      %v425 = vadd.f32 %v407, %v424
      %426 = vdwg.mxu0
      %v427 = vadd.f32 %v280, %v423
      %v428 = vadd.f32 %v281, %v425
      %429 = vst.msk [vmem:[%s278] sm:$0xff] %vm284, %v427
      %430 = vst.msk [vmem:[%s278 + $0x8] sm:$0xff] %vm284, %v428
      %p431 = scmp.lt.s32.totalorder %s18, 1
      %s432 = scalar_select %p431, %s18, 1
      %s433 = smul.addr %s432, 2
      %s434 = smul.addr %s433, 8
      %s435 = scalar_lea.vmem %s7, %s434
      // Predicated region
      $region49: #{diffusion_ts_forward.30} parent=47 // pred_check
        %p436 = pneg %p188
      $region50: #{diffusion_ts_forward.30} parent=47 // pred_check_branch
        %438 = sbr.rel (%p436) target = $region52
      $region51: #{diffusion_ts_forward.30} parent=47 // pred_region
        _
      $region52: #{diffusion_ts_forward.30} parent=47 // pred_fallthru
        _
    $region48: #{diffusion_ts_forward.30} parent=5 // pred_fallthru
      _
    %p439 = scmp.le.s32.totalorder 2, %s13
    // Predicated region
    $region53: #{diffusion_ts_forward.30} parent=5 // pred_check
      %p440 = pneg %p439
    $region54: #{diffusion_ts_forward.30} parent=5 // pred_check_branch
      %442 = sbr.rel (%p440) target = $region56
    $region55: #{diffusion_ts_forward.30} parent=5 // pred_region
      %s443 = ssub.s32 %s13, 2
      // Predicated region
      $region57: #{diffusion_ts_forward.30} parent=55 // pred_check
        %p444 = pneg %p194
      $region58: #{diffusion_ts_forward.30} parent=55 // pred_check_branch
        %446 = sbr.rel (%p444) target = $region60
      $region59: #{diffusion_ts_forward.30} parent=55 // pred_region
        %p447 = scmp.lt.s32.totalorder %s19, 1
        %s448 = scalar_select %p447, %s19, 1
        %s449 = smul.addr %s448, 2
        %s450 = smul.addr %s449, 8
        %s451 = scalar_lea.vmem %s7, %s450
      $region60: #{diffusion_ts_forward.30} parent=55 // pred_fallthru
        _
    $region56: #{diffusion_ts_forward.30} parent=5 // pred_fallthru
      _
  $region6: #{diffusion_ts_forward.30} parent=0 // loop_footer
    %s17 = sadd.s32 1, %s13
  $region7: #{diffusion_ts_forward.30} parent=0 // loop_footer_branch
    %12 = sbr.rel target = $region3
  $region8: #{diffusion_ts_forward.30} parent=0 // loop_exit
    _

// kernel: diffusion_ts_forward.27
$region0: #{diffusion_ts_forward.27}
  #allocation0 [shape = 'u32[]', space=smem, size = 0x4, offset = 0x4, fixed_abs, tag = 'smem constant byte address 0x4 - core index']
  #allocation1 [shape = 'u32[72,128]{1,0:T(1,128)}', space=vmem, size = 0x9000, scoped, tag = 'internal scratch']
  %s0 = inlined_call_operand.vmem [shape: f32[2,16,4], index: 0, kind: input, shape index: {}]
  %s1 = inlined_call_operand.vmem [shape: f32[2,16,4], index: 1, kind: input, shape index: {}]
  %s2 = inlined_call_operand.vmem [shape: f32[2,1,1], index: 2, kind: input, shape index: {}]
  %s3 = inlined_call_operand.vmem [shape: f32[2,1,1], index: 3, kind: input, shape index: {}]
  %s4 = inlined_call_operand.vmem [shape: f32[2,32], index: 4, kind: input, shape index: {}]
  %s5 = inlined_call_operand.vmem [shape: f32[32,32], index: 5, kind: input, shape index: {}]
  %s6 = inlined_call_operand.vmem [shape: f32[1,32], index: 6, kind: input, shape index: {}]
  %s7 = inlined_call_operand.vmem [shape: f32[32,32], index: 7, kind: input, shape index: {}]
  %s8 = inlined_call_operand.vmem [shape: f32[1,32], index: 8, kind: input, shape index: {}]
  %s9 = inlined_call_operand.vmem [shape: f32[4,32], index: 9, kind: input, shape index: {}]
  %s10 = inlined_call_operand.vmem [shape: f32[1,32], index: 10, kind: input, shape index: {}]
  %s11 = inlined_call_operand.vmem [shape: f32[16,32], index: 11, kind: input, shape index: {}]
  %s12 = inlined_call_operand.vmem [shape: f32[2,16,32], index: 12, kind: output, shape index: {}]
  %s13 = sld [smem:[#allocation0]]
  $region58: #{diffusion_ts_forward.27} parent=0
    _
  %s15 = ssub.s32 1, %s13
  %s16 = scalar_select 0, %s15, %s13
  // Predicated region
  $region2: #{diffusion_ts_forward.27} parent=0 // pred_check
    _
  $region3: #{diffusion_ts_forward.27} parent=0 // pred_check_branch
    %18 = sbr.rel (0) target = $region5
  $region4: #{diffusion_ts_forward.27} parent=0 // pred_region
    _
  $region5: #{diffusion_ts_forward.27} parent=0 // pred_fallthru
    _
  // Predicated region
  $region6: #{diffusion_ts_forward.27} parent=0 // pred_check
    _
  $region7: #{diffusion_ts_forward.27} parent=0 // pred_check_branch
    %20 = sbr.rel (0) target = $region9
  $region8: #{diffusion_ts_forward.27} parent=0 // pred_region
    _
  $region9: #{diffusion_ts_forward.27} parent=0 // pred_fallthru
    _
  // Predicated region
  $region10: #{diffusion_ts_forward.27} parent=0 // pred_check
    _
  $region11: #{diffusion_ts_forward.27} parent=0 // pred_check_branch
    %22 = sbr.rel (0) target = $region13
  $region12: #{diffusion_ts_forward.27} parent=0 // pred_region
    _
  $region13: #{diffusion_ts_forward.27} parent=0 // pred_fallthru
    _
  // Predicated region
  $region14: #{diffusion_ts_forward.27} parent=0 // pred_check
    _
  $region15: #{diffusion_ts_forward.27} parent=0 // pred_check_branch
    %24 = sbr.rel (0) target = $region17
  $region16: #{diffusion_ts_forward.27} parent=0 // pred_region
    _
  $region17: #{diffusion_ts_forward.27} parent=0 // pred_fallthru
    _
  // Predicated region
  $region18: #{diffusion_ts_forward.27} parent=0 // pred_check
    _
  $region19: #{diffusion_ts_forward.27} parent=0 // pred_check_branch
    %26 = sbr.rel (0) target = $region21
  $region20: #{diffusion_ts_forward.27} parent=0 // pred_region
    _
  $region21: #{diffusion_ts_forward.27} parent=0 // pred_fallthru
    _
  // Predicated region
  $region22: #{diffusion_ts_forward.27} parent=0 // pred_check
    _
  $region23: #{diffusion_ts_forward.27} parent=0 // pred_check_branch
    %28 = sbr.rel (0) target = $region25
  $region24: #{diffusion_ts_forward.27} parent=0 // pred_region
    _
  $region25: #{diffusion_ts_forward.27} parent=0 // pred_fallthru
    _
  // Predicated region
  $region26: #{diffusion_ts_forward.27} parent=0 // pred_check
    _
  $region27: #{diffusion_ts_forward.27} parent=0 // pred_check_branch
    %30 = sbr.rel (0) target = $region29
  $region28: #{diffusion_ts_forward.27} parent=0 // pred_region
    _
  $region29: #{diffusion_ts_forward.27} parent=0 // pred_fallthru
    _
  // Predicated region
  $region30: #{diffusion_ts_forward.27} parent=0 // pred_check
    _
  $region31: #{diffusion_ts_forward.27} parent=0 // pred_check_branch
    %32 = sbr.rel (0) target = $region33
  $region32: #{diffusion_ts_forward.27} parent=0 // pred_region
    _
  $region33: #{diffusion_ts_forward.27} parent=0 // pred_fallthru
    _
  // Predicated region
  $region34: #{diffusion_ts_forward.27} parent=0 // pred_check
    _
  $region35: #{diffusion_ts_forward.27} parent=0 // pred_check_branch
    %34 = sbr.rel (0) target = $region37
  $region36: #{diffusion_ts_forward.27} parent=0 // pred_region
    _
  $region37: #{diffusion_ts_forward.27} parent=0 // pred_fallthru
    _
  // Predicated region
  $region38: #{diffusion_ts_forward.27} parent=0 // pred_check
    _
  $region39: #{diffusion_ts_forward.27} parent=0 // pred_check_branch
    %36 = sbr.rel (0) target = $region41
  $region40: #{diffusion_ts_forward.27} parent=0 // pred_region
    _
  $region41: #{diffusion_ts_forward.27} parent=0 // pred_fallthru
    _
  // Predicated region
  $region42: #{diffusion_ts_forward.27} parent=0 // pred_check
    _
  $region43: #{diffusion_ts_forward.27} parent=0 // pred_check_branch
    %38 = sbr.rel (0) target = $region45
  $region44: #{diffusion_ts_forward.27} parent=0 // pred_region
    _
  $region45: #{diffusion_ts_forward.27} parent=0 // pred_fallthru
    _
  // Predicated region
  $region46: #{diffusion_ts_forward.27} parent=0 // pred_check
    _
  $region47: #{diffusion_ts_forward.27} parent=0 // pred_check_branch
    %40 = sbr.rel (0) target = $region49
  $region48: #{diffusion_ts_forward.27} parent=0 // pred_region
    _
  $region49: #{diffusion_ts_forward.27} parent=0 // pred_fallthru
    _
  %v42 = vld [vmem:[%s4] sm:$0x3]
  %v43 = vld [vmem:[%s5] sm:$0xff]
  %v44 = vld [vmem:[%s5 + $0x8] sm:$0xff]
  %v45 = vld [vmem:[%s5 + $0x10] sm:$0xff]
  %v46 = vld [vmem:[%s5 + $0x18] sm:$0xff]
  %v47 = vld [vmem:[%s6] sm:$0x1]
  %v48 = vpack.c.bf16 %v42, %v42
  %v49 = vpack.c.bf16 %v44, %v43
  %v50 = vpack.c.bf16 %v46, %v45
  %v52 = vperm.slane %v47, 0
  %vm54 = vcmask 261120
  %v56 = vsel %vm54, %v48, 0
  %58 = vmatpush.bf16.msra.mxu0 0
  %59 = vmatpush.bf16.msra.mxu0 0
  %60 = vmatpush.bf16.msra.mxu0 0
  %61 = vmatpush.bf16.msra.mxu0 0
  %62 = vmatpush.bf16.msra.mxu0 0
  %63 = vmatpush.bf16.msra.mxu0 0
  %64 = vmatpush.bf16.msra.mxu0 %v50
  %65 = vmatpush.bf16.msra.mxu0 %v49
  %66 = vmatmul.bf16.gmra.mxu0 %v56
  %v67 = vpop.f32.mrf.mxu0
  %v68 = vadd.f32 %v52, %v67
  %v69 = vpop.f32.mrf.mxu0
  %70 = vdwg.mxu0
  %v71 = vxor.u32 %v68, 2147483648
  %v72 = vmul.f32 %v71, 1.442695
  %v73 = vpow.pop %v72
  %v74 = vadd.f32 %v73, 1.0
  %v75 = vrcp.pop %v74
  %v76 = vmul.f32 %v74, %v75
  %v77 = vsub.f32 1.0, %v76
  %v78 = vmul.f32 %v75, %v77
  %v79 = vadd.f32 %v75, %v78
  %vm80 = vweird.f32 %v74
  %vm81 = vweird.f32 %v75
  %vm82 = vmor %vm80, %vm81
  %v83 = vsel %vm82, %v75, %v79
  %v84 = vand.u32 2147483647, %v74
  %vm85 = vcmp.eq.f32.partialorder %v84, 8.507059e+37
  %v86 = vand.u32 %v74, 2147483648
  %v87 = vor.u32 1.1754944e-38, %v86
  %v88 = vsel %vm85, %v87, %v83
  %v89 = vmul.f32 1.0, %v88
  %v90 = vmul.f32 %v68, %v89
  %v91 = vld [vmem:[%s7] sm:$0xff]
  %v92 = vld [vmem:[%s7 + $0x8] sm:$0xff]
  %v93 = vld [vmem:[%s7 + $0x10] sm:$0xff]
  %v94 = vld [vmem:[%s7 + $0x18] sm:$0xff]
  %v95 = vld [vmem:[%s8] sm:$0x1]
  %v96 = vpack.c.bf16 %v90, %v90
  %v97 = vpack.c.bf16 %v92, %v91
  %v98 = vpack.c.bf16 %v94, %v93
  %v100 = vperm.slane %v95, 0
  %v103 = vsel %vm54, %v96, 0
  %105 = vmatpush.bf16.msra.mxu0 0
  %106 = vmatpush.bf16.msra.mxu0 0
  %107 = vmatpush.bf16.msra.mxu0 0
  %108 = vmatpush.bf16.msra.mxu0 0
  %109 = vmatpush.bf16.msra.mxu0 0
  %110 = vmatpush.bf16.msra.mxu0 0
  %111 = vmatpush.bf16.msra.mxu0 %v98
  %112 = vmatpush.bf16.msra.mxu0 %v97
  %113 = vmatmul.bf16.gmra.mxu0 %v103
  %v114 = vpop.f32.mrf.mxu0
  %v115 = vadd.f32 %v100, %v114
  %v116 = vpop.f32.mrf.mxu0
  %117 = vdwg.mxu0
  %v118 = vld [vmem:[%s2] sm:$0x1]
  %v119 = vld [vmem:[%s2 + $0x1] sm:$0x1]
  %v120 = vld [vmem:[%s0] sm:$0xff]
  %v121 = vld [vmem:[%s0 + $0x8] sm:$0xff]
  %v122 = vld [vmem:[%s0 + $0x10] sm:$0xff]
  %v123 = vld [vmem:[%s0 + $0x18] sm:$0xff]
  %v126 = vperm.slane %v118, 0
  %v127 = vperm.slane %v119, 0
  %128 = vset.pattern.permute.xlu0 0
  %129 = vperm.xlu0 %128, %v126
  %v130 = vpop.permute.xlu0 %129
  %132 = vset.pattern.permute.xlu0 0
  %133 = vperm.xlu0 %132, %v127
  %v134 = vpop.permute.xlu0 %133
  %v136 = vmul.f32 %v130, %v120
  %v137 = vmul.f32 %v130, %v121
  %v138 = vmul.f32 %v134, %v122
  %v139 = vmul.f32 %v134, %v123
  %v140 = vld [vmem:[%s3] sm:$0x1]
  %v141 = vld [vmem:[%s3 + $0x1] sm:$0x1]
  %v142 = vld [vmem:[%s1] sm:$0xff]
  %v143 = vld [vmem:[%s1 + $0x8] sm:$0xff]
  %v144 = vld [vmem:[%s1 + $0x10] sm:$0xff]
  %v145 = vld [vmem:[%s1 + $0x18] sm:$0xff]
  %v148 = vperm.slane %v140, 0
  %v149 = vperm.slane %v141, 0
  %150 = vset.pattern.permute.xlu0 0
  %151 = vperm.xlu0 %150, %v148
  %v152 = vpop.permute.xlu0 %151
  %154 = vset.pattern.permute.xlu0 0
  %155 = vperm.xlu0 %154, %v149
  %v156 = vpop.permute.xlu0 %155
  %v158 = vmul.f32 %v152, %v142
  %v159 = vmul.f32 %v152, %v143
  %v160 = vmul.f32 %v156, %v144
  %v161 = vmul.f32 %v156, %v145
  %v162 = vadd.f32 %v136, %v158
  %v163 = vadd.f32 %v137, %v159
  %v164 = vadd.f32 %v138, %v160
  %v165 = vadd.f32 %v139, %v161
  %v166 = vld [vmem:[%s9] sm:$0xf]
  %v167 = vld [vmem:[%s10] sm:$0x1]
  %v168 = vpack.c.bf16 %v163, %v162
  %v169 = vpack.c.bf16 %v165, %v164
  %v170 = vpack.c.bf16 %v166, %v166
  %v172 = vperm.slane %v167, 0
  %vm174 = vcmask 31744
  %v176 = vsel %vm174, %v168, 0
  %v179 = vsel %vm174, %v169, 0
  %vm181 = vcmask 1041408
  %v183 = vsel %vm181, %v170, 0
  %185 = vmatpush.bf16.msra.mxu0 0
  %186 = vmatpush.bf16.msra.mxu0 0
  %187 = vmatpush.bf16.msra.mxu0 0
  %188 = vmatpush.bf16.msra.mxu0 0
  %189 = vmatpush.bf16.msra.mxu0 0
  %190 = vmatpush.bf16.msra.mxu0 0
  %191 = vmatpush.bf16.msra.mxu0 0
  %192 = vmatpush.bf16.msra.mxu0 %v183
  %193 = vmatmul.bf16.gmra.mxu0 %v176
  %v194 = vpop.f32.mrf.mxu0
  %v195 = vadd.f32 %v172, %v194
  %v196 = vpop.f32.mrf.mxu0
  %v197 = vadd.f32 %v172, %v196
  %198 = vmatmul.bf16.gmra.mxu0 %v179
  %v199 = vpop.f32.mrf.mxu0
  %v200 = vadd.f32 %v172, %v199
  %v201 = vpop.f32.mrf.mxu0
  %v202 = vadd.f32 %v172, %v201
  %203 = vdwg.mxu0
  %v204 = vld [vmem:[%s11] sm:$0xff]
  %v205 = vld [vmem:[%s11 + $0x8] sm:$0xff]
  %v206 = vadd.f32 %v195, %v204
  %v207 = vadd.f32 %v197, %v205
  %v208 = vadd.f32 %v200, %v204
  %v209 = vadd.f32 %v202, %v205
  %v211 = vrot.slane %v115, 1
  %v212 = vperm.slane %v115, 0
  %v213 = vperm.slane %v211, 0
  %v216 = vadd.f32 %v206, %v212
  %v217 = vadd.f32 %v207, %v212
  %v218 = vadd.f32 %v208, %v213
  %v219 = vadd.f32 %v209, %v213
  %220 = vst.msk [vmem:[%s12] sm:$0xff] %vm54, %v216
  %221 = vst.msk [vmem:[%s12 + $0x8] sm:$0xff] %vm54, %v217
  %222 = vst.msk [vmem:[%s12 + $0x10] sm:$0xff] %vm54, %v218
  %223 = vst.msk [vmem:[%s12 + $0x18] sm:$0xff] %vm54, %v219
  // Predicated region
  $region50: #{diffusion_ts_forward.27} parent=0 // pred_check
    _
  $region51: #{diffusion_ts_forward.27} parent=0 // pred_check_branch
    %225 = sbr.rel (0) target = $region53
  $region52: #{diffusion_ts_forward.27} parent=0 // pred_region
    _
  $region53: #{diffusion_ts_forward.27} parent=0 // pred_fallthru
    _
  // Predicated region
  $region54: #{diffusion_ts_forward.27} parent=0 // pred_check
    _
  $region55: #{diffusion_ts_forward.27} parent=0 // pred_check_branch
    %227 = sbr.rel (0) target = $region57
  $region56: #{diffusion_ts_forward.27} parent=0 // pred_region
    _
  $region57: #{diffusion_ts_forward.27} parent=0 // pred_fallthru
    _

// kernel: diffusion_ts_forward.29
$region0: #{diffusion_ts_forward.29}
  #allocation0 [shape = 'u32[]', space=smem, size = 0x4, offset = 0x4, fixed_abs, tag = 'smem constant byte address 0x4 - core index']
  #allocation1 [shape = 'u32[72,128]{1,0:T(1,128)}', space=vmem, size = 0x9000, scoped, tag = 'internal scratch']
  %s0 = inlined_call_operand.vmem [shape: f32[2,16,32], index: 0, kind: input, shape index: {}]
  %s1 = inlined_call_operand.vmem [shape: f32[1,32], index: 1, kind: input, shape index: {}]
  %s2 = inlined_call_operand.vmem [shape: f32[1,32], index: 2, kind: input, shape index: {}]
  %s3 = inlined_call_operand.vmem [shape: f32[32,96], index: 3, kind: input, shape index: {}]
  %s4 = inlined_call_operand.vmem [shape: f32[1,96], index: 4, kind: input, shape index: {}]
  %s5 = inlined_call_operand.vmem [shape: f32[32,32], index: 5, kind: input, shape index: {}]
  %s6 = inlined_call_operand.vmem [shape: f32[1,32], index: 6, kind: input, shape index: {}]
  %s7 = inlined_call_operand.vmem [shape: f32[2,16,32], index: 7, kind: output, shape index: {}]
  %s8 = sld [smem:[#allocation0]]
  $region61: #{diffusion_ts_forward.29} parent=0
    _
  %s10 = ssub.s32 1, %s8
  %s11 = scalar_select 0, %s10, %s8
  loop: start=0, step=1, limit=4
  $region2: #{diffusion_ts_forward.29} parent=0 // loop_pre_header
    _
  $region3: #{diffusion_ts_forward.29} parent=0 // loop_header
    %s13 = sphi 0, %s17
    %p14 = scmp.ge.s32.totalorder %s13, 4
    %s23 = sphi 0, %s25
    %s26 = sphi 0, %s23
    %s27 = sphi 0, %s26
    %s43 = sphi 0, %s27
    %s47 = sphi 0, %s47
    %s49 = sphi 0, %s47
    %s50 = sphi 0, %s49
    %s64 = sphi 0, %s50
    %s68 = sphi 0, %s68
    %s70 = sphi 0, %s68
    %s71 = sphi 0, %s70
    %s85 = sphi 0, %s71
    %s89 = sphi 0, %s89
    %s91 = sphi 0, %s89
    %s92 = sphi 0, %s91
    %s106 = sphi 0, %s92
    %s110 = sphi 0, %s110
    %s112 = sphi 0, %s110
    %s113 = sphi 0, %s112
    %s127 = sphi 0, %s113
    %s131 = sphi 0, %s131
    %s133 = sphi 0, %s131
    %s134 = sphi 0, %s133
    %s148 = sphi 0, %s134
    %s152 = sphi 0, %s152
    %s154 = sphi 0, %s152
    %s155 = sphi 0, %s154
    %s169 = sphi 0, %s155
    %s175 = sphi 0, %s177
    %s178 = sphi 0, %s175
    %s179 = sphi 0, %s178
    %s195 = sphi 0, %s179
  $region4: #{diffusion_ts_forward.29} parent=0 // loop_header_branch
    %16 = sbr.rel (%p14) target = $region8
  $region5: #{diffusion_ts_forward.29} parent=0 // loop_body
    %s18 = ssub.s32 %s13, 1
    %s19 = ssub.s32 %s13, 2
    %s20 = sadd.s32 %s13, 1
    %s21 = ssub.s32 %s13, %s20
    %p22 = scmp.eq.s32.totalorder %s21, 0
    %s24 = sadd.s32 %s23, 1
    %s25 = scalar_select %p22, %s23, %s24
    %p28 = pneg %p22
    %p29 = scmp.eq.s32.totalorder %s13, 1
    %p30 = por %p28, %p29
    %p31 = scmp.ne.s32.totalorder %s23, %s26
    %p32 = scmp.eq.s32.totalorder %s13, 0
    %p33 = por %p31, %p32
    %p34 = scmp.ne.s32.totalorder %s23, %s26
    %p35 = scmp.eq.s32.totalorder %s18, 1
    %p36 = por %p34, %p35
    %p37 = scmp.ne.s32.totalorder %s26, %s27
    %p38 = scmp.eq.s32.totalorder %s18, 0
    %p39 = por %p37, %p38
    %p40 = scmp.ne.s32.totalorder %s26, %s27
    %p41 = scmp.eq.s32.totalorder %s19, 1
    %p42 = por %p40, %p41
    %p44 = scmp.ne.s32.totalorder %s27, %s43
    %p45 = scmp.eq.s32.totalorder %s19, 0
    %p46 = por %p44, %p45
    %s48 = sadd.s32 %s47, 1
    %p51 = scmp.eq.s32.totalorder %s13, 1
    %p52 = scmp.ne.s32.totalorder %s47, %s49
    %p53 = scmp.eq.s32.totalorder %s13, 0
    %p54 = por %p52, %p53
    %p55 = scmp.ne.s32.totalorder %s47, %s49
    %p56 = scmp.eq.s32.totalorder %s18, 1
    %p57 = por %p55, %p56
    %p58 = scmp.ne.s32.totalorder %s49, %s50
    %p59 = scmp.eq.s32.totalorder %s18, 0
    %p60 = por %p58, %p59
    %p61 = scmp.ne.s32.totalorder %s49, %s50
    %p62 = scmp.eq.s32.totalorder %s19, 1
    %p63 = por %p61, %p62
    %p65 = scmp.ne.s32.totalorder %s50, %s64
    %p66 = scmp.eq.s32.totalorder %s19, 0
    %p67 = por %p65, %p66
    %s69 = sadd.s32 %s68, 1
    %p72 = scmp.eq.s32.totalorder %s13, 1
    %p73 = scmp.ne.s32.totalorder %s68, %s70
    %p74 = scmp.eq.s32.totalorder %s13, 0
    %p75 = por %p73, %p74
    %p76 = scmp.ne.s32.totalorder %s68, %s70
    %p77 = scmp.eq.s32.totalorder %s18, 1
    %p78 = por %p76, %p77
    %p79 = scmp.ne.s32.totalorder %s70, %s71
    %p80 = scmp.eq.s32.totalorder %s18, 0
    %p81 = por %p79, %p80
    %p82 = scmp.ne.s32.totalorder %s70, %s71
    %p83 = scmp.eq.s32.totalorder %s19, 1
    %p84 = por %p82, %p83
    %p86 = scmp.ne.s32.totalorder %s71, %s85
    %p87 = scmp.eq.s32.totalorder %s19, 0
    %p88 = por %p86, %p87
    %s90 = sadd.s32 %s89, 1
    %p93 = scmp.eq.s32.totalorder %s13, 1
    %p94 = scmp.ne.s32.totalorder %s89, %s91
    %p95 = scmp.eq.s32.totalorder %s13, 0
    %p96 = por %p94, %p95
    %p97 = scmp.ne.s32.totalorder %s89, %s91
    %p98 = scmp.eq.s32.totalorder %s18, 1
    %p99 = por %p97, %p98
    %p100 = scmp.ne.s32.totalorder %s91, %s92
    %p101 = scmp.eq.s32.totalorder %s18, 0
    %p102 = por %p100, %p101
    %p103 = scmp.ne.s32.totalorder %s91, %s92
    %p104 = scmp.eq.s32.totalorder %s19, 1
    %p105 = por %p103, %p104
    %p107 = scmp.ne.s32.totalorder %s92, %s106
    %p108 = scmp.eq.s32.totalorder %s19, 0
    %p109 = por %p107, %p108
    %s111 = sadd.s32 %s110, 1
    %p114 = scmp.eq.s32.totalorder %s13, 1
    %p115 = scmp.ne.s32.totalorder %s110, %s112
    %p116 = scmp.eq.s32.totalorder %s13, 0
    %p117 = por %p115, %p116
    %p118 = scmp.ne.s32.totalorder %s110, %s112
    %p119 = scmp.eq.s32.totalorder %s18, 1
    %p120 = por %p118, %p119
    %p121 = scmp.ne.s32.totalorder %s112, %s113
    %p122 = scmp.eq.s32.totalorder %s18, 0
    %p123 = por %p121, %p122
    %p124 = scmp.ne.s32.totalorder %s112, %s113
    %p125 = scmp.eq.s32.totalorder %s19, 1
    %p126 = por %p124, %p125
    %p128 = scmp.ne.s32.totalorder %s113, %s127
    %p129 = scmp.eq.s32.totalorder %s19, 0
    %p130 = por %p128, %p129
    %s132 = sadd.s32 %s131, 1
    %p135 = scmp.eq.s32.totalorder %s13, 1
    %p136 = scmp.ne.s32.totalorder %s131, %s133
    %p137 = scmp.eq.s32.totalorder %s13, 0
    %p138 = por %p136, %p137
    %p139 = scmp.ne.s32.totalorder %s131, %s133
    %p140 = scmp.eq.s32.totalorder %s18, 1
    %p141 = por %p139, %p140
    %p142 = scmp.ne.s32.totalorder %s133, %s134
    %p143 = scmp.eq.s32.totalorder %s18, 0
    %p144 = por %p142, %p143
    %p145 = scmp.ne.s32.totalorder %s133, %s134
    %p146 = scmp.eq.s32.totalorder %s19, 1
    %p147 = por %p145, %p146
    %p149 = scmp.ne.s32.totalorder %s134, %s148
    %p150 = scmp.eq.s32.totalorder %s19, 0
    %p151 = por %p149, %p150
    %s153 = sadd.s32 %s152, 1
    %p156 = scmp.eq.s32.totalorder %s13, 1
    %p157 = scmp.ne.s32.totalorder %s152, %s154
    %p158 = scmp.eq.s32.totalorder %s13, 0
    %p159 = por %p157, %p158
    %p160 = scmp.ne.s32.totalorder %s152, %s154
    %p161 = scmp.eq.s32.totalorder %s18, 1
    %p162 = por %p160, %p161
    %p163 = scmp.ne.s32.totalorder %s154, %s155
    %p164 = scmp.eq.s32.totalorder %s18, 0
    %p165 = por %p163, %p164
    %p166 = scmp.ne.s32.totalorder %s154, %s155
    %p167 = scmp.eq.s32.totalorder %s19, 1
    %p168 = por %p166, %p167
    %p170 = scmp.ne.s32.totalorder %s155, %s169
    %p171 = scmp.eq.s32.totalorder %s19, 0
    %p172 = por %p170, %p171
    %s173 = ssub.s32 %s13, %s20
    %p174 = scmp.eq.s32.totalorder %s173, 0
    %s176 = sadd.s32 %s175, 1
    %s177 = scalar_select %p174, %s175, %s176
    %p180 = pneg %p174
    %p181 = scmp.eq.s32.totalorder %s13, 1
    %p182 = por %p180, %p181
    %p183 = scmp.ne.s32.totalorder %s175, %s178
    %p184 = scmp.eq.s32.totalorder %s13, 0
    %p185 = por %p183, %p184
    %p186 = scmp.ne.s32.totalorder %s175, %s178
    %p187 = scmp.eq.s32.totalorder %s18, 1
    %p188 = por %p186, %p187
    %p189 = scmp.ne.s32.totalorder %s178, %s179
    %p190 = scmp.eq.s32.totalorder %s18, 0
    %p191 = por %p189, %p190
    %p192 = scmp.ne.s32.totalorder %s178, %s179
    %p193 = scmp.eq.s32.totalorder %s19, 1
    %p194 = por %p192, %p193
    %p196 = scmp.ne.s32.totalorder %s179, %s195
    %p197 = scmp.eq.s32.totalorder %s19, 0
    %p198 = por %p196, %p197
    %p199 = scmp.le.s32.totalorder 1, %s13
    %p200 = scmp.lt.s32.totalorder %s13, 3
    %p201 = pnand %p199, %p200
    %p202 = pneg %p201
    // Predicated region
    $region9: #{diffusion_ts_forward.29} parent=5 // pred_check
      _
    $region10: #{diffusion_ts_forward.29} parent=5 // pred_check_branch
      %204 = sbr.rel (%p201) target = $region12
    $region11: #{diffusion_ts_forward.29} parent=5 // pred_region
      %s205 = ssub.s32 %s13, 1
      // Predicated region
      $region13: #{diffusion_ts_forward.29} parent=11 // pred_check
        %p206 = pneg %p60
      $region14: #{diffusion_ts_forward.29} parent=11 // pred_check_branch
        %208 = sbr.rel (%p206) target = $region16
      $region15: #{diffusion_ts_forward.29} parent=11 // pred_region
        _
      $region16: #{diffusion_ts_forward.29} parent=11 // pred_fallthru
        _
      // Predicated region
      $region17: #{diffusion_ts_forward.29} parent=11 // pred_check
        %p209 = pneg %p81
      $region18: #{diffusion_ts_forward.29} parent=11 // pred_check_branch
        %211 = sbr.rel (%p209) target = $region20
      $region19: #{diffusion_ts_forward.29} parent=11 // pred_region
        _
      $region20: #{diffusion_ts_forward.29} parent=11 // pred_fallthru
        _
      // Predicated region
      $region21: #{diffusion_ts_forward.29} parent=11 // pred_check
        %p212 = pneg %p102
      $region22: #{diffusion_ts_forward.29} parent=11 // pred_check_branch
        %214 = sbr.rel (%p212) target = $region24
      $region23: #{diffusion_ts_forward.29} parent=11 // pred_region
        _
      $region24: #{diffusion_ts_forward.29} parent=11 // pred_fallthru
        _
      // Predicated region
      $region25: #{diffusion_ts_forward.29} parent=11 // pred_check
        %p215 = pneg %p123
      $region26: #{diffusion_ts_forward.29} parent=11 // pred_check_branch
        %217 = sbr.rel (%p215) target = $region28
      $region27: #{diffusion_ts_forward.29} parent=11 // pred_region
        _
      $region28: #{diffusion_ts_forward.29} parent=11 // pred_fallthru
        _
      // Predicated region
      $region29: #{diffusion_ts_forward.29} parent=11 // pred_check
        %p218 = pneg %p144
      $region30: #{diffusion_ts_forward.29} parent=11 // pred_check_branch
        %220 = sbr.rel (%p218) target = $region32
      $region31: #{diffusion_ts_forward.29} parent=11 // pred_region
        _
      $region32: #{diffusion_ts_forward.29} parent=11 // pred_fallthru
        _
      // Predicated region
      $region33: #{diffusion_ts_forward.29} parent=11 // pred_check
        %p221 = pneg %p165
      $region34: #{diffusion_ts_forward.29} parent=11 // pred_check_branch
        %223 = sbr.rel (%p221) target = $region36
      $region35: #{diffusion_ts_forward.29} parent=11 // pred_region
        _
      $region36: #{diffusion_ts_forward.29} parent=11 // pred_fallthru
        _
    $region12: #{diffusion_ts_forward.29} parent=5 // pred_fallthru
      _
    %p224 = scmp.lt.s32.totalorder %s13, 2
    // Predicated region
    $region37: #{diffusion_ts_forward.29} parent=5 // pred_check
      %p225 = pneg %p224
    $region38: #{diffusion_ts_forward.29} parent=5 // pred_check_branch
      %227 = sbr.rel (%p225) target = $region40
    $region39: #{diffusion_ts_forward.29} parent=5 // pred_region
      // Predicated region
      $region41: #{diffusion_ts_forward.29} parent=39 // pred_check
        %p228 = pneg %p33
      $region42: #{diffusion_ts_forward.29} parent=39 // pred_check_branch
        %230 = sbr.rel (%p228) target = $region44
      $region43: #{diffusion_ts_forward.29} parent=39 // pred_region
        %p231 = scmp.lt.s32.totalorder %s13, 1
        %s232 = scalar_select %p231, %s13, 1
        %s233 = smul.addr %s232, 2
        %s234 = smul.addr %s233, 8
        %s235 = scalar_lea.vmem %s0, %s234
      $region44: #{diffusion_ts_forward.29} parent=39 // pred_fallthru
        _
    $region40: #{diffusion_ts_forward.29} parent=5 // pred_fallthru
      _
    %p236 = scmp.le.s32.totalorder 1, %s13
    %p237 = scmp.lt.s32.totalorder %s13, 3
    %p238 = pnand %p236, %p237
    %p239 = pneg %p238
    // Predicated region
    $region45: #{diffusion_ts_forward.29} parent=5 // pred_check
      _
    $region46: #{diffusion_ts_forward.29} parent=5 // pred_check_branch
      %241 = sbr.rel (%p238) target = $region48
    $region47: #{diffusion_ts_forward.29} parent=5 // pred_region
      %s242 = ssub.s32 %s13, 1
      %p243 = scmp.lt.s32.totalorder %s18, 1
      %s244 = scalar_select %p243, %s18, 1
      %s245 = smul.addr %s244, 2
      %s246 = smul.addr %s245, 8
      %s247 = scalar_lea.vmem %s0, %s246
      %p248 = pneg %p39
      %p249 = pneg %p36
      %p250 = pneg %p60
      %p251 = pneg %p57
      %p252 = pneg %p81
      %p253 = pneg %p78
      %p254 = pneg %p102
      %p255 = pneg %p99
      %p256 = pneg %p123
      %p257 = pneg %p120
      %p258 = pneg %p144
      %p259 = pneg %p141
      %p260 = pneg %p165
      %p261 = pneg %p162
      %p262 = pneg %p191
      %p263 = pneg %p188
      %p264 = scmp.lt.s32.totalorder %s18, 1
      %s265 = scalar_select %p264, %s18, 1
      %s266 = smul.addr %s265, 2
      %s267 = smul.addr %s266, 8
      %s268 = scalar_lea.vmem %s7, %s267
      %p269 = scmp.lt.s32.totalorder %s18, 1
      %s270 = scalar_select %p269, %s18, 1
      %s271 = smul.addr %s270, 2
      %s272 = smul.addr %s271, 8
      %s273 = scalar_lea.vmem %s0, %s272
      %p274 = scmp.lt.s32.totalorder %s18, 1
      %s275 = scalar_select %p274, %s18, 1
      %s276 = smul.addr %s275, 2
      %s277 = smul.addr %s276, 8
      %s278 = scalar_lea.vmem %s7, %s277
      %v280 = vld [vmem:[%s273] sm:$0xff]
      %v281 = vld [vmem:[%s273 + $0x8] sm:$0xff]
      %v282 = vld [vmem:[%s1] sm:$0x1]
      %v283 = vld [vmem:[%s2] sm:$0x1]
      %vm284 = vcmask 261120
      %v285 = vsel %vm284, %v280, 0.0
      %286 = vadd.xlane.f32.xlu0 %v285
      %v287 = vpop.xlane.xlu0 %286
      %v288 = vsel %vm284, %v281, 0.0
      %289 = vadd.xlane.f32.xlu0 %v288
      %v290 = vpop.xlane.xlu0 %289
      %v291 = vrcp.pop 32.0
      %v292 = vmul.f32 32.0, %v291
      %v293 = vsub.f32 1.0, %v292
      %v294 = vmul.f32 %v291, %v293
      %v295 = vadd.f32 %v291, %v294
      %vm296 = vweird.f32 %v291
      %v297 = vsel %vm296, %v291, %v295
      %v298 = vmul.f32 %v287, %v297
      %v299 = vmul.f32 %v290, %v297
      %v300 = vsub.f32 %v280, %v298
      %v301 = vsub.f32 %v281, %v299
      %v302 = vmul.f32 %v300, %v300
      %v303 = vmul.f32 %v301, %v301
      %v304 = vsel %vm284, %v302, 0.0
      %305 = vadd.xlane.f32.xlu0 %v304
      %v306 = vpop.xlane.xlu0 %305
      %v307 = vsel %vm284, %v303, 0.0
      %308 = vadd.xlane.f32.xlu0 %v307
      %v309 = vpop.xlane.xlu0 %308
      %v310 = vmul.f32 %v306, %v297
      %v311 = vmul.f32 %v309, %v297
      %v312 = vadd.f32 %v310, 1e-05
      %v313 = vadd.f32 %v311, 1e-05
      %v314 = vrsqrt.pop %v312
      %v315 = vmul.f32 %v314, %v312
      %v316 = vmul.f32 %v315, %v314
      %v317 = vmul.f32 0.5, %v316
      %v318 = vsub.f32 1.5, %v317
      %v319 = vmul.f32 %v314, %v318
      %vm320 = vweird.f32 %v312
      %vm321 = vweird.f32 %v314
      %vm322 = vmor %vm320, %vm321
      %v323 = vsel %vm322, %v314, %v319
      %v324 = vrsqrt.pop %v313
      %v325 = vmul.f32 %v324, %v313
      %v326 = vmul.f32 %v325, %v324
      %v327 = vmul.f32 0.5, %v326
      %v328 = vsub.f32 1.5, %v327
      %v329 = vmul.f32 %v324, %v328
      %vm330 = vweird.f32 %v313
      %vm331 = vweird.f32 %v324
      %vm332 = vmor %vm330, %vm331
      %v333 = vsel %vm332, %v324, %v329
      %v334 = vmul.f32 %v300, %v323
      %v335 = vmul.f32 %v301, %v333
      %v337 = vperm.slane %v282, 0
      %v339 = vmul.f32 %v334, %v337
      %v340 = vmul.f32 %v335, %v337
      %v342 = vperm.slane %v283, 0
      %v344 = vadd.f32 %v339, %v342
      %v345 = vadd.f32 %v340, %v342
      %v346 = vld [vmem:[%s3] sm:$0xff]
      %v347 = vld [vmem:[%s3 + $0x8] sm:$0xff]
      %v348 = vld [vmem:[%s3 + $0x10] sm:$0xff]
      %v349 = vld [vmem:[%s3 + $0x18] sm:$0xff]
      %v350 = vld [vmem:[%s4] sm:$0x1]
      %v351 = vpack.c.bf16 %v345, %v344
      %v352 = vpack.c.bf16 %v347, %v346
      %v353 = vpack.c.bf16 %v349, %v348
      %v355 = vperm.slane %v350, 0
      %v358 = vsel %vm284, %v351, 0
      %360 = vmatpush.bf16.msra.mxu0 0
      %361 = vmatpush.bf16.msra.mxu0 0
      %362 = vmatpush.bf16.msra.mxu0 0
      %363 = vmatpush.bf16.msra.mxu0 0
      %364 = vmatpush.bf16.msra.mxu0 0
      %365 = vmatpush.bf16.msra.mxu0 0
      %366 = vmatpush.bf16.msra.mxu0 %v353
      %367 = vmatpush.bf16.msra.mxu0 %v352
      %368 = vmatmul.bf16.gmra.mxu0 %v358
      %v369 = vpop.f32.mrf.mxu0
      %v370 = vadd.f32 %v355, %v369
      %v371 = vpop.f32.mrf.mxu0
      %v372 = vadd.f32 %v355, %v371
      %373 = vdwg.mxu0
      %v374 = vpack.c.bf16 %v372, %v370
      %376 = vrot.lane.b32.xlu0 %v374, 96
      %v377 = vpop.permute.xlu0 %376
      %vm378 = vcmask 64512
      %v380 = vsel %vm378, %v374, 0
      %v383 = vsel %vm378, %v377, 0
      %385 = vmatpush.bf16.xpose.msra.mxu0 0
      %386 = vmatpush.bf16.xpose.msra.mxu0 0
      %387 = vmatpush.bf16.xpose.msra.mxu0 0
      %388 = vmatpush.bf16.xpose.msra.mxu0 0
      %389 = vmatpush.bf16.xpose.msra.mxu0 0
      %390 = vmatpush.bf16.xpose.msra.mxu0 0
      %391 = vmatpush.bf16.xpose.msra.mxu0 0
      %392 = vmatpush.bf16.xpose.msra.mxu0 %v383
      %393 = vmatmul.bf16.gmra.mxu0 %v380
      %v394 = vpop.f32.mrf.mxu0
      %v395 = vadd.f32 0.0, %v394
      %v396 = vpop.f32.mrf.mxu0
      %v397 = vadd.f32 0.0, %v396
      %398 = vdwg.mxu0
      %v399 = vmul.f32 %v395, 0.35355338
      %v400 = vmul.f32 %v397, 0.35355338
      %vm401 = vcmask 130048
      %v402 = vsel %vm401, %v399, -inf
      %403 = vmax.xlane.f32.xlu0 %v402
      %v404 = vpop.xlane.xlu0 %403
      %v405 = vsel %vm401, %v400, -inf
      %406 = vmax.xlane.f32.xlu0 %v405
      %v407 = vpop.xlane.xlu0 %406
      %v408 = vsub.f32 %v399, %v404
      %v409 = vsub.f32 %v400, %v407
      %v410 = vmul.f32 %v408, 1.442695
      %v411 = vpow.pop %v410
      %v412 = vmul.f32 %v409, 1.442695
      %v413 = vpow.pop %v412
      %v414 = vsel %vm401, %v411, 0.0
      %415 = vadd.xlane.f32.xlu0 %v414
      %v416 = vpop.xlane.xlu0 %415
      %v417 = vsel %vm401, %v413, 0.0
      %418 = vadd.xlane.f32.xlu0 %v417
      %v419 = vpop.xlane.xlu0 %418
      %v420 = vrcp.pop %v416
      %v421 = vrcp.pop %v419
      %v422 = vmul.f32 %v411, %v420
      %v423 = vmul.f32 %v413, %v421
      %v424 = vpack.c.bf16 %v423, %v422
      %425 = vrot.lane.b32.xlu0 %v374, 64
      %v426 = vpop.permute.xlu0 %425
      %v429 = vsel %vm401, %v424, 0
      %431 = vmatpush.bf16.msra.mxu0 0
      %432 = vmatpush.bf16.msra.mxu0 0
      %433 = vmatpush.bf16.msra.mxu0 0
      %434 = vmatpush.bf16.msra.mxu0 0
      %435 = vmatpush.bf16.msra.mxu0 0
      %436 = vmatpush.bf16.msra.mxu0 0
      %437 = vmatpush.bf16.msra.mxu0 0
      %438 = vmatpush.bf16.msra.mxu0 %v426
      %439 = vmatmul.bf16.gmra.mxu0 %v429
      %v440 = vpop.f32.mrf.mxu0
      %v441 = vadd.f32 0.0, %v440
      %v442 = vpop.f32.mrf.mxu0
      %v443 = vadd.f32 0.0, %v442
      %444 = vdwg.mxu0
      %445 = vrot.lane.b32.xlu0 %v374, 120
      %v446 = vpop.permute.xlu0 %445
      %447 = vrot.lane.b32.xlu0 %v374, 88
      %v448 = vpop.permute.xlu0 %447
      %v450 = vsel %vm378, %v446, 0
      %v453 = vsel %vm378, %v448, 0
      %455 = vmatpush.bf16.xpose.msra.mxu0 0
      %456 = vmatpush.bf16.xpose.msra.mxu0 0
      %457 = vmatpush.bf16.xpose.msra.mxu0 0
      %458 = vmatpush.bf16.xpose.msra.mxu0 0
      %459 = vmatpush.bf16.xpose.msra.mxu0 0
      %460 = vmatpush.bf16.xpose.msra.mxu0 0
      %461 = vmatpush.bf16.xpose.msra.mxu0 0
      %462 = vmatpush.bf16.xpose.msra.mxu0 %v453
      %463 = vmatmul.bf16.gmra.mxu0 %v450
      %v464 = vpop.f32.mrf.mxu0
      %v465 = vadd.f32 0.0, %v464
      %v466 = vpop.f32.mrf.mxu0
      %v467 = vadd.f32 0.0, %v466
      %468 = vdwg.mxu0
      %v469 = vmul.f32 %v465, 0.35355338
      %v470 = vmul.f32 %v467, 0.35355338
      %v471 = vsel %vm401, %v469, -inf
      %472 = vmax.xlane.f32.xlu0 %v471
      %v473 = vpop.xlane.xlu0 %472
      %v474 = vsel %vm401, %v470, -inf
      %475 = vmax.xlane.f32.xlu0 %v474
      %v476 = vpop.xlane.xlu0 %475
      %v477 = vsub.f32 %v469, %v473
      %v478 = vsub.f32 %v470, %v476
      %v479 = vmul.f32 %v477, 1.442695
      %v480 = vpow.pop %v479
      %v481 = vmul.f32 %v478, 1.442695
      %v482 = vpow.pop %v481
      %v483 = vsel %vm401, %v480, 0.0
      %484 = vadd.xlane.f32.xlu0 %v483
      %v485 = vpop.xlane.xlu0 %484
      %v486 = vsel %vm401, %v482, 0.0
      %487 = vadd.xlane.f32.xlu0 %v486
      %v488 = vpop.xlane.xlu0 %487
      %v489 = vrcp.pop %v485
      %v490 = vrcp.pop %v488
      %v491 = vmul.f32 %v480, %v489
      %v492 = vmul.f32 %v482, %v490
      %v493 = vpack.c.bf16 %v492, %v491
      %494 = vrot.lane.b32.xlu0 %v374, 56
      %v495 = vpop.permute.xlu0 %494
      %v498 = vsel %vm401, %v493, 0
      %500 = vmatpush.bf16.msra.mxu0 0
      %501 = vmatpush.bf16.msra.mxu0 0
      %502 = vmatpush.bf16.msra.mxu0 0
      %503 = vmatpush.bf16.msra.mxu0 0
      %504 = vmatpush.bf16.msra.mxu0 0
      %505 = vmatpush.bf16.msra.mxu0 0
      %506 = vmatpush.bf16.msra.mxu0 0
      %507 = vmatpush.bf16.msra.mxu0 %v495
      %508 = vmatmul.bf16.gmra.mxu0 %v498
      %v509 = vpop.f32.mrf.mxu0
      %v510 = vadd.f32 0.0, %v509
      %v511 = vpop.f32.mrf.mxu0
      %v512 = vadd.f32 0.0, %v511
      %513 = vdwg.mxu0
      %514 = vrot.lane.b32.xlu0 %v374, 112
      %v515 = vpop.permute.xlu0 %514
      %516 = vrot.lane.b32.xlu0 %v374, 80
      %v517 = vpop.permute.xlu0 %516
      %v519 = vsel %vm378, %v515, 0
      %v522 = vsel %vm378, %v517, 0
      %524 = vmatpush.bf16.xpose.msra.mxu0 0
      %525 = vmatpush.bf16.xpose.msra.mxu0 0
      %526 = vmatpush.bf16.xpose.msra.mxu0 0
      %527 = vmatpush.bf16.xpose.msra.mxu0 0
      %528 = vmatpush.bf16.xpose.msra.mxu0 0
      %529 = vmatpush.bf16.xpose.msra.mxu0 0
      %530 = vmatpush.bf16.xpose.msra.mxu0 0
      %531 = vmatpush.bf16.xpose.msra.mxu0 %v522
      %532 = vmatmul.bf16.gmra.mxu0 %v519
      %v533 = vpop.f32.mrf.mxu0
      %v534 = vadd.f32 0.0, %v533
      %v535 = vpop.f32.mrf.mxu0
      %v536 = vadd.f32 0.0, %v535
      %537 = vdwg.mxu0
      %v538 = vmul.f32 %v534, 0.35355338
      %v539 = vmul.f32 %v536, 0.35355338
      %v540 = vsel %vm401, %v538, -inf
      %541 = vmax.xlane.f32.xlu0 %v540
      %v542 = vpop.xlane.xlu0 %541
      %v543 = vsel %vm401, %v539, -inf
      %544 = vmax.xlane.f32.xlu0 %v543
      %v545 = vpop.xlane.xlu0 %544
      %v546 = vsub.f32 %v538, %v542
      %v547 = vsub.f32 %v539, %v545
      %v548 = vmul.f32 %v546, 1.442695
      %v549 = vpow.pop %v548
      %v550 = vmul.f32 %v547, 1.442695
      %v551 = vpow.pop %v550
      %v552 = vsel %vm401, %v549, 0.0
      %553 = vadd.xlane.f32.xlu0 %v552
      %v554 = vpop.xlane.xlu0 %553
      %v555 = vsel %vm401, %v551, 0.0
      %556 = vadd.xlane.f32.xlu0 %v555
      %v557 = vpop.xlane.xlu0 %556
      %v558 = vrcp.pop %v554
      %v559 = vrcp.pop %v557
      %v560 = vmul.f32 %v549, %v558
      %v561 = vmul.f32 %v551, %v559
      %v562 = vpack.c.bf16 %v561, %v560
      %563 = vrot.lane.b32.xlu0 %v374, 48
      %v564 = vpop.permute.xlu0 %563
      %v567 = vsel %vm401, %v562, 0
      %569 = vmatpush.bf16.msra.mxu0 0
      %570 = vmatpush.bf16.msra.mxu0 0
      %571 = vmatpush.bf16.msra.mxu0 0
      %572 = vmatpush.bf16.msra.mxu0 0
      %573 = vmatpush.bf16.msra.mxu0 0
      %574 = vmatpush.bf16.msra.mxu0 0
      %575 = vmatpush.bf16.msra.mxu0 0
      %576 = vmatpush.bf16.msra.mxu0 %v564
      %577 = vmatmul.bf16.gmra.mxu0 %v567
      %v578 = vpop.f32.mrf.mxu0
      %v579 = vadd.f32 0.0, %v578
      %v580 = vpop.f32.mrf.mxu0
      %v581 = vadd.f32 0.0, %v580
      %582 = vdwg.mxu0
      %583 = vrot.lane.b32.xlu0 %v374, 104
      %v584 = vpop.permute.xlu0 %583
      %585 = vrot.lane.b32.xlu0 %v374, 72
      %v586 = vpop.permute.xlu0 %585
      %v588 = vsel %vm378, %v584, 0
      %v591 = vsel %vm378, %v586, 0
      %593 = vmatpush.bf16.xpose.msra.mxu0 0
      %594 = vmatpush.bf16.xpose.msra.mxu0 0
      %595 = vmatpush.bf16.xpose.msra.mxu0 0
      %596 = vmatpush.bf16.xpose.msra.mxu0 0
      %597 = vmatpush.bf16.xpose.msra.mxu0 0
      %598 = vmatpush.bf16.xpose.msra.mxu0 0
      %599 = vmatpush.bf16.xpose.msra.mxu0 0
      %600 = vmatpush.bf16.xpose.msra.mxu0 %v591
      %601 = vmatmul.bf16.gmra.mxu0 %v588
      %v602 = vpop.f32.mrf.mxu0
      %v603 = vadd.f32 0.0, %v602
      %v604 = vpop.f32.mrf.mxu0
      %v605 = vadd.f32 0.0, %v604
      %606 = vdwg.mxu0
      %v607 = vmul.f32 %v603, 0.35355338
      %v608 = vmul.f32 %v605, 0.35355338
      %v609 = vsel %vm401, %v607, -inf
      %610 = vmax.xlane.f32.xlu0 %v609
      %v611 = vpop.xlane.xlu0 %610
      %v612 = vsel %vm401, %v608, -inf
      %613 = vmax.xlane.f32.xlu0 %v612
      %v614 = vpop.xlane.xlu0 %613
      %v615 = vsub.f32 %v607, %v611
      %v616 = vsub.f32 %v608, %v614
      %v617 = vmul.f32 %v615, 1.442695
      %v618 = vpow.pop %v617
      %v619 = vmul.f32 %v616, 1.442695
      %v620 = vpow.pop %v619
      %v621 = vsel %vm401, %v618, 0.0
      %622 = vadd.xlane.f32.xlu0 %v621
      %v623 = vpop.xlane.xlu0 %622
      %v624 = vsel %vm401, %v620, 0.0
      %625 = vadd.xlane.f32.xlu0 %v624
      %v626 = vpop.xlane.xlu0 %625
      %v627 = vrcp.pop %v623
      %v628 = vrcp.pop %v626
      %v629 = vmul.f32 %v618, %v627
      %v630 = vmul.f32 %v620, %v628
      %v631 = vpack.c.bf16 %v630, %v629
      %632 = vrot.lane.b32.xlu0 %v374, 40
      %v633 = vpop.permute.xlu0 %632
      %v636 = vsel %vm401, %v631, 0
      %638 = vmatpush.bf16.msra.mxu0 0
      %639 = vmatpush.bf16.msra.mxu0 0
      %640 = vmatpush.bf16.msra.mxu0 0
      %641 = vmatpush.bf16.msra.mxu0 0
      %642 = vmatpush.bf16.msra.mxu0 0
      %643 = vmatpush.bf16.msra.mxu0 0
      %644 = vmatpush.bf16.msra.mxu0 0
      %645 = vmatpush.bf16.msra.mxu0 %v633
      %646 = vmatmul.bf16.gmra.mxu0 %v636
      %v647 = vpop.f32.mrf.mxu0
      %v648 = vadd.f32 0.0, %v647
      %v649 = vpop.f32.mrf.mxu0
      %v650 = vadd.f32 0.0, %v649
      %651 = vdwg.mxu0
      %654 = vrot.lane.b32.xlu0 %v510, 8
      %v655 = vpop.permute.xlu0 %654
      %656 = vrot.lane.b32.xlu0 %v512, 8
      %v657 = vpop.permute.xlu0 %656
      %662 = vrot.lane.b32.xlu0 %v579, 16
      %v663 = vpop.permute.xlu0 %662
      %664 = vrot.lane.b32.xlu0 %v581, 16
      %v665 = vpop.permute.xlu0 %664
      %670 = vrot.lane.b32.xlu0 %v648, 24
      %v671 = vpop.permute.xlu0 %670
      %672 = vrot.lane.b32.xlu0 %v650, 24
      %v673 = vpop.permute.xlu0 %672
      %v676 = vsel %vm378, %v441, %v655
      %v677 = vsel %vm378, %v443, %v657
      %v678 = vsel %vm401, %v676, %v663
      %v679 = vsel %vm401, %v677, %v665
      %vm680 = vcmask 195584
      %v681 = vsel %vm680, %v678, %v671
      %v682 = vsel %vm680, %v679, %v673
      %v683 = vld [vmem:[%s5] sm:$0xff]
      %v684 = vld [vmem:[%s5 + $0x8] sm:$0xff]
      %v685 = vld [vmem:[%s5 + $0x10] sm:$0xff]
      %v686 = vld [vmem:[%s5 + $0x18] sm:$0xff]
      %v687 = vld [vmem:[%s6] sm:$0x1]
      %v688 = vpack.c.bf16 %v682, %v681
      %v689 = vpack.c.bf16 %v684, %v683
      %v690 = vpack.c.bf16 %v686, %v685
      %v692 = vperm.slane %v687, 0
      %v695 = vsel %vm284, %v688, 0
      %697 = vmatpush.bf16.msra.mxu0 0
      %698 = vmatpush.bf16.msra.mxu0 0
      %699 = vmatpush.bf16.msra.mxu0 0
      %700 = vmatpush.bf16.msra.mxu0 0
      %701 = vmatpush.bf16.msra.mxu0 0
      %702 = vmatpush.bf16.msra.mxu0 0
      %703 = vmatpush.bf16.msra.mxu0 %v690
      %704 = vmatpush.bf16.msra.mxu0 %v689
      %705 = vmatmul.bf16.gmra.mxu0 %v695
      %v706 = vpop.f32.mrf.mxu0
      %v707 = vadd.f32 %v692, %v706
      %v708 = vpop.f32.mrf.mxu0
      %v709 = vadd.f32 %v692, %v708
      %710 = vdwg.mxu0
      %v711 = vadd.f32 %v280, %v707
      %v712 = vadd.f32 %v281, %v709
      %713 = vst.msk [vmem:[%s278] sm:$0xff] %vm284, %v711
      %714 = vst.msk [vmem:[%s278 + $0x8] sm:$0xff] %vm284, %v712
      %p715 = scmp.lt.s32.totalorder %s18, 1
      %s716 = scalar_select %p715, %s18, 1
      %s717 = smul.addr %s716, 2
      %s718 = smul.addr %s717, 8
      %s719 = scalar_lea.vmem %s7, %s718
      // Predicated region
      $region49: #{diffusion_ts_forward.29} parent=47 // pred_check
        %p720 = pneg %p188
      $region50: #{diffusion_ts_forward.29} parent=47 // pred_check_branch
        %722 = sbr.rel (%p720) target = $region52
      $region51: #{diffusion_ts_forward.29} parent=47 // pred_region
        _
      $region52: #{diffusion_ts_forward.29} parent=47 // pred_fallthru
        _
    $region48: #{diffusion_ts_forward.29} parent=5 // pred_fallthru
      _
    %p723 = scmp.le.s32.totalorder 2, %s13
    // Predicated region
    $region53: #{diffusion_ts_forward.29} parent=5 // pred_check
      %p724 = pneg %p723
    $region54: #{diffusion_ts_forward.29} parent=5 // pred_check_branch
      %726 = sbr.rel (%p724) target = $region56
    $region55: #{diffusion_ts_forward.29} parent=5 // pred_region
      %s727 = ssub.s32 %s13, 2
      // Predicated region
      $region57: #{diffusion_ts_forward.29} parent=55 // pred_check
        %p728 = pneg %p194
      $region58: #{diffusion_ts_forward.29} parent=55 // pred_check_branch
        %730 = sbr.rel (%p728) target = $region60
      $region59: #{diffusion_ts_forward.29} parent=55 // pred_region
        %p731 = scmp.lt.s32.totalorder %s19, 1
        %s732 = scalar_select %p731, %s19, 1
        %s733 = smul.addr %s732, 2
        %s734 = smul.addr %s733, 8
        %s735 = scalar_lea.vmem %s7, %s734
      $region60: #{diffusion_ts_forward.29} parent=55 // pred_fallthru
        _
    $region56: #{diffusion_ts_forward.29} parent=5 // pred_fallthru
      _
  $region6: #{diffusion_ts_forward.29} parent=0 // loop_footer
    %s17 = sadd.s32 1, %s13
  $region7: #{diffusion_ts_forward.29} parent=0 // loop_footer_branch
    %12 = sbr.rel target = $region3
  $region8: #{diffusion_ts_forward.29} parent=0 // loop_exit
    _

// kernel: diffusion_ts_forward.31
$region0: #{diffusion_ts_forward.31}
  #allocation0 [shape = 'u32[]', space=smem, size = 0x4, offset = 0x4, fixed_abs, tag = 'smem constant byte address 0x4 - core index']
  #allocation1 [shape = 'u32[72,128]{1,0:T(1,128)}', space=vmem, size = 0x9000, scoped, tag = 'internal scratch']
  %s0 = inlined_call_operand.vmem [shape: f32[2,16,32], index: 0, kind: input, shape index: {}]
  %s1 = inlined_call_operand.vmem [shape: f32[2,16,32], index: 1, kind: input, shape index: {}]
  %s2 = inlined_call_operand.vmem [shape: f32[1,32], index: 2, kind: input, shape index: {}]
  %s3 = inlined_call_operand.vmem [shape: f32[1,32], index: 3, kind: input, shape index: {}]
  %s4 = inlined_call_operand.vmem [shape: f32[32,32], index: 4, kind: input, shape index: {}]
  %s5 = inlined_call_operand.vmem [shape: f32[1,32], index: 5, kind: input, shape index: {}]
  %s6 = inlined_call_operand.vmem [shape: f32[32,64], index: 6, kind: input, shape index: {}]
  %s7 = inlined_call_operand.vmem [shape: f32[1,64], index: 7, kind: input, shape index: {}]
  %s8 = inlined_call_operand.vmem [shape: f32[32,32], index: 8, kind: input, shape index: {}]
  %s9 = inlined_call_operand.vmem [shape: f32[1,32], index: 9, kind: input, shape index: {}]
  %s10 = inlined_call_operand.vmem [shape: f32[2,16,32], index: 10, kind: output, shape index: {}]
  %s11 = sld [smem:[#allocation0]]
  $region73: #{diffusion_ts_forward.31} parent=0
    _
  %s13 = ssub.s32 1, %s11
  %s14 = scalar_select 0, %s13, %s11
  loop: start=0, step=1, limit=4
  $region2: #{diffusion_ts_forward.31} parent=0 // loop_pre_header
    _
  $region3: #{diffusion_ts_forward.31} parent=0 // loop_header
    %s16 = sphi 0, %s20
    %p17 = scmp.ge.s32.totalorder %s16, 4
    %s26 = sphi 0, %s28
    %s29 = sphi 0, %s26
    %s30 = sphi 0, %s29
    %s46 = sphi 0, %s30
    %s52 = sphi 0, %s54
    %s55 = sphi 0, %s52
    %s56 = sphi 0, %s55
    %s72 = sphi 0, %s56
    %s76 = sphi 0, %s76
    %s78 = sphi 0, %s76
    %s79 = sphi 0, %s78
    %s93 = sphi 0, %s79
    %s97 = sphi 0, %s97
    %s99 = sphi 0, %s97
    %s100 = sphi 0, %s99
    %s114 = sphi 0, %s100
    %s118 = sphi 0, %s118
    %s120 = sphi 0, %s118
    %s121 = sphi 0, %s120
    %s135 = sphi 0, %s121
    %s139 = sphi 0, %s139
    %s141 = sphi 0, %s139
    %s142 = sphi 0, %s141
    %s156 = sphi 0, %s142
    %s160 = sphi 0, %s160
    %s162 = sphi 0, %s160
    %s163 = sphi 0, %s162
    %s177 = sphi 0, %s163
    %s181 = sphi 0, %s181
    %s183 = sphi 0, %s181
    %s184 = sphi 0, %s183
    %s198 = sphi 0, %s184
    %s202 = sphi 0, %s202
    %s204 = sphi 0, %s202
    %s205 = sphi 0, %s204
    %s219 = sphi 0, %s205
    %s223 = sphi 0, %s223
    %s225 = sphi 0, %s223
    %s226 = sphi 0, %s225
    %s240 = sphi 0, %s226
    %s246 = sphi 0, %s248
    %s249 = sphi 0, %s246
    %s250 = sphi 0, %s249
    %s266 = sphi 0, %s250
  $region4: #{diffusion_ts_forward.31} parent=0 // loop_header_branch
    %19 = sbr.rel (%p17) target = $region8
  $region5: #{diffusion_ts_forward.31} parent=0 // loop_body
    %s21 = ssub.s32 %s16, 1
    %s22 = ssub.s32 %s16, 2
    %s23 = sadd.s32 %s16, 1
    %s24 = ssub.s32 %s16, %s23
    %p25 = scmp.eq.s32.totalorder %s24, 0
    %s27 = sadd.s32 %s26, 1
    %s28 = scalar_select %p25, %s26, %s27
    %p31 = pneg %p25
    %p32 = scmp.eq.s32.totalorder %s16, 1
    %p33 = por %p31, %p32
    %p34 = scmp.ne.s32.totalorder %s26, %s29
    %p35 = scmp.eq.s32.totalorder %s16, 0
    %p36 = por %p34, %p35
    %p37 = scmp.ne.s32.totalorder %s26, %s29
    %p38 = scmp.eq.s32.totalorder %s21, 1
    %p39 = por %p37, %p38
    %p40 = scmp.ne.s32.totalorder %s29, %s30
    %p41 = scmp.eq.s32.totalorder %s21, 0
    %p42 = por %p40, %p41
    %p43 = scmp.ne.s32.totalorder %s29, %s30
    %p44 = scmp.eq.s32.totalorder %s22, 1
    %p45 = por %p43, %p44
    %p47 = scmp.ne.s32.totalorder %s30, %s46
    %p48 = scmp.eq.s32.totalorder %s22, 0
    %p49 = por %p47, %p48
    %s50 = ssub.s32 %s16, %s23
    %p51 = scmp.eq.s32.totalorder %s50, 0
    %s53 = sadd.s32 %s52, 1
    %s54 = scalar_select %p51, %s52, %s53
    %p57 = pneg %p51
    %p58 = scmp.eq.s32.totalorder %s16, 1
    %p59 = por %p57, %p58
    %p60 = scmp.ne.s32.totalorder %s52, %s55
    %p61 = scmp.eq.s32.totalorder %s16, 0
    %p62 = por %p60, %p61
    %p63 = scmp.ne.s32.totalorder %s52, %s55
    %p64 = scmp.eq.s32.totalorder %s21, 1
    %p65 = por %p63, %p64
    %p66 = scmp.ne.s32.totalorder %s55, %s56
    %p67 = scmp.eq.s32.totalorder %s21, 0
    %p68 = por %p66, %p67
    %p69 = scmp.ne.s32.totalorder %s55, %s56
    %p70 = scmp.eq.s32.totalorder %s22, 1
    %p71 = por %p69, %p70
    %p73 = scmp.ne.s32.totalorder %s56, %s72
    %p74 = scmp.eq.s32.totalorder %s22, 0
    %p75 = por %p73, %p74
    %s77 = sadd.s32 %s76, 1
    %p80 = scmp.eq.s32.totalorder %s16, 1
    %p81 = scmp.ne.s32.totalorder %s76, %s78
    %p82 = scmp.eq.s32.totalorder %s16, 0
    %p83 = por %p81, %p82
    %p84 = scmp.ne.s32.totalorder %s76, %s78
    %p85 = scmp.eq.s32.totalorder %s21, 1
    %p86 = por %p84, %p85
    %p87 = scmp.ne.s32.totalorder %s78, %s79
    %p88 = scmp.eq.s32.totalorder %s21, 0
    %p89 = por %p87, %p88
    %p90 = scmp.ne.s32.totalorder %s78, %s79
    %p91 = scmp.eq.s32.totalorder %s22, 1
    %p92 = por %p90, %p91
    %p94 = scmp.ne.s32.totalorder %s79, %s93
    %p95 = scmp.eq.s32.totalorder %s22, 0
    %p96 = por %p94, %p95
    %s98 = sadd.s32 %s97, 1
    %p101 = scmp.eq.s32.totalorder %s16, 1
    %p102 = scmp.ne.s32.totalorder %s97, %s99
    %p103 = scmp.eq.s32.totalorder %s16, 0
    %p104 = por %p102, %p103
    %p105 = scmp.ne.s32.totalorder %s97, %s99
    %p106 = scmp.eq.s32.totalorder %s21, 1
    %p107 = por %p105, %p106
    %p108 = scmp.ne.s32.totalorder %s99, %s100
    %p109 = scmp.eq.s32.totalorder %s21, 0
    %p110 = por %p108, %p109
    %p111 = scmp.ne.s32.totalorder %s99, %s100
    %p112 = scmp.eq.s32.totalorder %s22, 1
    %p113 = por %p111, %p112
    %p115 = scmp.ne.s32.totalorder %s100, %s114
    %p116 = scmp.eq.s32.totalorder %s22, 0
    %p117 = por %p115, %p116
    %s119 = sadd.s32 %s118, 1
    %p122 = scmp.eq.s32.totalorder %s16, 1
    %p123 = scmp.ne.s32.totalorder %s118, %s120
    %p124 = scmp.eq.s32.totalorder %s16, 0
    %p125 = por %p123, %p124
    %p126 = scmp.ne.s32.totalorder %s118, %s120
    %p127 = scmp.eq.s32.totalorder %s21, 1
    %p128 = por %p126, %p127
    %p129 = scmp.ne.s32.totalorder %s120, %s121
    %p130 = scmp.eq.s32.totalorder %s21, 0
    %p131 = por %p129, %p130
    %p132 = scmp.ne.s32.totalorder %s120, %s121
    %p133 = scmp.eq.s32.totalorder %s22, 1
    %p134 = por %p132, %p133
    %p136 = scmp.ne.s32.totalorder %s121, %s135
    %p137 = scmp.eq.s32.totalorder %s22, 0
    %p138 = por %p136, %p137
    %s140 = sadd.s32 %s139, 1
    %p143 = scmp.eq.s32.totalorder %s16, 1
    %p144 = scmp.ne.s32.totalorder %s139, %s141
    %p145 = scmp.eq.s32.totalorder %s16, 0
    %p146 = por %p144, %p145
    %p147 = scmp.ne.s32.totalorder %s139, %s141
    %p148 = scmp.eq.s32.totalorder %s21, 1
    %p149 = por %p147, %p148
    %p150 = scmp.ne.s32.totalorder %s141, %s142
    %p151 = scmp.eq.s32.totalorder %s21, 0
    %p152 = por %p150, %p151
    %p153 = scmp.ne.s32.totalorder %s141, %s142
    %p154 = scmp.eq.s32.totalorder %s22, 1
    %p155 = por %p153, %p154
    %p157 = scmp.ne.s32.totalorder %s142, %s156
    %p158 = scmp.eq.s32.totalorder %s22, 0
    %p159 = por %p157, %p158
    %s161 = sadd.s32 %s160, 1
    %p164 = scmp.eq.s32.totalorder %s16, 1
    %p165 = scmp.ne.s32.totalorder %s160, %s162
    %p166 = scmp.eq.s32.totalorder %s16, 0
    %p167 = por %p165, %p166
    %p168 = scmp.ne.s32.totalorder %s160, %s162
    %p169 = scmp.eq.s32.totalorder %s21, 1
    %p170 = por %p168, %p169
    %p171 = scmp.ne.s32.totalorder %s162, %s163
    %p172 = scmp.eq.s32.totalorder %s21, 0
    %p173 = por %p171, %p172
    %p174 = scmp.ne.s32.totalorder %s162, %s163
    %p175 = scmp.eq.s32.totalorder %s22, 1
    %p176 = por %p174, %p175
    %p178 = scmp.ne.s32.totalorder %s163, %s177
    %p179 = scmp.eq.s32.totalorder %s22, 0
    %p180 = por %p178, %p179
    %s182 = sadd.s32 %s181, 1
    %p185 = scmp.eq.s32.totalorder %s16, 1
    %p186 = scmp.ne.s32.totalorder %s181, %s183
    %p187 = scmp.eq.s32.totalorder %s16, 0
    %p188 = por %p186, %p187
    %p189 = scmp.ne.s32.totalorder %s181, %s183
    %p190 = scmp.eq.s32.totalorder %s21, 1
    %p191 = por %p189, %p190
    %p192 = scmp.ne.s32.totalorder %s183, %s184
    %p193 = scmp.eq.s32.totalorder %s21, 0
    %p194 = por %p192, %p193
    %p195 = scmp.ne.s32.totalorder %s183, %s184
    %p196 = scmp.eq.s32.totalorder %s22, 1
    %p197 = por %p195, %p196
    %p199 = scmp.ne.s32.totalorder %s184, %s198
    %p200 = scmp.eq.s32.totalorder %s22, 0
    %p201 = por %p199, %p200
    %s203 = sadd.s32 %s202, 1
    %p206 = scmp.eq.s32.totalorder %s16, 1
    %p207 = scmp.ne.s32.totalorder %s202, %s204
    %p208 = scmp.eq.s32.totalorder %s16, 0
    %p209 = por %p207, %p208
    %p210 = scmp.ne.s32.totalorder %s202, %s204
    %p211 = scmp.eq.s32.totalorder %s21, 1
    %p212 = por %p210, %p211
    %p213 = scmp.ne.s32.totalorder %s204, %s205
    %p214 = scmp.eq.s32.totalorder %s21, 0
    %p215 = por %p213, %p214
    %p216 = scmp.ne.s32.totalorder %s204, %s205
    %p217 = scmp.eq.s32.totalorder %s22, 1
    %p218 = por %p216, %p217
    %p220 = scmp.ne.s32.totalorder %s205, %s219
    %p221 = scmp.eq.s32.totalorder %s22, 0
    %p222 = por %p220, %p221
    %s224 = sadd.s32 %s223, 1
    %p227 = scmp.eq.s32.totalorder %s16, 1
    %p228 = scmp.ne.s32.totalorder %s223, %s225
    %p229 = scmp.eq.s32.totalorder %s16, 0
    %p230 = por %p228, %p229
    %p231 = scmp.ne.s32.totalorder %s223, %s225
    %p232 = scmp.eq.s32.totalorder %s21, 1
    %p233 = por %p231, %p232
    %p234 = scmp.ne.s32.totalorder %s225, %s226
    %p235 = scmp.eq.s32.totalorder %s21, 0
    %p236 = por %p234, %p235
    %p237 = scmp.ne.s32.totalorder %s225, %s226
    %p238 = scmp.eq.s32.totalorder %s22, 1
    %p239 = por %p237, %p238
    %p241 = scmp.ne.s32.totalorder %s226, %s240
    %p242 = scmp.eq.s32.totalorder %s22, 0
    %p243 = por %p241, %p242
    %s244 = ssub.s32 %s16, %s23
    %p245 = scmp.eq.s32.totalorder %s244, 0
    %s247 = sadd.s32 %s246, 1
    %s248 = scalar_select %p245, %s246, %s247
    %p251 = pneg %p245
    %p252 = scmp.eq.s32.totalorder %s16, 1
    %p253 = por %p251, %p252
    %p254 = scmp.ne.s32.totalorder %s246, %s249
    %p255 = scmp.eq.s32.totalorder %s16, 0
    %p256 = por %p254, %p255
    %p257 = scmp.ne.s32.totalorder %s246, %s249
    %p258 = scmp.eq.s32.totalorder %s21, 1
    %p259 = por %p257, %p258
    %p260 = scmp.ne.s32.totalorder %s249, %s250
    %p261 = scmp.eq.s32.totalorder %s21, 0
    %p262 = por %p260, %p261
    %p263 = scmp.ne.s32.totalorder %s249, %s250
    %p264 = scmp.eq.s32.totalorder %s22, 1
    %p265 = por %p263, %p264
    %p267 = scmp.ne.s32.totalorder %s250, %s266
    %p268 = scmp.eq.s32.totalorder %s22, 0
    %p269 = por %p267, %p268
    %p270 = scmp.le.s32.totalorder 1, %s16
    %p271 = scmp.lt.s32.totalorder %s16, 3
    %p272 = pnand %p270, %p271
    %p273 = pneg %p272
    // Predicated region
    $region9: #{diffusion_ts_forward.31} parent=5 // pred_check
      _
    $region10: #{diffusion_ts_forward.31} parent=5 // pred_check_branch
      %275 = sbr.rel (%p272) target = $region12
    $region11: #{diffusion_ts_forward.31} parent=5 // pred_region
      %s276 = ssub.s32 %s16, 1
      // Predicated region
      $region13: #{diffusion_ts_forward.31} parent=11 // pred_check
        %p277 = pneg %p89
      $region14: #{diffusion_ts_forward.31} parent=11 // pred_check_branch
        %279 = sbr.rel (%p277) target = $region16
      $region15: #{diffusion_ts_forward.31} parent=11 // pred_region
        _
      $region16: #{diffusion_ts_forward.31} parent=11 // pred_fallthru
        _
      // Predicated region
      $region17: #{diffusion_ts_forward.31} parent=11 // pred_check
        %p280 = pneg %p110
      $region18: #{diffusion_ts_forward.31} parent=11 // pred_check_branch
        %282 = sbr.rel (%p280) target = $region20
      $region19: #{diffusion_ts_forward.31} parent=11 // pred_region
        _
      $region20: #{diffusion_ts_forward.31} parent=11 // pred_fallthru
        _
      // Predicated region
      $region21: #{diffusion_ts_forward.31} parent=11 // pred_check
        %p283 = pneg %p131
      $region22: #{diffusion_ts_forward.31} parent=11 // pred_check_branch
        %285 = sbr.rel (%p283) target = $region24
      $region23: #{diffusion_ts_forward.31} parent=11 // pred_region
        _
      $region24: #{diffusion_ts_forward.31} parent=11 // pred_fallthru
        _
      // Predicated region
      $region25: #{diffusion_ts_forward.31} parent=11 // pred_check
        %p286 = pneg %p152
      $region26: #{diffusion_ts_forward.31} parent=11 // pred_check_branch
        %288 = sbr.rel (%p286) target = $region28
      $region27: #{diffusion_ts_forward.31} parent=11 // pred_region
        _
      $region28: #{diffusion_ts_forward.31} parent=11 // pred_fallthru
        _
      // Predicated region
      $region29: #{diffusion_ts_forward.31} parent=11 // pred_check
        %p289 = pneg %p173
      $region30: #{diffusion_ts_forward.31} parent=11 // pred_check_branch
        %291 = sbr.rel (%p289) target = $region32
      $region31: #{diffusion_ts_forward.31} parent=11 // pred_region
        _
      $region32: #{diffusion_ts_forward.31} parent=11 // pred_fallthru
        _
      // Predicated region
      $region33: #{diffusion_ts_forward.31} parent=11 // pred_check
        %p292 = pneg %p194
      $region34: #{diffusion_ts_forward.31} parent=11 // pred_check_branch
        %294 = sbr.rel (%p292) target = $region36
      $region35: #{diffusion_ts_forward.31} parent=11 // pred_region
        _
      $region36: #{diffusion_ts_forward.31} parent=11 // pred_fallthru
        _
      // Predicated region
      $region37: #{diffusion_ts_forward.31} parent=11 // pred_check
        %p295 = pneg %p215
      $region38: #{diffusion_ts_forward.31} parent=11 // pred_check_branch
        %297 = sbr.rel (%p295) target = $region40
      $region39: #{diffusion_ts_forward.31} parent=11 // pred_region
        _
      $region40: #{diffusion_ts_forward.31} parent=11 // pred_fallthru
        _
      // Predicated region
      $region41: #{diffusion_ts_forward.31} parent=11 // pred_check
        %p298 = pneg %p236
      $region42: #{diffusion_ts_forward.31} parent=11 // pred_check_branch
        %300 = sbr.rel (%p298) target = $region44
      $region43: #{diffusion_ts_forward.31} parent=11 // pred_region
        _
      $region44: #{diffusion_ts_forward.31} parent=11 // pred_fallthru
        _
    $region12: #{diffusion_ts_forward.31} parent=5 // pred_fallthru
      _
    %p301 = scmp.lt.s32.totalorder %s16, 2
    // Predicated region
    $region45: #{diffusion_ts_forward.31} parent=5 // pred_check
      %p302 = pneg %p301
    $region46: #{diffusion_ts_forward.31} parent=5 // pred_check_branch
      %304 = sbr.rel (%p302) target = $region48
    $region47: #{diffusion_ts_forward.31} parent=5 // pred_region
      // Predicated region
      $region49: #{diffusion_ts_forward.31} parent=47 // pred_check
        %p305 = pneg %p36
      $region50: #{diffusion_ts_forward.31} parent=47 // pred_check_branch
        %307 = sbr.rel (%p305) target = $region52
      $region51: #{diffusion_ts_forward.31} parent=47 // pred_region
        %p308 = scmp.lt.s32.totalorder %s16, 1
        %s309 = scalar_select %p308, %s16, 1
        %s310 = smul.addr %s309, 2
        %s311 = smul.addr %s310, 8
        %s312 = scalar_lea.vmem %s0, %s311
      $region52: #{diffusion_ts_forward.31} parent=47 // pred_fallthru
        _
      // Predicated region
      $region53: #{diffusion_ts_forward.31} parent=47 // pred_check
        %p313 = pneg %p62
      $region54: #{diffusion_ts_forward.31} parent=47 // pred_check_branch
        %315 = sbr.rel (%p313) target = $region56
      $region55: #{diffusion_ts_forward.31} parent=47 // pred_region
        %p316 = scmp.lt.s32.totalorder %s16, 1
        %s317 = scalar_select %p316, %s16, 1
        %s318 = smul.addr %s317, 2
        %s319 = smul.addr %s318, 8
        %s320 = scalar_lea.vmem %s1, %s319
      $region56: #{diffusion_ts_forward.31} parent=47 // pred_fallthru
        _
    $region48: #{diffusion_ts_forward.31} parent=5 // pred_fallthru
      _
    %p321 = scmp.le.s32.totalorder 1, %s16
    %p322 = scmp.lt.s32.totalorder %s16, 3
    %p323 = pnand %p321, %p322
    %p324 = pneg %p323
    // Predicated region
    $region57: #{diffusion_ts_forward.31} parent=5 // pred_check
      _
    $region58: #{diffusion_ts_forward.31} parent=5 // pred_check_branch
      %326 = sbr.rel (%p323) target = $region60
    $region59: #{diffusion_ts_forward.31} parent=5 // pred_region
      %s327 = ssub.s32 %s16, 1
      %p328 = scmp.lt.s32.totalorder %s21, 1
      %s329 = scalar_select %p328, %s21, 1
      %s330 = smul.addr %s329, 2
      %s331 = smul.addr %s330, 8
      %s332 = scalar_lea.vmem %s0, %s331
      %p333 = pneg %p42
      %p334 = pneg %p39
      %p335 = scmp.lt.s32.totalorder %s21, 1
      %s336 = scalar_select %p335, %s21, 1
      %s337 = smul.addr %s336, 2
      %s338 = smul.addr %s337, 8
      %s339 = scalar_lea.vmem %s1, %s338
      %p340 = pneg %p68
      %p341 = pneg %p65
      %p342 = pneg %p89
      %p343 = pneg %p86
      %p344 = pneg %p110
      %p345 = pneg %p107
      %p346 = pneg %p131
      %p347 = pneg %p128
      %p348 = pneg %p152
      %p349 = pneg %p149
      %p350 = pneg %p173
      %p351 = pneg %p170
      %p352 = pneg %p194
      %p353 = pneg %p191
      %p354 = pneg %p215
      %p355 = pneg %p212
      %p356 = pneg %p236
      %p357 = pneg %p233
      %p358 = pneg %p262
      %p359 = pneg %p259
      %p360 = scmp.lt.s32.totalorder %s21, 1
      %s361 = scalar_select %p360, %s21, 1
      %s362 = smul.addr %s361, 2
      %s363 = smul.addr %s362, 8
      %s364 = scalar_lea.vmem %s10, %s363
      %p365 = scmp.lt.s32.totalorder %s21, 1
      %s366 = scalar_select %p365, %s21, 1
      %s367 = smul.addr %s366, 2
      %s368 = smul.addr %s367, 8
      %s369 = scalar_lea.vmem %s0, %s368
      %p370 = scmp.lt.s32.totalorder %s21, 1
      %s371 = scalar_select %p370, %s21, 1
      %s372 = smul.addr %s371, 2
      %s373 = smul.addr %s372, 8
      %s374 = scalar_lea.vmem %s1, %s373
      %p375 = scmp.lt.s32.totalorder %s21, 1
      %s376 = scalar_select %p375, %s21, 1
      %s377 = smul.addr %s376, 2
      %s378 = smul.addr %s377, 8
      %s379 = scalar_lea.vmem %s10, %s378
      %v381 = vld [vmem:[%s369] sm:$0xff]
      %v382 = vld [vmem:[%s369 + $0x8] sm:$0xff]
      %v383 = vld [vmem:[%s374] sm:$0xff]
      %v384 = vld [vmem:[%s374 + $0x8] sm:$0xff]
      %v385 = vld [vmem:[%s2] sm:$0x1]
      %v386 = vld [vmem:[%s3] sm:$0x1]
      %vm387 = vcmask 261120
      %v388 = vsel %vm387, %v381, 0.0
      %389 = vadd.xlane.f32.xlu0 %v388
      %v390 = vpop.xlane.xlu0 %389
      %v391 = vsel %vm387, %v382, 0.0
      %392 = vadd.xlane.f32.xlu0 %v391
      %v393 = vpop.xlane.xlu0 %392
      %v394 = vrcp.pop 32.0
      %v395 = vmul.f32 32.0, %v394
      %v396 = vsub.f32 1.0, %v395
      %v397 = vmul.f32 %v394, %v396
      %v398 = vadd.f32 %v394, %v397
      %vm399 = vweird.f32 %v394
      %v400 = vsel %vm399, %v394, %v398
      %v401 = vmul.f32 %v390, %v400
      %v402 = vmul.f32 %v393, %v400
      %v403 = vsub.f32 %v381, %v401
      %v404 = vsub.f32 %v382, %v402
      %v405 = vmul.f32 %v403, %v403
      %v406 = vmul.f32 %v404, %v404
      %v407 = vsel %vm387, %v405, 0.0
      %408 = vadd.xlane.f32.xlu0 %v407
      %v409 = vpop.xlane.xlu0 %408
      %v410 = vsel %vm387, %v406, 0.0
      %411 = vadd.xlane.f32.xlu0 %v410
      %v412 = vpop.xlane.xlu0 %411
      %v413 = vmul.f32 %v409, %v400
      %v414 = vmul.f32 %v412, %v400
      %v415 = vadd.f32 %v413, 1e-05
      %v416 = vadd.f32 %v414, 1e-05
      %v417 = vrsqrt.pop %v415
      %v418 = vmul.f32 %v417, %v415
      %v419 = vmul.f32 %v418, %v417
      %v420 = vmul.f32 0.5, %v419
      %v421 = vsub.f32 1.5, %v420
      %v422 = vmul.f32 %v417, %v421
      %vm423 = vweird.f32 %v415
      %vm424 = vweird.f32 %v417
      %vm425 = vmor %vm423, %vm424
      %v426 = vsel %vm425, %v417, %v422
      %v427 = vrsqrt.pop %v416
      %v428 = vmul.f32 %v427, %v416
      %v429 = vmul.f32 %v428, %v427
      %v430 = vmul.f32 0.5, %v429
      %v431 = vsub.f32 1.5, %v430
      %v432 = vmul.f32 %v427, %v431
      %vm433 = vweird.f32 %v416
      %vm434 = vweird.f32 %v427
      %vm435 = vmor %vm433, %vm434
      %v436 = vsel %vm435, %v427, %v432
      %v437 = vmul.f32 %v403, %v426
      %v438 = vmul.f32 %v404, %v436
      %v440 = vperm.slane %v385, 0
      %v442 = vmul.f32 %v437, %v440
      %v443 = vmul.f32 %v438, %v440
      %v445 = vperm.slane %v386, 0
      %v447 = vadd.f32 %v442, %v445
      %v448 = vadd.f32 %v443, %v445
      %v449 = vld [vmem:[%s4] sm:$0xff]
      %v450 = vld [vmem:[%s4 + $0x8] sm:$0xff]
      %v451 = vld [vmem:[%s4 + $0x10] sm:$0xff]
      %v452 = vld [vmem:[%s4 + $0x18] sm:$0xff]
      %v453 = vld [vmem:[%s5] sm:$0x1]
      %v454 = vpack.c.bf16 %v448, %v447
      %v455 = vpack.c.bf16 %v450, %v449
      %v456 = vpack.c.bf16 %v452, %v451
      %v458 = vperm.slane %v453, 0
      %v461 = vsel %vm387, %v454, 0
      %463 = vmatpush.bf16.msra.mxu0 0
      %464 = vmatpush.bf16.msra.mxu0 0
      %465 = vmatpush.bf16.msra.mxu0 0
      %466 = vmatpush.bf16.msra.mxu0 0
      %467 = vmatpush.bf16.msra.mxu0 0
      %468 = vmatpush.bf16.msra.mxu0 0
      %469 = vmatpush.bf16.msra.mxu0 %v456
      %470 = vmatpush.bf16.msra.mxu0 %v455
      %471 = vmatmul.bf16.gmra.mxu0 %v461
      %v472 = vpop.f32.mrf.mxu0
      %v473 = vadd.f32 %v458, %v472
      %v474 = vpop.f32.mrf.mxu0
      %v475 = vadd.f32 %v458, %v474
      %476 = vdwg.mxu0
      %v477 = vld [vmem:[%s6] sm:$0xff]
      %v478 = vld [vmem:[%s6 + $0x8] sm:$0xff]
      %v479 = vld [vmem:[%s6 + $0x10] sm:$0xff]
      %v480 = vld [vmem:[%s6 + $0x18] sm:$0xff]
      %v481 = vld [vmem:[%s7] sm:$0x1]
      %v482 = vpack.c.bf16 %v384, %v383
      %v483 = vpack.c.bf16 %v478, %v477
      %v484 = vpack.c.bf16 %v480, %v479
      %v486 = vperm.slane %v481, 0
      %v489 = vsel %vm387, %v482, 0
      %491 = vmatpush.bf16.msra.mxu0 0
      %492 = vmatpush.bf16.msra.mxu0 0
      %493 = vmatpush.bf16.msra.mxu0 0
      %494 = vmatpush.bf16.msra.mxu0 0
      %495 = vmatpush.bf16.msra.mxu0 0
      %496 = vmatpush.bf16.msra.mxu0 0
      %497 = vmatpush.bf16.msra.mxu0 %v484
      %498 = vmatpush.bf16.msra.mxu0 %v483
      %499 = vmatmul.bf16.gmra.mxu0 %v489
      %v500 = vpop.f32.mrf.mxu0
      %v501 = vadd.f32 %v486, %v500
      %v502 = vpop.f32.mrf.mxu0
      %v503 = vadd.f32 %v486, %v502
      %504 = vdwg.mxu0
      %v505 = vpack.c.bf16 %v475, %v473
      %v506 = vpack.c.bf16 %v503, %v501
      %vm507 = vcmask 64512
      %v509 = vsel %vm507, %v505, 0
      %v512 = vsel %vm507, %v506, 0
      %514 = vmatpush.bf16.xpose.msra.mxu0 0
      %515 = vmatpush.bf16.xpose.msra.mxu0 0
      %516 = vmatpush.bf16.xpose.msra.mxu0 0
      %517 = vmatpush.bf16.xpose.msra.mxu0 0
      %518 = vmatpush.bf16.xpose.msra.mxu0 0
      %519 = vmatpush.bf16.xpose.msra.mxu0 0
      %520 = vmatpush.bf16.xpose.msra.mxu0 0
      %521 = vmatpush.bf16.xpose.msra.mxu0 %v512
      %522 = vmatmul.bf16.gmra.mxu0 %v509
      %v523 = vpop.f32.mrf.mxu0
      %v524 = vadd.f32 0.0, %v523
      %v525 = vpop.f32.mrf.mxu0
      %v526 = vadd.f32 0.0, %v525
      %527 = vdwg.mxu0
      %v528 = vmul.f32 %v524, 0.35355338
      %v529 = vmul.f32 %v526, 0.35355338
      %vm530 = vcmask 130048
      %v531 = vsel %vm530, %v528, -inf
      %532 = vmax.xlane.f32.xlu0 %v531
      %v533 = vpop.xlane.xlu0 %532
      %v534 = vsel %vm530, %v529, -inf
      %535 = vmax.xlane.f32.xlu0 %v534
      %v536 = vpop.xlane.xlu0 %535
      %v537 = vsub.f32 %v528, %v533
      %v538 = vsub.f32 %v529, %v536
      %v539 = vmul.f32 %v537, 1.442695
      %v540 = vpow.pop %v539
      %v541 = vmul.f32 %v538, 1.442695
      %v542 = vpow.pop %v541
      %v543 = vsel %vm530, %v540, 0.0
      %544 = vadd.xlane.f32.xlu0 %v543
      %v545 = vpop.xlane.xlu0 %544
      %v546 = vsel %vm530, %v542, 0.0
      %547 = vadd.xlane.f32.xlu0 %v546
      %v548 = vpop.xlane.xlu0 %547
      %v549 = vrcp.pop %v545
      %v550 = vrcp.pop %v548
      %v551 = vmul.f32 %v540, %v549
      %v552 = vmul.f32 %v542, %v550
      %v553 = vpack.c.bf16 %v552, %v551
      %555 = vrot.lane.b32.xlu0 %v506, 96
      %v556 = vpop.permute.xlu0 %555
      %v559 = vsel %vm530, %v553, 0
      %561 = vmatpush.bf16.msra.mxu0 0
      %562 = vmatpush.bf16.msra.mxu0 0
      %563 = vmatpush.bf16.msra.mxu0 0
      %564 = vmatpush.bf16.msra.mxu0 0
      %565 = vmatpush.bf16.msra.mxu0 0
      %566 = vmatpush.bf16.msra.mxu0 0
      %567 = vmatpush.bf16.msra.mxu0 0
      %568 = vmatpush.bf16.msra.mxu0 %v556
      %569 = vmatmul.bf16.gmra.mxu0 %v559
      %v570 = vpop.f32.mrf.mxu0
      %v571 = vadd.f32 0.0, %v570
      %v572 = vpop.f32.mrf.mxu0
      %v573 = vadd.f32 0.0, %v572
      %574 = vdwg.mxu0
      %576 = vrot.lane.b32.xlu0 %v505, 120
      %v577 = vpop.permute.xlu0 %576
      %578 = vrot.lane.b32.xlu0 %v506, 120
      %v579 = vpop.permute.xlu0 %578
      %v581 = vsel %vm507, %v577, 0
      %v584 = vsel %vm507, %v579, 0
      %586 = vmatpush.bf16.xpose.msra.mxu0 0
      %587 = vmatpush.bf16.xpose.msra.mxu0 0
      %588 = vmatpush.bf16.xpose.msra.mxu0 0
      %589 = vmatpush.bf16.xpose.msra.mxu0 0
      %590 = vmatpush.bf16.xpose.msra.mxu0 0
      %591 = vmatpush.bf16.xpose.msra.mxu0 0
      %592 = vmatpush.bf16.xpose.msra.mxu0 0
      %593 = vmatpush.bf16.xpose.msra.mxu0 %v584
      %594 = vmatmul.bf16.gmra.mxu0 %v581
      %v595 = vpop.f32.mrf.mxu0
      %v596 = vadd.f32 0.0, %v595
      %v597 = vpop.f32.mrf.mxu0
      %v598 = vadd.f32 0.0, %v597
      %599 = vdwg.mxu0
      %v600 = vmul.f32 %v596, 0.35355338
      %v601 = vmul.f32 %v598, 0.35355338
      %v602 = vsel %vm530, %v600, -inf
      %603 = vmax.xlane.f32.xlu0 %v602
      %v604 = vpop.xlane.xlu0 %603
      %v605 = vsel %vm530, %v601, -inf
      %606 = vmax.xlane.f32.xlu0 %v605
      %v607 = vpop.xlane.xlu0 %606
      %v608 = vsub.f32 %v600, %v604
      %v609 = vsub.f32 %v601, %v607
      %v610 = vmul.f32 %v608, 1.442695
      %v611 = vpow.pop %v610
      %v612 = vmul.f32 %v609, 1.442695
      %v613 = vpow.pop %v612
      %v614 = vsel %vm530, %v611, 0.0
      %615 = vadd.xlane.f32.xlu0 %v614
      %v616 = vpop.xlane.xlu0 %615
      %v617 = vsel %vm530, %v613, 0.0
      %618 = vadd.xlane.f32.xlu0 %v617
      %v619 = vpop.xlane.xlu0 %618
      %v620 = vrcp.pop %v616
      %v621 = vrcp.pop %v619
      %v622 = vmul.f32 %v611, %v620
      %v623 = vmul.f32 %v613, %v621
      %v624 = vpack.c.bf16 %v623, %v622
      %625 = vrot.lane.b32.xlu0 %v506, 88
      %v626 = vpop.permute.xlu0 %625
      %v629 = vsel %vm530, %v624, 0
      %631 = vmatpush.bf16.msra.mxu0 0
      %632 = vmatpush.bf16.msra.mxu0 0
      %633 = vmatpush.bf16.msra.mxu0 0
      %634 = vmatpush.bf16.msra.mxu0 0
      %635 = vmatpush.bf16.msra.mxu0 0
      %636 = vmatpush.bf16.msra.mxu0 0
      %637 = vmatpush.bf16.msra.mxu0 0
      %638 = vmatpush.bf16.msra.mxu0 %v626
      %639 = vmatmul.bf16.gmra.mxu0 %v629
      %v640 = vpop.f32.mrf.mxu0
      %v641 = vadd.f32 0.0, %v640
      %v642 = vpop.f32.mrf.mxu0
      %v643 = vadd.f32 0.0, %v642
      %644 = vdwg.mxu0
      %645 = vrot.lane.b32.xlu0 %v505, 112
      %v646 = vpop.permute.xlu0 %645
      %647 = vrot.lane.b32.xlu0 %v506, 112
      %v648 = vpop.permute.xlu0 %647
      %v650 = vsel %vm507, %v646, 0
      %v653 = vsel %vm507, %v648, 0
      %655 = vmatpush.bf16.xpose.msra.mxu0 0
      %656 = vmatpush.bf16.xpose.msra.mxu0 0
      %657 = vmatpush.bf16.xpose.msra.mxu0 0
      %658 = vmatpush.bf16.xpose.msra.mxu0 0
      %659 = vmatpush.bf16.xpose.msra.mxu0 0
      %660 = vmatpush.bf16.xpose.msra.mxu0 0
      %661 = vmatpush.bf16.xpose.msra.mxu0 0
      %662 = vmatpush.bf16.xpose.msra.mxu0 %v653
      %663 = vmatmul.bf16.gmra.mxu0 %v650
      %v664 = vpop.f32.mrf.mxu0
      %v665 = vadd.f32 0.0, %v664
      %v666 = vpop.f32.mrf.mxu0
      %v667 = vadd.f32 0.0, %v666
      %668 = vdwg.mxu0
      %v669 = vmul.f32 %v665, 0.35355338
      %v670 = vmul.f32 %v667, 0.35355338
      %v671 = vsel %vm530, %v669, -inf
      %672 = vmax.xlane.f32.xlu0 %v671
      %v673 = vpop.xlane.xlu0 %672
      %v674 = vsel %vm530, %v670, -inf
      %675 = vmax.xlane.f32.xlu0 %v674
      %v676 = vpop.xlane.xlu0 %675
      %v677 = vsub.f32 %v669, %v673
      %v678 = vsub.f32 %v670, %v676
      %v679 = vmul.f32 %v677, 1.442695
      %v680 = vpow.pop %v679
      %v681 = vmul.f32 %v678, 1.442695
      %v682 = vpow.pop %v681
      %v683 = vsel %vm530, %v680, 0.0
      %684 = vadd.xlane.f32.xlu0 %v683
      %v685 = vpop.xlane.xlu0 %684
      %v686 = vsel %vm530, %v682, 0.0
      %687 = vadd.xlane.f32.xlu0 %v686
      %v688 = vpop.xlane.xlu0 %687
      %v689 = vrcp.pop %v685
      %v690 = vrcp.pop %v688
      %v691 = vmul.f32 %v680, %v689
      %v692 = vmul.f32 %v682, %v690
      %v693 = vpack.c.bf16 %v692, %v691
      %694 = vrot.lane.b32.xlu0 %v506, 80
      %v695 = vpop.permute.xlu0 %694
      %v698 = vsel %vm530, %v693, 0
      %700 = vmatpush.bf16.msra.mxu0 0
      %701 = vmatpush.bf16.msra.mxu0 0
      %702 = vmatpush.bf16.msra.mxu0 0
      %703 = vmatpush.bf16.msra.mxu0 0
      %704 = vmatpush.bf16.msra.mxu0 0
      %705 = vmatpush.bf16.msra.mxu0 0
      %706 = vmatpush.bf16.msra.mxu0 0
      %707 = vmatpush.bf16.msra.mxu0 %v695
      %708 = vmatmul.bf16.gmra.mxu0 %v698
      %v709 = vpop.f32.mrf.mxu0
      %v710 = vadd.f32 0.0, %v709
      %v711 = vpop.f32.mrf.mxu0
      %v712 = vadd.f32 0.0, %v711
      %713 = vdwg.mxu0
      %714 = vrot.lane.b32.xlu0 %v505, 104
      %v715 = vpop.permute.xlu0 %714
      %716 = vrot.lane.b32.xlu0 %v506, 104
      %v717 = vpop.permute.xlu0 %716
      %v719 = vsel %vm507, %v715, 0
      %v722 = vsel %vm507, %v717, 0
      %724 = vmatpush.bf16.xpose.msra.mxu0 0
      %725 = vmatpush.bf16.xpose.msra.mxu0 0
      %726 = vmatpush.bf16.xpose.msra.mxu0 0
      %727 = vmatpush.bf16.xpose.msra.mxu0 0
      %728 = vmatpush.bf16.xpose.msra.mxu0 0
      %729 = vmatpush.bf16.xpose.msra.mxu0 0
      %730 = vmatpush.bf16.xpose.msra.mxu0 0
      %731 = vmatpush.bf16.xpose.msra.mxu0 %v722
      %732 = vmatmul.bf16.gmra.mxu0 %v719
      %v733 = vpop.f32.mrf.mxu0
      %v734 = vadd.f32 0.0, %v733
      %v735 = vpop.f32.mrf.mxu0
      %v736 = vadd.f32 0.0, %v735
      %737 = vdwg.mxu0
      %v738 = vmul.f32 %v734, 0.35355338
      %v739 = vmul.f32 %v736, 0.35355338
      %v740 = vsel %vm530, %v738, -inf
      %741 = vmax.xlane.f32.xlu0 %v740
      %v742 = vpop.xlane.xlu0 %741
      %v743 = vsel %vm530, %v739, -inf
      %744 = vmax.xlane.f32.xlu0 %v743
      %v745 = vpop.xlane.xlu0 %744
      %v746 = vsub.f32 %v738, %v742
      %v747 = vsub.f32 %v739, %v745
      %v748 = vmul.f32 %v746, 1.442695
      %v749 = vpow.pop %v748
      %v750 = vmul.f32 %v747, 1.442695
      %v751 = vpow.pop %v750
      %v752 = vsel %vm530, %v749, 0.0
      %753 = vadd.xlane.f32.xlu0 %v752
      %v754 = vpop.xlane.xlu0 %753
      %v755 = vsel %vm530, %v751, 0.0
      %756 = vadd.xlane.f32.xlu0 %v755
      %v757 = vpop.xlane.xlu0 %756
      %v758 = vrcp.pop %v754
      %v759 = vrcp.pop %v757
      %v760 = vmul.f32 %v749, %v758
      %v761 = vmul.f32 %v751, %v759
      %v762 = vpack.c.bf16 %v761, %v760
      %763 = vrot.lane.b32.xlu0 %v506, 72
      %v764 = vpop.permute.xlu0 %763
      %v767 = vsel %vm530, %v762, 0
      %769 = vmatpush.bf16.msra.mxu0 0
      %770 = vmatpush.bf16.msra.mxu0 0
      %771 = vmatpush.bf16.msra.mxu0 0
      %772 = vmatpush.bf16.msra.mxu0 0
      %773 = vmatpush.bf16.msra.mxu0 0
      %774 = vmatpush.bf16.msra.mxu0 0
      %775 = vmatpush.bf16.msra.mxu0 0
      %776 = vmatpush.bf16.msra.mxu0 %v764
      %777 = vmatmul.bf16.gmra.mxu0 %v767
      %v778 = vpop.f32.mrf.mxu0
      %v779 = vadd.f32 0.0, %v778
      %v780 = vpop.f32.mrf.mxu0
      %v781 = vadd.f32 0.0, %v780
      %782 = vdwg.mxu0
      %785 = vrot.lane.b32.xlu0 %v641, 8
      %v786 = vpop.permute.xlu0 %785
      %787 = vrot.lane.b32.xlu0 %v643, 8
      %v788 = vpop.permute.xlu0 %787
      %793 = vrot.lane.b32.xlu0 %v710, 16
      %v794 = vpop.permute.xlu0 %793
      %795 = vrot.lane.b32.xlu0 %v712, 16
      %v796 = vpop.permute.xlu0 %795
      %801 = vrot.lane.b32.xlu0 %v779, 24
      %v802 = vpop.permute.xlu0 %801
      %803 = vrot.lane.b32.xlu0 %v781, 24
      %v804 = vpop.permute.xlu0 %803
      %v807 = vsel %vm507, %v571, %v786
      %v808 = vsel %vm507, %v573, %v788
      %v809 = vsel %vm530, %v807, %v794
      %v810 = vsel %vm530, %v808, %v796
      %vm811 = vcmask 195584
      %v812 = vsel %vm811, %v809, %v802
      %v813 = vsel %vm811, %v810, %v804
      %v814 = vld [vmem:[%s8] sm:$0xff]
      %v815 = vld [vmem:[%s8 + $0x8] sm:$0xff]
      %v816 = vld [vmem:[%s8 + $0x10] sm:$0xff]
      %v817 = vld [vmem:[%s8 + $0x18] sm:$0xff]
      %v818 = vld [vmem:[%s9] sm:$0x1]
      %v819 = vpack.c.bf16 %v813, %v812
      %v820 = vpack.c.bf16 %v815, %v814
      %v821 = vpack.c.bf16 %v817, %v816
      %v823 = vperm.slane %v818, 0
      %v826 = vsel %vm387, %v819, 0
      %828 = vmatpush.bf16.msra.mxu0 0
      %829 = vmatpush.bf16.msra.mxu0 0
      %830 = vmatpush.bf16.msra.mxu0 0
      %831 = vmatpush.bf16.msra.mxu0 0
      %832 = vmatpush.bf16.msra.mxu0 0
      %833 = vmatpush.bf16.msra.mxu0 0
      %834 = vmatpush.bf16.msra.mxu0 %v821
      %835 = vmatpush.bf16.msra.mxu0 %v820
      %836 = vmatmul.bf16.gmra.mxu0 %v826
      %v837 = vpop.f32.mrf.mxu0
      %v838 = vadd.f32 %v823, %v837
      %v839 = vpop.f32.mrf.mxu0
      %v840 = vadd.f32 %v823, %v839
      %841 = vdwg.mxu0
      %v842 = vadd.f32 %v381, %v838
      %v843 = vadd.f32 %v382, %v840
      %844 = vst.msk [vmem:[%s379] sm:$0xff] %vm387, %v842
      %845 = vst.msk [vmem:[%s379 + $0x8] sm:$0xff] %vm387, %v843
      %p846 = scmp.lt.s32.totalorder %s21, 1
      %s847 = scalar_select %p846, %s21, 1
      %s848 = smul.addr %s847, 2
      %s849 = smul.addr %s848, 8
      %s850 = scalar_lea.vmem %s10, %s849
      // Predicated region
      $region61: #{diffusion_ts_forward.31} parent=59 // pred_check
        %p851 = pneg %p259
      $region62: #{diffusion_ts_forward.31} parent=59 // pred_check_branch
        %853 = sbr.rel (%p851) target = $region64
      $region63: #{diffusion_ts_forward.31} parent=59 // pred_region
        _
      $region64: #{diffusion_ts_forward.31} parent=59 // pred_fallthru
        _
    $region60: #{diffusion_ts_forward.31} parent=5 // pred_fallthru
      _
    %p854 = scmp.le.s32.totalorder 2, %s16
    // Predicated region
    $region65: #{diffusion_ts_forward.31} parent=5 // pred_check
      %p855 = pneg %p854
    $region66: #{diffusion_ts_forward.31} parent=5 // pred_check_branch
      %857 = sbr.rel (%p855) target = $region68
    $region67: #{diffusion_ts_forward.31} parent=5 // pred_region
      %s858 = ssub.s32 %s16, 2
      // Predicated region
      $region69: #{diffusion_ts_forward.31} parent=67 // pred_check
        %p859 = pneg %p265
      $region70: #{diffusion_ts_forward.31} parent=67 // pred_check_branch
        %861 = sbr.rel (%p859) target = $region72
      $region71: #{diffusion_ts_forward.31} parent=67 // pred_region
        %p862 = scmp.lt.s32.totalorder %s22, 1
        %s863 = scalar_select %p862, %s22, 1
        %s864 = smul.addr %s863, 2
        %s865 = smul.addr %s864, 8
        %s866 = scalar_lea.vmem %s10, %s865
      $region72: #{diffusion_ts_forward.31} parent=67 // pred_fallthru
        _
    $region68: #{diffusion_ts_forward.31} parent=5 // pred_fallthru
      _
  $region6: #{diffusion_ts_forward.31} parent=0 // loop_footer
    %s20 = sadd.s32 1, %s16
  $region7: #{diffusion_ts_forward.31} parent=0 // loop_footer_branch
    %15 = sbr.rel target = $region3
  $region8: #{diffusion_ts_forward.31} parent=0 // loop_exit
    _

// kernel: diffusion_ts_forward.33
$region0: #{diffusion_ts_forward.33}
  #allocation0 [shape = 'u32[]', space=smem, size = 0x4, offset = 0x4, fixed_abs, tag = 'smem constant byte address 0x4 - core index']
  #allocation1 [shape = 'u32[72,128]{1,0:T(1,128)}', space=vmem, size = 0x9000, scoped, tag = 'internal scratch']
  %s0 = inlined_call_operand.vmem [shape: f32[2,16,32], index: 0, kind: input, shape index: {}]
  %s1 = inlined_call_operand.vmem [shape: f32[32,8], index: 1, kind: input, shape index: {}]
  %s2 = inlined_call_operand.vmem [shape: f32[1,8], index: 2, kind: input, shape index: {}]
  %s3 = inlined_call_operand.vmem [shape: f32[2,16,4], index: 3, kind: input, shape index: {}]
  %s4 = inlined_call_operand.vmem [shape: f32[2,1,1], index: 4, kind: input, shape index: {}]
  %s5 = inlined_call_operand.vmem [shape: f32[1,8], index: 5, kind: input, shape index: {}]
  %s6 = inlined_call_operand.vmem [shape: f32[16,16], index: 6, kind: input, shape index: {}]
  %s7 = inlined_call_operand.vmem [shape: f32[16,16], index: 7, kind: input, shape index: {}]
  %s8 = inlined_call_operand.hbm [shape: f32[1,1], index: 8, kind: output, shape index: {}]
  %s9 = sld [smem:[#allocation0]]
  $region42: #{diffusion_ts_forward.33} parent=0
    _
  %s11 = ssub.s32 1, %s9
  %s12 = scalar_select 0, %s11, %s9
  $region1: #{diffusion_ts_forward.33} parent=0
    #allocation2 [shape = 'u8[512]{0}', space=smem, size = 0x200, scoped, tag = 'output window, operand 0, single buffered']
    #allocation3 [shape = 's32[1]{0}', space=sflag, size = 0x4, scoped, tag = 'scoped memory for diffusion_ts_forward.33']
    %13 = vsyncpa [#allocation3], 0
    // Predicated region
    $region2: #{diffusion_ts_forward.33} parent=1 // pred_check
      _
    $region3: #{diffusion_ts_forward.33} parent=1 // pred_check_branch
      %15 = sbr.rel (0) target = $region5
    $region4: #{diffusion_ts_forward.33} parent=1 // pred_region
      _
    $region5: #{diffusion_ts_forward.33} parent=1 // pred_fallthru
      _
    // Predicated region
    $region6: #{diffusion_ts_forward.33} parent=1 // pred_check
      _
    $region7: #{diffusion_ts_forward.33} parent=1 // pred_check_branch
      %17 = sbr.rel (0) target = $region9
    $region8: #{diffusion_ts_forward.33} parent=1 // pred_region
      _
    $region9: #{diffusion_ts_forward.33} parent=1 // pred_fallthru
      _
    // Predicated region
    $region10: #{diffusion_ts_forward.33} parent=1 // pred_check
      _
    $region11: #{diffusion_ts_forward.33} parent=1 // pred_check_branch
      %19 = sbr.rel (0) target = $region13
    $region12: #{diffusion_ts_forward.33} parent=1 // pred_region
      _
    $region13: #{diffusion_ts_forward.33} parent=1 // pred_fallthru
      _
    // Predicated region
    $region14: #{diffusion_ts_forward.33} parent=1 // pred_check
      _
    $region15: #{diffusion_ts_forward.33} parent=1 // pred_check_branch
      %21 = sbr.rel (0) target = $region17
    $region16: #{diffusion_ts_forward.33} parent=1 // pred_region
      _
    $region17: #{diffusion_ts_forward.33} parent=1 // pred_fallthru
      _
    // Predicated region
    $region18: #{diffusion_ts_forward.33} parent=1 // pred_check
      _
    $region19: #{diffusion_ts_forward.33} parent=1 // pred_check_branch
      %23 = sbr.rel (0) target = $region21
    $region20: #{diffusion_ts_forward.33} parent=1 // pred_region
      _
    $region21: #{diffusion_ts_forward.33} parent=1 // pred_fallthru
      _
    // Predicated region
    $region22: #{diffusion_ts_forward.33} parent=1 // pred_check
      _
    $region23: #{diffusion_ts_forward.33} parent=1 // pred_check_branch
      %25 = sbr.rel (0) target = $region25
    $region24: #{diffusion_ts_forward.33} parent=1 // pred_region
      _
    $region25: #{diffusion_ts_forward.33} parent=1 // pred_fallthru
      _
    // Predicated region
    $region26: #{diffusion_ts_forward.33} parent=1 // pred_check
      _
    $region27: #{diffusion_ts_forward.33} parent=1 // pred_check_branch
      %27 = sbr.rel (0) target = $region29
    $region28: #{diffusion_ts_forward.33} parent=1 // pred_region
      _
    $region29: #{diffusion_ts_forward.33} parent=1 // pred_fallthru
      _
    // Predicated region
    $region30: #{diffusion_ts_forward.33} parent=1 // pred_check
      _
    $region31: #{diffusion_ts_forward.33} parent=1 // pred_check_branch
      %29 = sbr.rel (0) target = $region33
    $region32: #{diffusion_ts_forward.33} parent=1 // pred_region
      _
    $region33: #{diffusion_ts_forward.33} parent=1 // pred_fallthru
      _
    %v31 = vld [vmem:[%s0] sm:$0xff]
    %v32 = vld [vmem:[%s0 + $0x8] sm:$0xff]
    %v33 = vld [vmem:[%s0 + $0x10] sm:$0xff]
    %v34 = vld [vmem:[%s0 + $0x18] sm:$0xff]
    %v35 = vld [vmem:[%s1] sm:$0xff]
    %v36 = vld [vmem:[%s1 + $0x8] sm:$0xff]
    %v37 = vld [vmem:[%s1 + $0x10] sm:$0xff]
    %v38 = vld [vmem:[%s1 + $0x18] sm:$0xff]
    %v39 = vld [vmem:[%s2] sm:$0x1]
    %v40 = vpack.c.bf16 %v32, %v31
    %v41 = vpack.c.bf16 %v34, %v33
    %v42 = vpack.c.bf16 %v36, %v35
    %v43 = vpack.c.bf16 %v38, %v37
    %v45 = vperm.slane %v39, 0
    %vm47 = vcmask 261120
    %v49 = vsel %vm47, %v40, 0
    %v52 = vsel %vm47, %v41, 0
    %54 = vmatpush.bf16.msra.mxu0 0
    %55 = vmatpush.bf16.msra.mxu0 0
    %56 = vmatpush.bf16.msra.mxu0 0
    %57 = vmatpush.bf16.msra.mxu0 0
    %58 = vmatpush.bf16.msra.mxu0 0
    %59 = vmatpush.bf16.msra.mxu0 0
    %60 = vmatpush.bf16.msra.mxu0 %v43
    %61 = vmatpush.bf16.msra.mxu0 %v42
    %62 = vmatmul.bf16.gmra.mxu0 %v49
    %v63 = vpop.f32.mrf.mxu0
    %v64 = vadd.f32 %v45, %v63
    %v65 = vpop.f32.mrf.mxu0
    %v66 = vadd.f32 %v45, %v65
    %67 = vmatmul.bf16.gmra.mxu0 %v52
    %v68 = vpop.f32.mrf.mxu0
    %v69 = vadd.f32 %v45, %v68
    %v70 = vpop.f32.mrf.mxu0
    %v71 = vadd.f32 %v45, %v70
    %72 = vdwg.mxu0
    %77 = vrot.lane.b32.xlu0 %v64, 124
    %v78 = vpop.permute.xlu0 %77
    %79 = vrot.lane.b32.xlu0 %v66, 124
    %v80 = vpop.permute.xlu0 %79
    %81 = vrot.lane.b32.xlu0 %v69, 124
    %v82 = vpop.permute.xlu0 %81
    %83 = vrot.lane.b32.xlu0 %v71, 124
    %v84 = vpop.permute.xlu0 %83
    %v89 = vadd.f32 %v64, %v78
    %v90 = vadd.f32 %v66, %v80
    %v91 = vadd.f32 %v69, %v82
    %v92 = vadd.f32 %v71, %v84
    %v93 = vld [vmem:[%s3] sm:$0xff]
    %v94 = vld [vmem:[%s3 + $0x8] sm:$0xff]
    %v95 = vld [vmem:[%s3 + $0x10] sm:$0xff]
    %v96 = vld [vmem:[%s3 + $0x18] sm:$0xff]
    %v97 = vsub.f32 %v89, %v93
    %v98 = vsub.f32 %v90, %v94
    %v99 = vsub.f32 %v91, %v95
    %v100 = vsub.f32 %v92, %v96
    %v101 = vand.u32 2147483647, %v97
    %v102 = vand.u32 2147483647, %v98
    %v103 = vand.u32 2147483647, %v99
    %v104 = vand.u32 2147483647, %v100
    %v105 = vld [vmem:[%s4] sm:$0x1]
    %v106 = vld [vmem:[%s4 + $0x1] sm:$0x1]
    %v109 = vperm.slane %v105, 0
    %v110 = vperm.slane %v106, 0
    %111 = vset.pattern.permute.xlu0 0
    %112 = vperm.xlu0 %111, %v109
    %v113 = vpop.permute.xlu0 %112
    %115 = vset.pattern.permute.xlu0 0
    %116 = vperm.xlu0 %115, %v110
    %v117 = vpop.permute.xlu0 %116
    %v119 = vmul.f32 %v101, %v113
    %v120 = vmul.f32 %v102, %v113
    %v121 = vmul.f32 %v103, %v117
    %v122 = vmul.f32 %v104, %v117
    %vm123 = vcmask 31744
    %v124 = vsel %vm123, %v119, 0.0
    %v125 = vsel %vm123, %v120, 0.0
    %v126 = vadd.f32 %v124, %v125
    %v127 = vsel %vm123, %v121, 0.0
    %v128 = vadd.f32 %v126, %v127
    %v129 = vsel %vm123, %v122, 0.0
    %v130 = vadd.f32 %v128, %v129
    %131 = vadd.xlane.f32.xlu0 %v130
    %v132 = vpop.xlane.xlu0 %131
    %v133 = vrot.slane %v132, 4
    %v134 = vadd.f32 %v132, %v133
    %v135 = vrot.slane %v134, 2
    %v136 = vadd.f32 %v134, %v135
    %v137 = vrot.slane %v136, 1
    %v138 = vadd.f32 %v136, %v137
    %s139 = vtos %v138
    %142 = vrot.lane.b32.xlu0 %v99, 4
    %v143 = vpop.permute.xlu0 %142
    %144 = vrot.lane.b32.xlu0 %v100, 4
    %v145 = vpop.permute.xlu0 %144
    %v148 = vsel %vm123, %v97, %v143
    %v149 = vsel %vm123, %v98, %v145
    %v150 = vld [vmem:[%s6] sm:$0xff]
    %v151 = vld [vmem:[%s6 + $0x8] sm:$0xff]
    %vm152 = vcmask 130048
    %v154 = vsel %vm152, %v150, 0
    %v157 = vsel %vm152, %v151, 0
    %159 = vmatpush.msra.mxu0 0.0
    %160 = vmatpush.msra.mxu0 0.0
    %161 = vmatpush.msra.mxu0 0.0
    %162 = vmatpush.msra.mxu0 0.0
    %163 = vmatpush.msra.mxu0 0.0
    %164 = vmatpush.msra.mxu0 0.0
    %165 = vmatpush.msra.mxu0 0.0
    %166 = vmatpush.msra.mxu0 0.0
    %167 = vmatpush.msra.mxu0 0.0
    %168 = vmatpush.msra.mxu0 0.0
    %169 = vmatpush.msra.mxu0 0.0
    %170 = vmatpush.msra.mxu0 0.0
    %171 = vmatpush.msra.mxu0 0.0
    %172 = vmatpush.msra.mxu0 0.0
    %173 = vmatpush.msra.mxu0 %v149
    %174 = vmatpush.msra.mxu0 %v148
    %175 = vmatmul.f32.gmra.mxu0 %v154
    %v176 = vpop.f32.mrf.mxu0
    %v177 = vadd.f32 0.0, %v176
    %178 = vmatmul.f32.gmra.mxu0 %v157
    %v179 = vpop.f32.mrf.mxu0
    %v180 = vadd.f32 0.0, %v179
    %181 = vdwg.mxu0
    %v182 = vld [vmem:[%s7] sm:$0xff]
    %v183 = vld [vmem:[%s7 + $0x8] sm:$0xff]
    %v185 = vsel %vm152, %v182, 0
    %v188 = vsel %vm152, %v183, 0
    %190 = vmatpush.msra.mxu0 0.0
    %191 = vmatpush.msra.mxu0 0.0
    %192 = vmatpush.msra.mxu0 0.0
    %193 = vmatpush.msra.mxu0 0.0
    %194 = vmatpush.msra.mxu0 0.0
    %195 = vmatpush.msra.mxu0 0.0
    %196 = vmatpush.msra.mxu0 0.0
    %197 = vmatpush.msra.mxu0 0.0
    %198 = vmatpush.msra.mxu0 0.0
    %199 = vmatpush.msra.mxu0 0.0
    %200 = vmatpush.msra.mxu0 0.0
    %201 = vmatpush.msra.mxu0 0.0
    %202 = vmatpush.msra.mxu0 0.0
    %203 = vmatpush.msra.mxu0 0.0
    %204 = vmatpush.msra.mxu0 %v149
    %205 = vmatpush.msra.mxu0 %v148
    %206 = vmatmul.f32.gmra.mxu0 %v185
    %v207 = vpop.f32.mrf.mxu0
    %v208 = vadd.f32 0.0, %v207
    %209 = vmatmul.f32.gmra.mxu0 %v188
    %v210 = vpop.f32.mrf.mxu0
    %v211 = vadd.f32 0.0, %v210
    %212 = vdwg.mxu0
    %v213 = vand.u32 2147483647, %v177
    %v214 = vand.u32 2147483647, %v180
    %v215 = vand.u32 2147483647, %v208
    %v216 = vand.u32 2147483647, %v211
    %v217 = vadd.f32 %v213, %v215
    %v218 = vadd.f32 %v214, %v216
    %v219 = vld [vmem:[%s5] sm:$0x1]
    %v221 = vperm.slane %v219, 0
    %v223 = vmul.f32 %v217, %v221
    %v224 = vmul.f32 %v218, %v221
    %vm225 = vcmask 64512
    %v226 = vsel %vm225, %v223, 0.0
    %v227 = vsel %vm225, %v224, 0.0
    %v228 = vadd.f32 %v226, %v227
    %229 = vadd.xlane.f32.xlu0 %v228
    %v230 = vpop.xlane.xlu0 %229
    %v231 = vrot.slane %v230, 4
    %v232 = vadd.f32 %v230, %v231
    %v233 = vrot.slane %v232, 2
    %v234 = vadd.f32 %v232, %v233
    %v235 = vrot.slane %v234, 1
    %v236 = vadd.f32 %v234, %v235
    %s237 = vtos %v236
    %s238 = smul.f32 %s237, 0.8
    %s239 = sadd.f32 %s139, %s238
    %s240 = smul.f32 %s239, 0.0078125
    %s241 = scalar_lea.smem [#allocation2], 0
    %242 = sst [smem:[%s241]] %s240
    // Predicated region
    $region34: #{diffusion_ts_forward.33} parent=1 // pred_check
      _
    $region35: #{diffusion_ts_forward.33} parent=1 // pred_check_branch
      %244 = sbr.rel (0) target = $region37
    $region36: #{diffusion_ts_forward.33} parent=1 // pred_region
      %246 = vsyncadd [#allocation3], 0
      %s248 = sshll.u32 %s8, 4
      %s249 = int_to_ptr.hbm [resolvable:$true] %s248
      %251 = dma.smem_to_hbm [#allocation2], 16, %s249, [#allocation3]
    $region37: #{diffusion_ts_forward.33} parent=1 // pred_fallthru
      _
    // Predicated region
    $region38: #{diffusion_ts_forward.33} parent=1 // pred_check
      _
    $region39: #{diffusion_ts_forward.33} parent=1 // pred_check_branch
      %253 = sbr.rel (0) target = $region41
    $region40: #{diffusion_ts_forward.33} parent=1 // pred_region
      %255 = dma.done [#allocation3], 16
    $region41: #{diffusion_ts_forward.33} parent=1 // pred_fallthru
      _
    %256 = sfence
    %257 = vsyncpa [#allocation3], 1

</llo_original>
